<compile_context>
chip_gen: v7x
topology: tpu7x:2x2x1
jax: 0.10.0
libtpu: 0.0.40
codegen_flags: <defaults>
</compile_context>

<pallas_src>
import math
import jax
import jax.numpy as jnp
from jax.experimental import pallas as pl
from jax.experimental.pallas import tpu as pltpu

# ---------------- small synthetic BERT config ----------------
VOCAB = 50
TYPE_VOCAB = 2
MAX_POS = 16
HIDDEN = 32          # stands in for 768
NUM_HEADS = 4
HEAD_DIM = HIDDEN // NUM_HEADS
INTERMEDIATE = 64    # stands in for 3072
NUM_LAYERS = 2
NUM_CLASSES = 2
BATCH = 2
SEQ = 8
LN_EPS = 1e-12
LANE = 128           # classifier output padded to a full lane tile (lane-dense store)
OUT_ROWS = 8         # logits replicated over 8 sublanes so the output block is (8, 128) tiled


# ---------------- in-kernel helpers (f32 math) ----------------
def _layernorm(x, gamma, beta):
    mean = jnp.mean(x, axis=-1, keepdims=True)
    var = jnp.mean(jnp.square(x - mean), axis=-1, keepdims=True)
    return (x - mean) * jax.lax.rsqrt(var + LN_EPS) * gamma + beta


def _gelu(x):
    # exact (erf-based) GELU, matching HF BERT's default "gelu"
    return 0.5 * x * (1.0 + jax.lax.erf(x * (1.0 / math.sqrt(2.0))))


# ---------------- fused encoder + pooler + classifier kernel (one example per grid step) ----
def fused_bert_kernel(emb_ref, mask_ref, emb_g_ref, emb_b_ref,
                      wq_ref, wk_ref, wv_ref, bq_ref, bk_ref, bv_ref,
                      wo_ref, bo_ref, ln1g_ref, ln1b_ref,
                      w1_ref, b1_ref, w2_ref, b2_ref, ln2g_ref, ln2b_ref,
                      poolw_ref, poolb_ref, densew_ref, denseb_ref,
                      logits_ref):
    S, H, NH, D = SEQ, HIDDEN, NUM_HEADS, HEAD_DIM
    bf16, f32 = jnp.bfloat16, jnp.float32

    # ---- embeddings were summed on host; LayerNorm them here ----
    h = _layernorm(emb_ref[...], emb_g_ref[...], emb_b_ref[...])            # (S, H) f32

    # additive key mask, broadcast once (hoisted out of the layer loop)
    mask = jnp.broadcast_to(mask_ref[...], (NH, S, S))                      # (NH, S, S) f32

    # ---- static loop over layers: all stacked weights are VMEM-resident ----
    for l in range(NUM_LAYERS):
        # ---------- self-attention (head-batched, no lane slicing) ----------
        xb = jnp.broadcast_to(h, (NH, S, H)).astype(bf16)                   # (NH, S, H)
        q = jnp.einsum("hsk,hkd->hsd", xb, wq_ref[l],
                       preferred_element_type=f32) + bq_ref[l]              # scale pre-folded
        k = jnp.einsum("hsk,hkd->hsd", xb, wk_ref[l],
                       preferred_element_type=f32) + bk_ref[l]
        v = jnp.einsum("hsk,hkd->hsd", xb, wv_ref[l],
                       preferred_element_type=f32) + bv_ref[l]              # (NH, S, D)

        s = jnp.einsum("hqd,hkd->hqk", q.astype(bf16), k.astype(bf16),
                       preferred_element_type=f32) + mask                   # (NH, S, S)
        s = s - jnp.max(s, axis=-1, keepdims=True)
        p = jnp.exp(s)
        p = p * pl.reciprocal(jnp.sum(p, axis=-1, keepdims=True), approx=True)

        ctx = jnp.einsum("hqk,hkd->hqd", p.astype(bf16), v.astype(bf16),
                         preferred_element_type=f32)                        # (NH, S, D)
        # per-head output projection, summed over heads (== concat + single (H,H) projection)
        attn = jnp.einsum("hsd,hde->hse", ctx.astype(bf16), wo_ref[l],
                          preferred_element_type=f32)                       # (NH, S, H)
        attn = jnp.sum(attn, axis=0) + bo_ref[l]                            # (S, H)
        h = _layernorm(attn + h, ln1g_ref[l], ln1b_ref[l])

        # ---------- feed-forward ----------
        inter = _gelu(jnp.dot(h.astype(bf16), w1_ref[l],
                              preferred_element_type=f32) + b1_ref[l])      # (S, I)
        proj = jnp.dot(inter.astype(bf16), w2_ref[l],
                       preferred_element_type=f32) + b2_ref[l]              # (S, H)
        h = _layernorm(proj + h, ln2g_ref[l], ln2b_ref[l])

    # ---- [CLS] pooler (tanh) + classifier; lane-dense padded logits ----
    cls = jnp.broadcast_to(h[0:1, :], (OUT_ROWS, H))                        # row 0 of this example
    pooled = jnp.tanh(jnp.dot(cls, poolw_ref[...],
                              preferred_element_type=f32) + poolb_ref[...])
    logits = (jnp.dot(pooled, densew_ref[...], preferred_element_type=f32)
              + denseb_ref[...])                                            # (8, 128)
    logits_ref[0] = logits.astype(logits_ref.dtype)


# ---------------- full forward (BertModel + pooler + dense classifier) ----------------
@jax.jit
def bert_classification_forward(params, input_ids, token_type_ids, attention_mask):
    B, S = input_ids.shape
    H, I, L, NH, D = HIDDEN, INTERMEDIATE, NUM_LAYERS, NUM_HEADS, HEAD_DIM

    # embedding gathers are glue; sum on host into one (B*S, H) slab
    emb = (params["word_emb"][input_ids]
           + params["type_emb"][token_type_ids]
           + params["pos_emb"][None, :S, :]).reshape(B * S, H).astype(jnp.float32)

    # HF extended attention mask: (1 - mask) * -10000, broadcast over heads & query positions
    mask_add = (1.0 - attention_mask.astype(jnp.float32))[:, None, :] * -10000.0   # (B, 1, S)

    fixed = lambda shape: pl.BlockSpec(shape, lambda b: (0,) * len(shape))

    logits_pad = pl.pallas_call(
        fused_bert_kernel,
        out_shape=jax.ShapeDtypeStruct((B, OUT_ROWS, LANE), jnp.float32),
        grid=(B,),                                           # batch-parallel (2 TCs on v7x)
        in_specs=[
            pl.BlockSpec((S, H), lambda b: (b, 0)),          # summed embeddings, per example
            pl.BlockSpec((1, 1, S), lambda b: (b, 0, 0)),    # additive mask, per example
            fixed((1, H)),                                   # emb_ln_g
            fixed((1, H)),                                   # emb_ln_b
            fixed((L, NH, H, D)),                            # wq (head-major, scale folded, bf16)
            fixed((L, NH, H, D)),                            # wk (bf16)
            fixed((L, NH, H, D)),                            # wv (bf16)
            fixed((L, NH, 1, D)),                            # bq (scale folded)
            fixed((L, NH, 1, D)),                            # bk
            fixed((L, NH, 1, D)),                            # bv
            fixed((L, NH, D, H)),                            # wo (head-major, bf16)
            fixed((L, 1, H)),                                # bo
            fixed((L, 1, H)),                                # ln1_g
            fixed((L, 1, H)),                                # ln1_b
            fixed((L, H, I)),                                # w1 (bf16)
            fixed((L, 1, I)),                                # b1
            fixed((L, I, H)),                                # w2 (bf16)
            fixed((L, 1, H)),                                # b2
            fixed((L, 1, H)),                                # ln2_g
            fixed((L, 1, H)),                                # ln2_b
            fixed((H, H)),                                   # pooler_w
            fixed((1, H)),                                   # pooler_b
            fixed((H, LANE)),                                # dense_w (padded at init)
            fixed((1, LANE)),                                # dense_b (padded at init)
        ],
        out_specs=pl.BlockSpec((1, OUT_ROWS, LANE), lambda b: (b, 0, 0)),
        compiler_params=pltpu.CompilerParams(
            dimension_semantics=("parallel",),
            vmem_limit_bytes=32 * 1024 * 1024),
    )(emb, mask_add,
      params["emb_ln_g"], params["emb_ln_b"],
      params["wq"], params["wk"], params["wv"],
      params["bq"], params["bk"], params["bv"],
      params["wo"], params["bo"],
      params["ln1_g"], params["ln1_b"],
      params["w1"], params["b1"], params["w2"], params["b2"],
      params["ln2_g"], params["ln2_b"],
      params["pooler_w"], params["pooler_b"],
      params["dense_w_pad"], params["dense_b_pad"])

    return logits_pad[:, 0, :NUM_CLASSES]                    # (B, 2) logits


# ---------------- deterministic parameter init (kernel-ready layouts, built once) -----------
def init_params(key):
    def nrm(k, shape, scale=0.02):
        return (scale * jax.random.normal(k, shape)).astype(jnp.float32)

    L, H, I, NH, D = NUM_LAYERS, HIDDEN, INTERMEDIATE, NUM_HEADS, HEAD_DIM
    keys = iter(jax.random.split(key, 16))
    attn_scale = 1.0 / math.sqrt(D)   # folded into Q weights/bias so the kernel never multiplies

    return {
        "word_emb": nrm(next(keys), (VOCAB, H)),
        "pos_emb": nrm(next(keys), (MAX_POS, H)),
        "type_emb": nrm(next(keys), (TYPE_VOCAB, H)),
        "emb_ln_g": jnp.ones((1, H), jnp.float32),
        "emb_ln_b": jnp.zeros((1, H), jnp.float32),
        # attention weights stacked over layers, head-major; bf16 for MXU + half the DMA bytes
        "wq": (nrm(next(keys), (L, NH, H, D)) * attn_scale).astype(jnp.bfloat16),
        "wk": nrm(next(keys), (L, NH, H, D)).astype(jnp.bfloat16),
        "wv": nrm(next(keys), (L, NH, H, D)).astype(jnp.bfloat16),
        "bq": jnp.zeros((L, NH, 1, D), jnp.float32),   # (would be pre-scaled by attn_scale)
        "bk": jnp.zeros((L, NH, 1, D), jnp.float32),
        "bv": jnp.zeros((L, NH, 1, D), jnp.float32),
        "wo": nrm(next(keys), (L, NH, D, H)).astype(jnp.bfloat16),
        "bo": jnp.zeros((L, 1, H), jnp.float32),
        "ln1_g": jnp.ones((L, 1, H), jnp.float32),
        "ln1_b": jnp.zeros((L, 1, H), jnp.float32),
        "w1": nrm(next(keys), (L, H, I)).astype(jnp.bfloat16),
        "b1": jnp.zeros((L, 1, I), jnp.float32),
        "w2": nrm(next(keys), (L, I, H)).astype(jnp.bfloat16),
        "b2": jnp.zeros((L, 1, H), jnp.float32),
        "ln2_g": jnp.ones((L, 1, H), jnp.float32),
        "ln2_b": jnp.zeros((L, 1, H), jnp.float32),
        "pooler_w": nrm(next(keys), (H, H)),
        "pooler_b": jnp.zeros((1, H), jnp.float32),
        # nn.Linear(768, 2) analogue, zero-padded once to a full 128-lane tile
        "dense_w_pad": jnp.zeros((H, LANE), jnp.float32)
                          .at[:, :NUM_CLASSES].set(nrm(next(keys), (H, NUM_CLASSES))),
        "dense_b_pad": jnp.zeros((1, LANE), jnp.float32),
    }


if __name__ == "__main__":
    root = jax.random.PRNGKey(0)
    k_param, k_ids, k_types = jax.random.split(root, 3)

    params = init_params(k_param)

    input_ids = jax.random.randint(k_ids, (BATCH, SEQ), 0, VOCAB, dtype=jnp.int32)
    token_type_ids = jax.random.randint(k_types, (BATCH, SEQ), 0, TYPE_VOCAB, dtype=jnp.int32)
    # mask out the last two tokens of the second example
    attention_mask = jnp.where(
        (jnp.arange(SEQ)[None, :] < jnp.array([[SEQ], [SEQ - 2]])), 1, 0).astype(jnp.int32)

    logits = bert_classification_forward(params, input_ids, token_type_ids, attention_mask)
    logits = jax.block_until_ready(logits)
    assert logits.shape == (BATCH, NUM_CLASSES) and logits.dtype == jnp.float32
    print("KERNEL_OK")
</pallas_src>

<mosaic_0001>
module attributes {stable_mosaic.version = 11 : i64} {
  func.func @fused_bert_kernel(%arg0: i32, %arg1: memref<8x32xf32, #tpu.memory_space<vmem>>, %arg2: memref<1x1x8xf32, #tpu.memory_space<vmem>>, %arg3: memref<1x32xf32, #tpu.memory_space<vmem>>, %arg4: memref<1x32xf32, #tpu.memory_space<vmem>>, %arg5: memref<2x4x32x8xbf16, #tpu.memory_space<vmem>>, %arg6: memref<2x4x32x8xbf16, #tpu.memory_space<vmem>>, %arg7: memref<2x4x32x8xbf16, #tpu.memory_space<vmem>>, %arg8: memref<2x4x1x8xf32, #tpu.memory_space<vmem>>, %arg9: memref<2x4x1x8xf32, #tpu.memory_space<vmem>>, %arg10: memref<2x4x1x8xf32, #tpu.memory_space<vmem>>, %arg11: memref<2x4x8x32xbf16, #tpu.memory_space<vmem>>, %arg12: memref<2x1x32xf32, #tpu.memory_space<vmem>>, %arg13: memref<2x1x32xf32, #tpu.memory_space<vmem>>, %arg14: memref<2x1x32xf32, #tpu.memory_space<vmem>>, %arg15: memref<2x32x64xbf16, #tpu.memory_space<vmem>>, %arg16: memref<2x1x64xf32, #tpu.memory_space<vmem>>, %arg17: memref<2x64x32xbf16, #tpu.memory_space<vmem>>, %arg18: memref<2x1x32xf32, #tpu.memory_space<vmem>>, %arg19: memref<2x1x32xf32, #tpu.memory_space<vmem>>, %arg20: memref<2x1x32xf32, #tpu.memory_space<vmem>>, %arg21: memref<32x32xf32, #tpu.memory_space<vmem>>, %arg22: memref<1x32xf32, #tpu.memory_space<vmem>>, %arg23: memref<32x128xf32, #tpu.memory_space<vmem>>, %arg24: memref<1x128xf32, #tpu.memory_space<vmem>>, %arg25: memref<1x8x128xf32, #tpu.memory_space<vmem>>) attributes {dimension_semantics = [#tpu.dimension_semantics<parallel>], iteration_bounds = array<i64: 2>, scalar_prefetch = 0 : i64, scratch_operands = 0 : i64, tpu.core_type = #tpu.core_type<tc>, window_params = [{transform_indices = @transform_0, window_bounds = array<i64: 8, 32>}, {transform_indices = @transform_1, window_bounds = array<i64: 1, 1, 8>}, {pipeline_mode = #tpu.pipeline_mode<synchronous>, transform_indices = @transform_2, window_bounds = array<i64: 1, 32>}, {pipeline_mode = #tpu.pipeline_mode<synchronous>, transform_indices = @transform_3, window_bounds = array<i64: 1, 32>}, {pipeline_mode = #tpu.pipeline_mode<synchronous>, transform_indices = @transform_4, window_bounds = array<i64: 2, 4, 32, 8>}, {pipeline_mode = #tpu.pipeline_mode<synchronous>, transform_indices = @transform_5, window_bounds = array<i64: 2, 4, 32, 8>}, {pipeline_mode = #tpu.pipeline_mode<synchronous>, transform_indices = @transform_6, window_bounds = array<i64: 2, 4, 32, 8>}, {pipeline_mode = #tpu.pipeline_mode<synchronous>, transform_indices = @transform_7, window_bounds = array<i64: 2, 4, 1, 8>}, {pipeline_mode = #tpu.pipeline_mode<synchronous>, transform_indices = @transform_8, window_bounds = array<i64: 2, 4, 1, 8>}, {pipeline_mode = #tpu.pipeline_mode<synchronous>, transform_indices = @transform_9, window_bounds = array<i64: 2, 4, 1, 8>}, {pipeline_mode = #tpu.pipeline_mode<synchronous>, transform_indices = @transform_10, window_bounds = array<i64: 2, 4, 8, 32>}, {pipeline_mode = #tpu.pipeline_mode<synchronous>, transform_indices = @transform_11, window_bounds = array<i64: 2, 1, 32>}, {pipeline_mode = #tpu.pipeline_mode<synchronous>, transform_indices = @transform_12, window_bounds = array<i64: 2, 1, 32>}, {pipeline_mode = #tpu.pipeline_mode<synchronous>, transform_indices = @transform_13, window_bounds = array<i64: 2, 1, 32>}, {pipeline_mode = #tpu.pipeline_mode<synchronous>, transform_indices = @transform_14, window_bounds = array<i64: 2, 32, 64>}, {pipeline_mode = #tpu.pipeline_mode<synchronous>, transform_indices = @transform_15, window_bounds = array<i64: 2, 1, 64>}, {pipeline_mode = #tpu.pipeline_mode<synchronous>, transform_indices = @transform_16, window_bounds = array<i64: 2, 64, 32>}, {pipeline_mode = #tpu.pipeline_mode<synchronous>, transform_indices = @transform_17, window_bounds = array<i64: 2, 1, 32>}, {pipeline_mode = #tpu.pipeline_mode<synchronous>, transform_indices = @transform_18, window_bounds = array<i64: 2, 1, 32>}, {pipeline_mode = #tpu.pipeline_mode<synchronous>, transform_indices = @transform_19, window_bounds = array<i64: 2, 1, 32>}, {pipeline_mode = #tpu.pipeline_mode<synchronous>, transform_indices = @transform_20, window_bounds = array<i64: 32, 32>}, {pipeline_mode = #tpu.pipeline_mode<synchronous>, transform_indices = @transform_21, window_bounds = array<i64: 1, 32>}, {pipeline_mode = #tpu.pipeline_mode<synchronous>, transform_indices = @transform_22, window_bounds = array<i64: 32, 128>}, {pipeline_mode = #tpu.pipeline_mode<synchronous>, transform_indices = @transform_23, window_bounds = array<i64: 1, 128>}, {transform_indices = @transform_24, window_bounds = array<i64: 1, 8, 128>}]} {
    %c0 = arith.constant 0 : index
    %c0_0 = arith.constant 0 : index
    %0 = vector.load %arg1[%c0, %c0_0] : memref<8x32xf32, #tpu.memory_space<vmem>>, vector<8x32xf32>
    %c0_1 = arith.constant 0 : index
    %c0_2 = arith.constant 0 : index
    %1 = vector.load %arg3[%c0_1, %c0_2] : memref<1x32xf32, #tpu.memory_space<vmem>>, vector<1x32xf32>
    %c0_3 = arith.constant 0 : index
    %c0_4 = arith.constant 0 : index
    %2 = vector.load %arg4[%c0_3, %c0_4] : memref<1x32xf32, #tpu.memory_space<vmem>>, vector<1x32xf32>
    %cst = arith.constant dense<0.000000e+00> : vector<8xf32>
    %3 = vector.multi_reduction <add>, %0, %cst [1] : vector<8x32xf32> to vector<8xf32>
    %4 = vector.shape_cast %3 : vector<8xf32> to vector<8x1xf32>
    %cst_5 = arith.constant 3.200000e+01 : f32
    %5 = vector.broadcast %cst_5 : f32 to vector<8x1xf32>
    %6 = arith.divf %4, %5 : vector<8x1xf32>
    %7 = vector.broadcast %6 : vector<8x1xf32> to vector<8x32xf32>
    %8 = arith.subf %0, %7 : vector<8x32xf32>
    %9 = arith.mulf %8, %8 : vector<8x32xf32>
    %cst_6 = arith.constant dense<0.000000e+00> : vector<8xf32>
    %10 = vector.multi_reduction <add>, %9, %cst_6 [1] : vector<8x32xf32> to vector<8xf32>
    %11 = vector.shape_cast %10 : vector<8xf32> to vector<8x1xf32>
    %cst_7 = arith.constant 3.200000e+01 : f32
    %12 = vector.broadcast %cst_7 : f32 to vector<8x1xf32>
    %13 = arith.divf %11, %12 : vector<8x1xf32>
    %14 = vector.broadcast %6 : vector<8x1xf32> to vector<8x32xf32>
    %15 = arith.subf %0, %14 : vector<8x32xf32>
    %cst_8 = arith.constant 9.99999996E-13 : f32
    %16 = vector.broadcast %cst_8 : f32 to vector<8x1xf32>
    %17 = arith.addf %13, %16 : vector<8x1xf32>
    %18 = math.rsqrt %17 : vector<8x1xf32>
    %19 = vector.broadcast %18 : vector<8x1xf32> to vector<8x32xf32>
    %20 = arith.mulf %15, %19 : vector<8x32xf32>
    %21 = vector.broadcast %1 : vector<1x32xf32> to vector<8x32xf32>
    %22 = arith.mulf %20, %21 : vector<8x32xf32>
    %23 = vector.broadcast %2 : vector<1x32xf32> to vector<8x32xf32>
    %24 = arith.addf %22, %23 : vector<8x32xf32>
    %c0_9 = arith.constant 0 : index
    %c0_10 = arith.constant 0 : index
    %c0_11 = arith.constant 0 : index
    %25 = vector.load %arg2[%c0_9, %c0_10, %c0_11] : memref<1x1x8xf32, #tpu.memory_space<vmem>>, vector<1x1x8xf32>
    %26 = vector.shape_cast %25 : vector<1x1x8xf32> to vector<1x1x8xf32>
    %27 = vector.broadcast %26 : vector<1x1x8xf32> to vector<4x8x8xf32>
    %28 = vector.shape_cast %24 : vector<8x32xf32> to vector<1x8x32xf32>
    %29 = vector.broadcast %28 : vector<1x8x32xf32> to vector<4x8x32xf32>
    %30 = arith.truncf %29 : vector<4x8x32xf32> to vector<4x8x32xbf16>
    %c0_12 = arith.constant 0 : index
    %c0_13 = arith.constant 0 : index
    %c0_14 = arith.constant 0 : index
    %c0_15 = arith.constant 0 : index
    %31 = vector.load %arg5[%c0_12, %c0_13, %c0_14, %c0_15] : memref<2x4x32x8xbf16, #tpu.memory_space<vmem>>, vector<1x4x32x8xbf16>
    %32 = vector.shape_cast %31 : vector<1x4x32x8xbf16> to vector<4x32x8xbf16>
    "tpu.trace_start"() <{level = 10 : i32, message = "hsk,hkd->hsd"}> : () -> ()
    %cst_16 = arith.constant dense<0.000000e+00> : vector<4x8x8xf32>
    %33 = tpu.matmul %30, %32, %cst_16 {dimension_numbers = #tpu.dot_dimension_numbers<[2], [1], [1], [2], [0, 0, 0, 1, 1, 2], [0], [0]>} : vector<4x8x32xbf16>, vector<4x32x8xbf16>, vector<4x8x8xf32> -> vector<4x8x8xf32>
    "tpu.trace_stop"() : () -> ()
    %c0_17 = arith.constant 0 : index
    %c0_18 = arith.constant 0 : index
    %c0_19 = arith.constant 0 : index
    %c0_20 = arith.constant 0 : index
    %34 = vector.load %arg8[%c0_17, %c0_18, %c0_19, %c0_20] : memref<2x4x1x8xf32, #tpu.memory_space<vmem>>, vector<1x4x1x8xf32>
    %35 = vector.shape_cast %34 : vector<1x4x1x8xf32> to vector<4x1x8xf32>
    %36 = vector.broadcast %35 : vector<4x1x8xf32> to vector<4x8x8xf32>
    %37 = arith.addf %33, %36 : vector<4x8x8xf32>
    %c0_21 = arith.constant 0 : index
    %c0_22 = arith.constant 0 : index
    %c0_23 = arith.constant 0 : index
    %c0_24 = arith.constant 0 : index
    %38 = vector.load %arg6[%c0_21, %c0_22, %c0_23, %c0_24] : memref<2x4x32x8xbf16, #tpu.memory_space<vmem>>, vector<1x4x32x8xbf16>
    %39 = vector.shape_cast %38 : vector<1x4x32x8xbf16> to vector<4x32x8xbf16>
    "tpu.trace_start"() <{level = 10 : i32, message = "hsk,hkd->hsd"}> : () -> ()
    %cst_25 = arith.constant dense<0.000000e+00> : vector<4x8x8xf32>
    %40 = tpu.matmul %30, %39, %cst_25 {dimension_numbers = #tpu.dot_dimension_numbers<[2], [1], [1], [2], [0, 0, 0, 1, 1, 2], [0], [0]>} : vector<4x8x32xbf16>, vector<4x32x8xbf16>, vector<4x8x8xf32> -> vector<4x8x8xf32>
    "tpu.trace_stop"() : () -> ()
    %c0_26 = arith.constant 0 : index
    %c0_27 = arith.constant 0 : index
    %c0_28 = arith.constant 0 : index
    %c0_29 = arith.constant 0 : index
    %41 = vector.load %arg9[%c0_26, %c0_27, %c0_28, %c0_29] : memref<2x4x1x8xf32, #tpu.memory_space<vmem>>, vector<1x4x1x8xf32>
    %42 = vector.shape_cast %41 : vector<1x4x1x8xf32> to vector<4x1x8xf32>
    %43 = vector.broadcast %42 : vector<4x1x8xf32> to vector<4x8x8xf32>
    %44 = arith.addf %40, %43 : vector<4x8x8xf32>
    %c0_30 = arith.constant 0 : index
    %c0_31 = arith.constant 0 : index
    %c0_32 = arith.constant 0 : index
    %c0_33 = arith.constant 0 : index
    %45 = vector.load %arg7[%c0_30, %c0_31, %c0_32, %c0_33] : memref<2x4x32x8xbf16, #tpu.memory_space<vmem>>, vector<1x4x32x8xbf16>
    %46 = vector.shape_cast %45 : vector<1x4x32x8xbf16> to vector<4x32x8xbf16>
    "tpu.trace_start"() <{level = 10 : i32, message = "hsk,hkd->hsd"}> : () -> ()
    %cst_34 = arith.constant dense<0.000000e+00> : vector<4x8x8xf32>
    %47 = tpu.matmul %30, %46, %cst_34 {dimension_numbers = #tpu.dot_dimension_numbers<[2], [1], [1], [2], [0, 0, 0, 1, 1, 2], [0], [0]>} : vector<4x8x32xbf16>, vector<4x32x8xbf16>, vector<4x8x8xf32> -> vector<4x8x8xf32>
    "tpu.trace_stop"() : () -> ()
    %c0_35 = arith.constant 0 : index
    %c0_36 = arith.constant 0 : index
    %c0_37 = arith.constant 0 : index
    %c0_38 = arith.constant 0 : index
    %48 = vector.load %arg10[%c0_35, %c0_36, %c0_37, %c0_38] : memref<2x4x1x8xf32, #tpu.memory_space<vmem>>, vector<1x4x1x8xf32>
    %49 = vector.shape_cast %48 : vector<1x4x1x8xf32> to vector<4x1x8xf32>
    %50 = vector.broadcast %49 : vector<4x1x8xf32> to vector<4x8x8xf32>
    %51 = arith.addf %47, %50 : vector<4x8x8xf32>
    %52 = arith.truncf %37 : vector<4x8x8xf32> to vector<4x8x8xbf16>
    %53 = arith.truncf %44 : vector<4x8x8xf32> to vector<4x8x8xbf16>
    "tpu.trace_start"() <{level = 10 : i32, message = "hqd,hkd->hqk"}> : () -> ()
    %cst_39 = arith.constant dense<0.000000e+00> : vector<4x8x8xf32>
    %54 = tpu.matmul %52, %53, %cst_39 {dimension_numbers = #tpu.dot_dimension_numbers<[2], [2], [1], [1], [0, 0, 0, 1, 1, 1], [0], [0]>} : vector<4x8x8xbf16>, vector<4x8x8xbf16>, vector<4x8x8xf32> -> vector<4x8x8xf32>
    "tpu.trace_stop"() : () -> ()
    %55 = arith.addf %54, %27 : vector<4x8x8xf32>
    %cst_40 = arith.constant dense<0xFF800000> : vector<4x8xf32>
    %56 = vector.multi_reduction <maximumf>, %55, %cst_40 [2] : vector<4x8x8xf32> to vector<4x8xf32>
    %57 = vector.shape_cast %56 : vector<4x8xf32> to vector<4x8x1xf32>
    %58 = vector.broadcast %57 : vector<4x8x1xf32> to vector<4x8x8xf32>
    %59 = arith.subf %55, %58 : vector<4x8x8xf32>
    %60 = math.exp %59 : vector<4x8x8xf32>
    %cst_41 = arith.constant dense<0.000000e+00> : vector<4x8xf32>
    %61 = vector.multi_reduction <add>, %60, %cst_41 [2] : vector<4x8x8xf32> to vector<4x8xf32>
    %62 = vector.shape_cast %61 : vector<4x8xf32> to vector<4x8x1xf32>
    %63 = tpu.reciprocal %62 {approx = true} : vector<4x8x1xf32> -> vector<4x8x1xf32>
    %64 = vector.broadcast %63 : vector<4x8x1xf32> to vector<4x8x8xf32>
    %65 = arith.mulf %60, %64 : vector<4x8x8xf32>
    %66 = arith.truncf %65 : vector<4x8x8xf32> to vector<4x8x8xbf16>
    %67 = arith.truncf %51 : vector<4x8x8xf32> to vector<4x8x8xbf16>
    "tpu.trace_start"() <{level = 10 : i32, message = "hqk,hkd->hqd"}> : () -> ()
    %cst_42 = arith.constant dense<0.000000e+00> : vector<4x8x8xf32>
    %68 = tpu.matmul %66, %67, %cst_42 {dimension_numbers = #tpu.dot_dimension_numbers<[2], [1], [1], [2], [0, 0, 0, 1, 1, 2], [0], [0]>} : vector<4x8x8xbf16>, vector<4x8x8xbf16>, vector<4x8x8xf32> -> vector<4x8x8xf32>
    "tpu.trace_stop"() : () -> ()
    %69 = arith.truncf %68 : vector<4x8x8xf32> to vector<4x8x8xbf16>
    %c0_43 = arith.constant 0 : index
    %c0_44 = arith.constant 0 : index
    %c0_45 = arith.constant 0 : index
    %c0_46 = arith.constant 0 : index
    %70 = vector.load %arg11[%c0_43, %c0_44, %c0_45, %c0_46] : memref<2x4x8x32xbf16, #tpu.memory_space<vmem>>, vector<1x4x8x32xbf16>
    %71 = vector.shape_cast %70 : vector<1x4x8x32xbf16> to vector<4x8x32xbf16>
    "tpu.trace_start"() <{level = 10 : i32, message = "hsd,hde->hse"}> : () -> ()
    %cst_47 = arith.constant dense<0.000000e+00> : vector<4x8x32xf32>
    %72 = tpu.matmul %69, %71, %cst_47 {dimension_numbers = #tpu.dot_dimension_numbers<[2], [1], [1], [2], [0, 0, 0, 1, 1, 2], [0], [0]>} : vector<4x8x8xbf16>, vector<4x8x32xbf16>, vector<4x8x32xf32> -> vector<4x8x32xf32>
    "tpu.trace_stop"() : () -> ()
    %cst_48 = arith.constant dense<0.000000e+00> : vector<8x32xf32>
    %73 = vector.multi_reduction <add>, %72, %cst_48 [0] : vector<4x8x32xf32> to vector<8x32xf32>
    %c0_49 = arith.constant 0 : index
    %c0_50 = arith.constant 0 : index
    %c0_51 = arith.constant 0 : index
    %74 = vector.load %arg12[%c0_49, %c0_50, %c0_51] : memref<2x1x32xf32, #tpu.memory_space<vmem>>, vector<1x1x32xf32>
    %75 = vector.shape_cast %74 : vector<1x1x32xf32> to vector<1x32xf32>
    %76 = vector.broadcast %75 : vector<1x32xf32> to vector<8x32xf32>
    %77 = arith.addf %73, %76 : vector<8x32xf32>
    %78 = arith.addf %77, %24 : vector<8x32xf32>
    %c0_52 = arith.constant 0 : index
    %c0_53 = arith.constant 0 : index
    %c0_54 = arith.constant 0 : index
    %79 = vector.load %arg13[%c0_52, %c0_53, %c0_54] : memref<2x1x32xf32, #tpu.memory_space<vmem>>, vector<1x1x32xf32>
    %80 = vector.shape_cast %79 : vector<1x1x32xf32> to vector<1x32xf32>
    %c0_55 = arith.constant 0 : index
    %c0_56 = arith.constant 0 : index
    %c0_57 = arith.constant 0 : index
    %81 = vector.load %arg14[%c0_55, %c0_56, %c0_57] : memref<2x1x32xf32, #tpu.memory_space<vmem>>, vector<1x1x32xf32>
    %82 = vector.shape_cast %81 : vector<1x1x32xf32> to vector<1x32xf32>
    %cst_58 = arith.constant dense<0.000000e+00> : vector<8xf32>
    %83 = vector.multi_reduction <add>, %78, %cst_58 [1] : vector<8x32xf32> to vector<8xf32>
    %84 = vector.shape_cast %83 : vector<8xf32> to vector<8x1xf32>
    %cst_59 = arith.constant 3.200000e+01 : f32
    %85 = vector.broadcast %cst_59 : f32 to vector<8x1xf32>
    %86 = arith.divf %84, %85 : vector<8x1xf32>
    %87 = vector.broadcast %86 : vector<8x1xf32> to vector<8x32xf32>
    %88 = arith.subf %78, %87 : vector<8x32xf32>
    %89 = arith.mulf %88, %88 : vector<8x32xf32>
    %cst_60 = arith.constant dense<0.000000e+00> : vector<8xf32>
    %90 = vector.multi_reduction <add>, %89, %cst_60 [1] : vector<8x32xf32> to vector<8xf32>
    %91 = vector.shape_cast %90 : vector<8xf32> to vector<8x1xf32>
    %cst_61 = arith.constant 3.200000e+01 : f32
    %92 = vector.broadcast %cst_61 : f32 to vector<8x1xf32>
    %93 = arith.divf %91, %92 : vector<8x1xf32>
    %94 = vector.broadcast %86 : vector<8x1xf32> to vector<8x32xf32>
    %95 = arith.subf %78, %94 : vector<8x32xf32>
    %cst_62 = arith.constant 9.99999996E-13 : f32
    %96 = vector.broadcast %cst_62 : f32 to vector<8x1xf32>
    %97 = arith.addf %93, %96 : vector<8x1xf32>
    %98 = math.rsqrt %97 : vector<8x1xf32>
    %99 = vector.broadcast %98 : vector<8x1xf32> to vector<8x32xf32>
    %100 = arith.mulf %95, %99 : vector<8x32xf32>
    %101 = vector.broadcast %80 : vector<1x32xf32> to vector<8x32xf32>
    %102 = arith.mulf %100, %101 : vector<8x32xf32>
    %103 = vector.broadcast %82 : vector<1x32xf32> to vector<8x32xf32>
    %104 = arith.addf %102, %103 : vector<8x32xf32>
    %105 = arith.truncf %104 : vector<8x32xf32> to vector<8x32xbf16>
    %c0_63 = arith.constant 0 : index
    %c0_64 = arith.constant 0 : index
    %c0_65 = arith.constant 0 : index
    %106 = vector.load %arg15[%c0_63, %c0_64, %c0_65] : memref<2x32x64xbf16, #tpu.memory_space<vmem>>, vector<1x32x64xbf16>
    %107 = vector.shape_cast %106 : vector<1x32x64xbf16> to vector<32x64xbf16>
    %cst_66 = arith.constant dense<0.000000e+00> : vector<8x64xf32>
    %108 = tpu.matmul %105, %107, %cst_66 {dimension_numbers = #tpu.dot_dimension_numbers<[1], [0], [0], [1], [0, 0, 1, 1], [], []>} : vector<8x32xbf16>, vector<32x64xbf16>, vector<8x64xf32> -> vector<8x64xf32>
    %c0_67 = arith.constant 0 : index
    %c0_68 = arith.constant 0 : index
    %c0_69 = arith.constant 0 : index
    %109 = vector.load %arg16[%c0_67, %c0_68, %c0_69] : memref<2x1x64xf32, #tpu.memory_space<vmem>>, vector<1x1x64xf32>
    %110 = vector.shape_cast %109 : vector<1x1x64xf32> to vector<1x64xf32>
    %111 = vector.broadcast %110 : vector<1x64xf32> to vector<8x64xf32>
    %112 = arith.addf %108, %111 : vector<8x64xf32>
    %cst_70 = arith.constant 5.000000e-01 : f32
    %113 = vector.broadcast %cst_70 : f32 to vector<8x64xf32>
    %114 = arith.mulf %113, %112 : vector<8x64xf32>
    %cst_71 = arith.constant 0.707106769 : f32
    %115 = vector.broadcast %cst_71 : f32 to vector<8x64xf32>
    %116 = arith.mulf %112, %115 : vector<8x64xf32>
    %117 = math.erf %116 : vector<8x64xf32>
    %cst_72 = arith.constant 1.000000e+00 : f32
    %118 = vector.broadcast %cst_72 : f32 to vector<8x64xf32>
    %119 = arith.addf %118, %117 : vector<8x64xf32>
    %120 = arith.mulf %114, %119 : vector<8x64xf32>
    %121 = arith.truncf %120 : vector<8x64xf32> to vector<8x64xbf16>
    %c0_73 = arith.constant 0 : index
    %c0_74 = arith.constant 0 : index
    %c0_75 = arith.constant 0 : index
    %122 = vector.load %arg17[%c0_73, %c0_74, %c0_75] : memref<2x64x32xbf16, #tpu.memory_space<vmem>>, vector<1x64x32xbf16>
    %123 = vector.shape_cast %122 : vector<1x64x32xbf16> to vector<64x32xbf16>
    %cst_76 = arith.constant dense<0.000000e+00> : vector<8x32xf32>
    %124 = tpu.matmul %121, %123, %cst_76 {dimension_numbers = #tpu.dot_dimension_numbers<[1], [0], [0], [1], [0, 0, 1, 1], [], []>} : vector<8x64xbf16>, vector<64x32xbf16>, vector<8x32xf32> -> vector<8x32xf32>
    %c0_77 = arith.constant 0 : index
    %c0_78 = arith.constant 0 : index
    %c0_79 = arith.constant 0 : index
    %125 = vector.load %arg18[%c0_77, %c0_78, %c0_79] : memref<2x1x32xf32, #tpu.memory_space<vmem>>, vector<1x1x32xf32>
    %126 = vector.shape_cast %125 : vector<1x1x32xf32> to vector<1x32xf32>
    %127 = vector.broadcast %126 : vector<1x32xf32> to vector<8x32xf32>
    %128 = arith.addf %124, %127 : vector<8x32xf32>
    %129 = arith.addf %128, %104 : vector<8x32xf32>
    %c0_80 = arith.constant 0 : index
    %c0_81 = arith.constant 0 : index
    %c0_82 = arith.constant 0 : index
    %130 = vector.load %arg19[%c0_80, %c0_81, %c0_82] : memref<2x1x32xf32, #tpu.memory_space<vmem>>, vector<1x1x32xf32>
    %131 = vector.shape_cast %130 : vector<1x1x32xf32> to vector<1x32xf32>
    %c0_83 = arith.constant 0 : index
    %c0_84 = arith.constant 0 : index
    %c0_85 = arith.constant 0 : index
    %132 = vector.load %arg20[%c0_83, %c0_84, %c0_85] : memref<2x1x32xf32, #tpu.memory_space<vmem>>, vector<1x1x32xf32>
    %133 = vector.shape_cast %132 : vector<1x1x32xf32> to vector<1x32xf32>
    %cst_86 = arith.constant dense<0.000000e+00> : vector<8xf32>
    %134 = vector.multi_reduction <add>, %129, %cst_86 [1] : vector<8x32xf32> to vector<8xf32>
    %135 = vector.shape_cast %134 : vector<8xf32> to vector<8x1xf32>
    %cst_87 = arith.constant 3.200000e+01 : f32
    %136 = vector.broadcast %cst_87 : f32 to vector<8x1xf32>
    %137 = arith.divf %135, %136 : vector<8x1xf32>
    %138 = vector.broadcast %137 : vector<8x1xf32> to vector<8x32xf32>
    %139 = arith.subf %129, %138 : vector<8x32xf32>
    %140 = arith.mulf %139, %139 : vector<8x32xf32>
    %cst_88 = arith.constant dense<0.000000e+00> : vector<8xf32>
    %141 = vector.multi_reduction <add>, %140, %cst_88 [1] : vector<8x32xf32> to vector<8xf32>
    %142 = vector.shape_cast %141 : vector<8xf32> to vector<8x1xf32>
    %cst_89 = arith.constant 3.200000e+01 : f32
    %143 = vector.broadcast %cst_89 : f32 to vector<8x1xf32>
    %144 = arith.divf %142, %143 : vector<8x1xf32>
    %145 = vector.broadcast %137 : vector<8x1xf32> to vector<8x32xf32>
    %146 = arith.subf %129, %145 : vector<8x32xf32>
    %cst_90 = arith.constant 9.99999996E-13 : f32
    %147 = vector.broadcast %cst_90 : f32 to vector<8x1xf32>
    %148 = arith.addf %144, %147 : vector<8x1xf32>
    %149 = math.rsqrt %148 : vector<8x1xf32>
    %150 = vector.broadcast %149 : vector<8x1xf32> to vector<8x32xf32>
    %151 = arith.mulf %146, %150 : vector<8x32xf32>
    %152 = vector.broadcast %131 : vector<1x32xf32> to vector<8x32xf32>
    %153 = arith.mulf %151, %152 : vector<8x32xf32>
    %154 = vector.broadcast %133 : vector<1x32xf32> to vector<8x32xf32>
    %155 = arith.addf %153, %154 : vector<8x32xf32>
    %156 = vector.shape_cast %155 : vector<8x32xf32> to vector<1x8x32xf32>
    %157 = vector.broadcast %156 : vector<1x8x32xf32> to vector<4x8x32xf32>
    %158 = arith.truncf %157 : vector<4x8x32xf32> to vector<4x8x32xbf16>
    %c1 = arith.constant 1 : index
    %c0_91 = arith.constant 0 : index
    %c0_92 = arith.constant 0 : index
    %c0_93 = arith.constant 0 : index
    %159 = vector.load %arg5[%c1, %c0_91, %c0_92, %c0_93] : memref<2x4x32x8xbf16, #tpu.memory_space<vmem>>, vector<1x4x32x8xbf16>
    %160 = vector.shape_cast %159 : vector<1x4x32x8xbf16> to vector<4x32x8xbf16>
    "tpu.trace_start"() <{level = 10 : i32, message = "hsk,hkd->hsd"}> : () -> ()
    %cst_94 = arith.constant dense<0.000000e+00> : vector<4x8x8xf32>
    %161 = tpu.matmul %158, %160, %cst_94 {dimension_numbers = #tpu.dot_dimension_numbers<[2], [1], [1], [2], [0, 0, 0, 1, 1, 2], [0], [0]>} : vector<4x8x32xbf16>, vector<4x32x8xbf16>, vector<4x8x8xf32> -> vector<4x8x8xf32>
    "tpu.trace_stop"() : () -> ()
    %c1_95 = arith.constant 1 : index
    %c0_96 = arith.constant 0 : index
    %c0_97 = arith.constant 0 : index
    %c0_98 = arith.constant 0 : index
    %162 = vector.load %arg8[%c1_95, %c0_96, %c0_97, %c0_98] : memref<2x4x1x8xf32, #tpu.memory_space<vmem>>, vector<1x4x1x8xf32>
    %163 = vector.shape_cast %162 : vector<1x4x1x8xf32> to vector<4x1x8xf32>
    %164 = vector.broadcast %163 : vector<4x1x8xf32> to vector<4x8x8xf32>
    %165 = arith.addf %161, %164 : vector<4x8x8xf32>
    %c1_99 = arith.constant 1 : index
    %c0_100 = arith.constant 0 : index
    %c0_101 = arith.constant 0 : index
    %c0_102 = arith.constant 0 : index
    %166 = vector.load %arg6[%c1_99, %c0_100, %c0_101, %c0_102] : memref<2x4x32x8xbf16, #tpu.memory_space<vmem>>, vector<1x4x32x8xbf16>
    %167 = vector.shape_cast %166 : vector<1x4x32x8xbf16> to vector<4x32x8xbf16>
    "tpu.trace_start"() <{level = 10 : i32, message = "hsk,hkd->hsd"}> : () -> ()
    %cst_103 = arith.constant dense<0.000000e+00> : vector<4x8x8xf32>
    %168 = tpu.matmul %158, %167, %cst_103 {dimension_numbers = #tpu.dot_dimension_numbers<[2], [1], [1], [2], [0, 0, 0, 1, 1, 2], [0], [0]>} : vector<4x8x32xbf16>, vector<4x32x8xbf16>, vector<4x8x8xf32> -> vector<4x8x8xf32>
    "tpu.trace_stop"() : () -> ()
    %c1_104 = arith.constant 1 : index
    %c0_105 = arith.constant 0 : index
    %c0_106 = arith.constant 0 : index
    %c0_107 = arith.constant 0 : index
    %169 = vector.load %arg9[%c1_104, %c0_105, %c0_106, %c0_107] : memref<2x4x1x8xf32, #tpu.memory_space<vmem>>, vector<1x4x1x8xf32>
    %170 = vector.shape_cast %169 : vector<1x4x1x8xf32> to vector<4x1x8xf32>
    %171 = vector.broadcast %170 : vector<4x1x8xf32> to vector<4x8x8xf32>
    %172 = arith.addf %168, %171 : vector<4x8x8xf32>
    %c1_108 = arith.constant 1 : index
    %c0_109 = arith.constant 0 : index
    %c0_110 = arith.constant 0 : index
    %c0_111 = arith.constant 0 : index
    %173 = vector.load %arg7[%c1_108, %c0_109, %c0_110, %c0_111] : memref<2x4x32x8xbf16, #tpu.memory_space<vmem>>, vector<1x4x32x8xbf16>
    %174 = vector.shape_cast %173 : vector<1x4x32x8xbf16> to vector<4x32x8xbf16>
    "tpu.trace_start"() <{level = 10 : i32, message = "hsk,hkd->hsd"}> : () -> ()
    %cst_112 = arith.constant dense<0.000000e+00> : vector<4x8x8xf32>
    %175 = tpu.matmul %158, %174, %cst_112 {dimension_numbers = #tpu.dot_dimension_numbers<[2], [1], [1], [2], [0, 0, 0, 1, 1, 2], [0], [0]>} : vector<4x8x32xbf16>, vector<4x32x8xbf16>, vector<4x8x8xf32> -> vector<4x8x8xf32>
    "tpu.trace_stop"() : () -> ()
    %c1_113 = arith.constant 1 : index
    %c0_114 = arith.constant 0 : index
    %c0_115 = arith.constant 0 : index
    %c0_116 = arith.constant 0 : index
    %176 = vector.load %arg10[%c1_113, %c0_114, %c0_115, %c0_116] : memref<2x4x1x8xf32, #tpu.memory_space<vmem>>, vector<1x4x1x8xf32>
    %177 = vector.shape_cast %176 : vector<1x4x1x8xf32> to vector<4x1x8xf32>
    %178 = vector.broadcast %177 : vector<4x1x8xf32> to vector<4x8x8xf32>
    %179 = arith.addf %175, %178 : vector<4x8x8xf32>
    %180 = arith.truncf %165 : vector<4x8x8xf32> to vector<4x8x8xbf16>
    %181 = arith.truncf %172 : vector<4x8x8xf32> to vector<4x8x8xbf16>
    "tpu.trace_start"() <{level = 10 : i32, message = "hqd,hkd->hqk"}> : () -> ()
    %cst_117 = arith.constant dense<0.000000e+00> : vector<4x8x8xf32>
    %182 = tpu.matmul %180, %181, %cst_117 {dimension_numbers = #tpu.dot_dimension_numbers<[2], [2], [1], [1], [0, 0, 0, 1, 1, 1], [0], [0]>} : vector<4x8x8xbf16>, vector<4x8x8xbf16>, vector<4x8x8xf32> -> vector<4x8x8xf32>
    "tpu.trace_stop"() : () -> ()
    %183 = arith.addf %182, %27 : vector<4x8x8xf32>
    %cst_118 = arith.constant dense<0xFF800000> : vector<4x8xf32>
    %184 = vector.multi_reduction <maximumf>, %183, %cst_118 [2] : vector<4x8x8xf32> to vector<4x8xf32>
    %185 = vector.shape_cast %184 : vector<4x8xf32> to vector<4x8x1xf32>
    %186 = vector.broadcast %185 : vector<4x8x1xf32> to vector<4x8x8xf32>
    %187 = arith.subf %183, %186 : vector<4x8x8xf32>
    %188 = math.exp %187 : vector<4x8x8xf32>
    %cst_119 = arith.constant dense<0.000000e+00> : vector<4x8xf32>
    %189 = vector.multi_reduction <add>, %188, %cst_119 [2] : vector<4x8x8xf32> to vector<4x8xf32>
    %190 = vector.shape_cast %189 : vector<4x8xf32> to vector<4x8x1xf32>
    %191 = tpu.reciprocal %190 {approx = true} : vector<4x8x1xf32> -> vector<4x8x1xf32>
    %192 = vector.broadcast %191 : vector<4x8x1xf32> to vector<4x8x8xf32>
    %193 = arith.mulf %188, %192 : vector<4x8x8xf32>
    %194 = arith.truncf %193 : vector<4x8x8xf32> to vector<4x8x8xbf16>
    %195 = arith.truncf %179 : vector<4x8x8xf32> to vector<4x8x8xbf16>
    "tpu.trace_start"() <{level = 10 : i32, message = "hqk,hkd->hqd"}> : () -> ()
    %cst_120 = arith.constant dense<0.000000e+00> : vector<4x8x8xf32>
    %196 = tpu.matmul %194, %195, %cst_120 {dimension_numbers = #tpu.dot_dimension_numbers<[2], [1], [1], [2], [0, 0, 0, 1, 1, 2], [0], [0]>} : vector<4x8x8xbf16>, vector<4x8x8xbf16>, vector<4x8x8xf32> -> vector<4x8x8xf32>
    "tpu.trace_stop"() : () -> ()
    %197 = arith.truncf %196 : vector<4x8x8xf32> to vector<4x8x8xbf16>
    %c1_121 = arith.constant 1 : index
    %c0_122 = arith.constant 0 : index
    %c0_123 = arith.constant 0 : index
    %c0_124 = arith.constant 0 : index
    %198 = vector.load %arg11[%c1_121, %c0_122, %c0_123, %c0_124] : memref<2x4x8x32xbf16, #tpu.memory_space<vmem>>, vector<1x4x8x32xbf16>
    %199 = vector.shape_cast %198 : vector<1x4x8x32xbf16> to vector<4x8x32xbf16>
    "tpu.trace_start"() <{level = 10 : i32, message = "hsd,hde->hse"}> : () -> ()
    %cst_125 = arith.constant dense<0.000000e+00> : vector<4x8x32xf32>
    %200 = tpu.matmul %197, %199, %cst_125 {dimension_numbers = #tpu.dot_dimension_numbers<[2], [1], [1], [2], [0, 0, 0, 1, 1, 2], [0], [0]>} : vector<4x8x8xbf16>, vector<4x8x32xbf16>, vector<4x8x32xf32> -> vector<4x8x32xf32>
    "tpu.trace_stop"() : () -> ()
    %cst_126 = arith.constant dense<0.000000e+00> : vector<8x32xf32>
    %201 = vector.multi_reduction <add>, %200, %cst_126 [0] : vector<4x8x32xf32> to vector<8x32xf32>
    %c1_127 = arith.constant 1 : index
    %c0_128 = arith.constant 0 : index
    %c0_129 = arith.constant 0 : index
    %202 = vector.load %arg12[%c1_127, %c0_128, %c0_129] : memref<2x1x32xf32, #tpu.memory_space<vmem>>, vector<1x1x32xf32>
    %203 = vector.shape_cast %202 : vector<1x1x32xf32> to vector<1x32xf32>
    %204 = vector.broadcast %203 : vector<1x32xf32> to vector<8x32xf32>
    %205 = arith.addf %201, %204 : vector<8x32xf32>
    %206 = arith.addf %205, %155 : vector<8x32xf32>
    %c1_130 = arith.constant 1 : index
    %c0_131 = arith.constant 0 : index
    %c0_132 = arith.constant 0 : index
    %207 = vector.load %arg13[%c1_130, %c0_131, %c0_132] : memref<2x1x32xf32, #tpu.memory_space<vmem>>, vector<1x1x32xf32>
    %208 = vector.shape_cast %207 : vector<1x1x32xf32> to vector<1x32xf32>
    %c1_133 = arith.constant 1 : index
    %c0_134 = arith.constant 0 : index
    %c0_135 = arith.constant 0 : index
    %209 = vector.load %arg14[%c1_133, %c0_134, %c0_135] : memref<2x1x32xf32, #tpu.memory_space<vmem>>, vector<1x1x32xf32>
    %210 = vector.shape_cast %209 : vector<1x1x32xf32> to vector<1x32xf32>
    %cst_136 = arith.constant dense<0.000000e+00> : vector<8xf32>
    %211 = vector.multi_reduction <add>, %206, %cst_136 [1] : vector<8x32xf32> to vector<8xf32>
    %212 = vector.shape_cast %211 : vector<8xf32> to vector<8x1xf32>
    %cst_137 = arith.constant 3.200000e+01 : f32
    %213 = vector.broadcast %cst_137 : f32 to vector<8x1xf32>
    %214 = arith.divf %212, %213 : vector<8x1xf32>
    %215 = vector.broadcast %214 : vector<8x1xf32> to vector<8x32xf32>
    %216 = arith.subf %206, %215 : vector<8x32xf32>
    %217 = arith.mulf %216, %216 : vector<8x32xf32>
    %cst_138 = arith.constant dense<0.000000e+00> : vector<8xf32>
    %218 = vector.multi_reduction <add>, %217, %cst_138 [1] : vector<8x32xf32> to vector<8xf32>
    %219 = vector.shape_cast %218 : vector<8xf32> to vector<8x1xf32>
    %cst_139 = arith.constant 3.200000e+01 : f32
    %220 = vector.broadcast %cst_139 : f32 to vector<8x1xf32>
    %221 = arith.divf %219, %220 : vector<8x1xf32>
    %222 = vector.broadcast %214 : vector<8x1xf32> to vector<8x32xf32>
    %223 = arith.subf %206, %222 : vector<8x32xf32>
    %cst_140 = arith.constant 9.99999996E-13 : f32
    %224 = vector.broadcast %cst_140 : f32 to vector<8x1xf32>
    %225 = arith.addf %221, %224 : vector<8x1xf32>
    %226 = math.rsqrt %225 : vector<8x1xf32>
    %227 = vector.broadcast %226 : vector<8x1xf32> to vector<8x32xf32>
    %228 = arith.mulf %223, %227 : vector<8x32xf32>
    %229 = vector.broadcast %208 : vector<1x32xf32> to vector<8x32xf32>
    %230 = arith.mulf %228, %229 : vector<8x32xf32>
    %231 = vector.broadcast %210 : vector<1x32xf32> to vector<8x32xf32>
    %232 = arith.addf %230, %231 : vector<8x32xf32>
    %233 = arith.truncf %232 : vector<8x32xf32> to vector<8x32xbf16>
    %c1_141 = arith.constant 1 : index
    %c0_142 = arith.constant 0 : index
    %c0_143 = arith.constant 0 : index
    %234 = vector.load %arg15[%c1_141, %c0_142, %c0_143] : memref<2x32x64xbf16, #tpu.memory_space<vmem>>, vector<1x32x64xbf16>
    %235 = vector.shape_cast %234 : vector<1x32x64xbf16> to vector<32x64xbf16>
    %cst_144 = arith.constant dense<0.000000e+00> : vector<8x64xf32>
    %236 = tpu.matmul %233, %235, %cst_144 {dimension_numbers = #tpu.dot_dimension_numbers<[1], [0], [0], [1], [0, 0, 1, 1], [], []>} : vector<8x32xbf16>, vector<32x64xbf16>, vector<8x64xf32> -> vector<8x64xf32>
    %c1_145 = arith.constant 1 : index
    %c0_146 = arith.constant 0 : index
    %c0_147 = arith.constant 0 : index
    %237 = vector.load %arg16[%c1_145, %c0_146, %c0_147] : memref<2x1x64xf32, #tpu.memory_space<vmem>>, vector<1x1x64xf32>
    %238 = vector.shape_cast %237 : vector<1x1x64xf32> to vector<1x64xf32>
    %239 = vector.broadcast %238 : vector<1x64xf32> to vector<8x64xf32>
    %240 = arith.addf %236, %239 : vector<8x64xf32>
    %cst_148 = arith.constant 5.000000e-01 : f32
    %241 = vector.broadcast %cst_148 : f32 to vector<8x64xf32>
    %242 = arith.mulf %241, %240 : vector<8x64xf32>
    %cst_149 = arith.constant 0.707106769 : f32
    %243 = vector.broadcast %cst_149 : f32 to vector<8x64xf32>
    %244 = arith.mulf %240, %243 : vector<8x64xf32>
    %245 = math.erf %244 : vector<8x64xf32>
    %cst_150 = arith.constant 1.000000e+00 : f32
    %246 = vector.broadcast %cst_150 : f32 to vector<8x64xf32>
    %247 = arith.addf %246, %245 : vector<8x64xf32>
    %248 = arith.mulf %242, %247 : vector<8x64xf32>
    %249 = arith.truncf %248 : vector<8x64xf32> to vector<8x64xbf16>
    %c1_151 = arith.constant 1 : index
    %c0_152 = arith.constant 0 : index
    %c0_153 = arith.constant 0 : index
    %250 = vector.load %arg17[%c1_151, %c0_152, %c0_153] : memref<2x64x32xbf16, #tpu.memory_space<vmem>>, vector<1x64x32xbf16>
    %251 = vector.shape_cast %250 : vector<1x64x32xbf16> to vector<64x32xbf16>
    %cst_154 = arith.constant dense<0.000000e+00> : vector<8x32xf32>
    %252 = tpu.matmul %249, %251, %cst_154 {dimension_numbers = #tpu.dot_dimension_numbers<[1], [0], [0], [1], [0, 0, 1, 1], [], []>} : vector<8x64xbf16>, vector<64x32xbf16>, vector<8x32xf32> -> vector<8x32xf32>
    %c1_155 = arith.constant 1 : index
    %c0_156 = arith.constant 0 : index
    %c0_157 = arith.constant 0 : index
    %253 = vector.load %arg18[%c1_155, %c0_156, %c0_157] : memref<2x1x32xf32, #tpu.memory_space<vmem>>, vector<1x1x32xf32>
    %254 = vector.shape_cast %253 : vector<1x1x32xf32> to vector<1x32xf32>
    %255 = vector.broadcast %254 : vector<1x32xf32> to vector<8x32xf32>
    %256 = arith.addf %252, %255 : vector<8x32xf32>
    %257 = arith.addf %256, %232 : vector<8x32xf32>
    %c1_158 = arith.constant 1 : index
    %c0_159 = arith.constant 0 : index
    %c0_160 = arith.constant 0 : index
    %258 = vector.load %arg19[%c1_158, %c0_159, %c0_160] : memref<2x1x32xf32, #tpu.memory_space<vmem>>, vector<1x1x32xf32>
    %259 = vector.shape_cast %258 : vector<1x1x32xf32> to vector<1x32xf32>
    %c1_161 = arith.constant 1 : index
    %c0_162 = arith.constant 0 : index
    %c0_163 = arith.constant 0 : index
    %260 = vector.load %arg20[%c1_161, %c0_162, %c0_163] : memref<2x1x32xf32, #tpu.memory_space<vmem>>, vector<1x1x32xf32>
    %261 = vector.shape_cast %260 : vector<1x1x32xf32> to vector<1x32xf32>
    %cst_164 = arith.constant dense<0.000000e+00> : vector<8xf32>
    %262 = vector.multi_reduction <add>, %257, %cst_164 [1] : vector<8x32xf32> to vector<8xf32>
    %263 = vector.shape_cast %262 : vector<8xf32> to vector<8x1xf32>
    %cst_165 = arith.constant 3.200000e+01 : f32
    %264 = vector.broadcast %cst_165 : f32 to vector<8x1xf32>
    %265 = arith.divf %263, %264 : vector<8x1xf32>
    %266 = vector.broadcast %265 : vector<8x1xf32> to vector<8x32xf32>
    %267 = arith.subf %257, %266 : vector<8x32xf32>
    %268 = arith.mulf %267, %267 : vector<8x32xf32>
    %cst_166 = arith.constant dense<0.000000e+00> : vector<8xf32>
    %269 = vector.multi_reduction <add>, %268, %cst_166 [1] : vector<8x32xf32> to vector<8xf32>
    %270 = vector.shape_cast %269 : vector<8xf32> to vector<8x1xf32>
    %cst_167 = arith.constant 3.200000e+01 : f32
    %271 = vector.broadcast %cst_167 : f32 to vector<8x1xf32>
    %272 = arith.divf %270, %271 : vector<8x1xf32>
    %273 = vector.broadcast %265 : vector<8x1xf32> to vector<8x32xf32>
    %274 = arith.subf %257, %273 : vector<8x32xf32>
    %cst_168 = arith.constant 9.99999996E-13 : f32
    %275 = vector.broadcast %cst_168 : f32 to vector<8x1xf32>
    %276 = arith.addf %272, %275 : vector<8x1xf32>
    %277 = math.rsqrt %276 : vector<8x1xf32>
    %278 = vector.broadcast %277 : vector<8x1xf32> to vector<8x32xf32>
    %279 = arith.mulf %274, %278 : vector<8x32xf32>
    %280 = vector.broadcast %259 : vector<1x32xf32> to vector<8x32xf32>
    %281 = arith.mulf %279, %280 : vector<8x32xf32>
    %282 = vector.broadcast %261 : vector<1x32xf32> to vector<8x32xf32>
    %283 = arith.addf %281, %282 : vector<8x32xf32>
    %284 = vector.extract_strided_slice %283 {offsets = [0, 0], sizes = [1, 32], strides = [1, 1]} : vector<8x32xf32> to vector<1x32xf32>
    %285 = vector.shape_cast %284 : vector<1x32xf32> to vector<1x32xf32>
    %286 = vector.broadcast %285 : vector<1x32xf32> to vector<8x32xf32>
    %c0_169 = arith.constant 0 : index
    %c0_170 = arith.constant 0 : index
    %287 = vector.load %arg21[%c0_169, %c0_170] : memref<32x32xf32, #tpu.memory_space<vmem>>, vector<32x32xf32>
    %cst_171 = arith.constant dense<0.000000e+00> : vector<8x32xf32>
    %288 = tpu.matmul %286, %287, %cst_171 {dimension_numbers = #tpu.dot_dimension_numbers<[1], [0], [0], [1], [0, 0, 1, 1], [], []>} : vector<8x32xf32>, vector<32x32xf32>, vector<8x32xf32> -> vector<8x32xf32>
    %c0_172 = arith.constant 0 : index
    %c0_173 = arith.constant 0 : index
    %289 = vector.load %arg22[%c0_172, %c0_173] : memref<1x32xf32, #tpu.memory_space<vmem>>, vector<1x32xf32>
    %290 = vector.broadcast %289 : vector<1x32xf32> to vector<8x32xf32>
    %291 = arith.addf %288, %290 : vector<8x32xf32>
    %292 = math.tanh %291 : vector<8x32xf32>
    %c0_174 = arith.constant 0 : index
    %c0_175 = arith.constant 0 : index
    %293 = vector.load %arg23[%c0_174, %c0_175] : memref<32x128xf32, #tpu.memory_space<vmem>>, vector<32x128xf32>
    %cst_176 = arith.constant dense<0.000000e+00> : vector<8x128xf32>
    %294 = tpu.matmul %292, %293, %cst_176 {dimension_numbers = #tpu.dot_dimension_numbers<[1], [0], [0], [1], [0, 0, 1, 1], [], []>} : vector<8x32xf32>, vector<32x128xf32>, vector<8x128xf32> -> vector<8x128xf32>
    %c0_177 = arith.constant 0 : index
    %c0_178 = arith.constant 0 : index
    %295 = vector.load %arg24[%c0_177, %c0_178] : memref<1x128xf32, #tpu.memory_space<vmem>>, vector<1x128xf32>
    %296 = vector.broadcast %295 : vector<1x128xf32> to vector<8x128xf32>
    %297 = arith.addf %294, %296 : vector<8x128xf32>
    %c0_179 = arith.constant 0 : index
    %c0_180 = arith.constant 0 : index
    %c0_181 = arith.constant 0 : index
    %298 = vector.load %arg25[%c0_179, %c0_180, %c0_181] : memref<1x8x128xf32, #tpu.memory_space<vmem>>, vector<1x8x128xf32>
    %299 = vector.shape_cast %298 : vector<1x8x128xf32> to vector<8x128xf32>
    %300 = vector.shape_cast %297 : vector<8x128xf32> to vector<1x8x128xf32>
    tpu.vector_store %arg25[%c0_179, %c0_180, %c0_181], %300 {strides = array<i32>} : memref<1x8x128xf32, #tpu.memory_space<vmem>>, vector<1x8x128xf32>,
    return
  }
  func.func @transform_0(%arg0: i32) -> (i32, i32) {
    %c0_i32 = arith.constant 0 : i32
    %c0_i32_0 = arith.constant 0 : i32
    return %arg0, %c0_i32 : i32, i32
  }
  func.func @transform_1(%arg0: i32) -> (i32, i32, i32) {
    %c0_i32 = arith.constant 0 : i32
    %c0_i32_0 = arith.constant 0 : i32
    %c0_i32_1 = arith.constant 0 : i32
    return %arg0, %c0_i32, %c0_i32_0 : i32, i32, i32
  }
  func.func @transform_2(%arg0: i32) -> (i32, i32) {
    %c0_i32 = arith.constant 0 : i32
    %c0_i32_0 = arith.constant 0 : i32
    %c0_i32_1 = arith.constant 0 : i32
    return %c0_i32, %c0_i32_0 : i32, i32
  }
  func.func @transform_3(%arg0: i32) -> (i32, i32) {
    %c0_i32 = arith.constant 0 : i32
    %c0_i32_0 = arith.constant 0 : i32
    %c0_i32_1 = arith.constant 0 : i32
    return %c0_i32, %c0_i32_0 : i32, i32
  }
  func.func @transform_4(%arg0: i32) -> (i32, i32, i32, i32) {
    %c0_i32 = arith.constant 0 : i32
    %c0_i32_0 = arith.constant 0 : i32
    %c0_i32_1 = arith.constant 0 : i32
    %c0_i32_2 = arith.constant 0 : i32
    %c0_i32_3 = arith.constant 0 : i32
    return %c0_i32, %c0_i32_0, %c0_i32_1, %c0_i32_2 : i32, i32, i32, i32
  }
  func.func @transform_5(%arg0: i32) -> (i32, i32, i32, i32) {
    %c0_i32 = arith.constant 0 : i32
    %c0_i32_0 = arith.constant 0 : i32
    %c0_i32_1 = arith.constant 0 : i32
    %c0_i32_2 = arith.constant 0 : i32
    %c0_i32_3 = arith.constant 0 : i32
    return %c0_i32, %c0_i32_0, %c0_i32_1, %c0_i32_2 : i32, i32, i32, i32
  }
  func.func @transform_6(%arg0: i32) -> (i32, i32, i32, i32) {
    %c0_i32 = arith.constant 0 : i32
    %c0_i32_0 = arith.constant 0 : i32
    %c0_i32_1 = arith.constant 0 : i32
    %c0_i32_2 = arith.constant 0 : i32
    %c0_i32_3 = arith.constant 0 : i32
    return %c0_i32, %c0_i32_0, %c0_i32_1, %c0_i32_2 : i32, i32, i32, i32
  }
  func.func @transform_7(%arg0: i32) -> (i32, i32, i32, i32) {
    %c0_i32 = arith.constant 0 : i32
    %c0_i32_0 = arith.constant 0 : i32
    %c0_i32_1 = arith.constant 0 : i32
    %c0_i32_2 = arith.constant 0 : i32
    %c0_i32_3 = arith.constant 0 : i32
    return %c0_i32, %c0_i32_0, %c0_i32_1, %c0_i32_2 : i32, i32, i32, i32
  }
  func.func @transform_8(%arg0: i32) -> (i32, i32, i32, i32) {
    %c0_i32 = arith.constant 0 : i32
    %c0_i32_0 = arith.constant 0 : i32
    %c0_i32_1 = arith.constant 0 : i32
    %c0_i32_2 = arith.constant 0 : i32
    %c0_i32_3 = arith.constant 0 : i32
    return %c0_i32, %c0_i32_0, %c0_i32_1, %c0_i32_2 : i32, i32, i32, i32
  }
  func.func @transform_9(%arg0: i32) -> (i32, i32, i32, i32) {
    %c0_i32 = arith.constant 0 : i32
    %c0_i32_0 = arith.constant 0 : i32
    %c0_i32_1 = arith.constant 0 : i32
    %c0_i32_2 = arith.constant 0 : i32
    %c0_i32_3 = arith.constant 0 : i32
    return %c0_i32, %c0_i32_0, %c0_i32_1, %c0_i32_2 : i32, i32, i32, i32
  }
  func.func @transform_10(%arg0: i32) -> (i32, i32, i32, i32) {
    %c0_i32 = arith.constant 0 : i32
    %c0_i32_0 = arith.constant 0 : i32
    %c0_i32_1 = arith.constant 0 : i32
    %c0_i32_2 = arith.constant 0 : i32
    %c0_i32_3 = arith.constant 0 : i32
    return %c0_i32, %c0_i32_0, %c0_i32_1, %c0_i32_2 : i32, i32, i32, i32
  }
  func.func @transform_11(%arg0: i32) -> (i32, i32, i32) {
    %c0_i32 = arith.constant 0 : i32
    %c0_i32_0 = arith.constant 0 : i32
    %c0_i32_1 = arith.constant 0 : i32
    %c0_i32_2 = arith.constant 0 : i32
    return %c0_i32, %c0_i32_0, %c0_i32_1 : i32, i32, i32
  }
  func.func @transform_12(%arg0: i32) -> (i32, i32, i32) {
    %c0_i32 = arith.constant 0 : i32
    %c0_i32_0 = arith.constant 0 : i32
    %c0_i32_1 = arith.constant 0 : i32
    %c0_i32_2 = arith.constant 0 : i32
    return %c0_i32, %c0_i32_0, %c0_i32_1 : i32, i32, i32
  }
  func.func @transform_13(%arg0: i32) -> (i32, i32, i32) {
    %c0_i32 = arith.constant 0 : i32
    %c0_i32_0 = arith.constant 0 : i32
    %c0_i32_1 = arith.constant 0 : i32
    %c0_i32_2 = arith.constant 0 : i32
    return %c0_i32, %c0_i32_0, %c0_i32_1 : i32, i32, i32
  }
  func.func @transform_14(%arg0: i32) -> (i32, i32, i32) {
    %c0_i32 = arith.constant 0 : i32
    %c0_i32_0 = arith.constant 0 : i32
    %c0_i32_1 = arith.constant 0 : i32
    %c0_i32_2 = arith.constant 0 : i32
    return %c0_i32, %c0_i32_0, %c0_i32_1 : i32, i32, i32
  }
  func.func @transform_15(%arg0: i32) -> (i32, i32, i32) {
    %c0_i32 = arith.constant 0 : i32
    %c0_i32_0 = arith.constant 0 : i32
    %c0_i32_1 = arith.constant 0 : i32
    %c0_i32_2 = arith.constant 0 : i32
    return %c0_i32, %c0_i32_0, %c0_i32_1 : i32, i32, i32
  }
  func.func @transform_16(%arg0: i32) -> (i32, i32, i32) {
    %c0_i32 = arith.constant 0 : i32
    %c0_i32_0 = arith.constant 0 : i32
    %c0_i32_1 = arith.constant 0 : i32
    %c0_i32_2 = arith.constant 0 : i32
    return %c0_i32, %c0_i32_0, %c0_i32_1 : i32, i32, i32
  }
  func.func @transform_17(%arg0: i32) -> (i32, i32, i32) {
    %c0_i32 = arith.constant 0 : i32
    %c0_i32_0 = arith.constant 0 : i32
    %c0_i32_1 = arith.constant 0 : i32
    %c0_i32_2 = arith.constant 0 : i32
    return %c0_i32, %c0_i32_0, %c0_i32_1 : i32, i32, i32
  }
  func.func @transform_18(%arg0: i32) -> (i32, i32, i32) {
    %c0_i32 = arith.constant 0 : i32
    %c0_i32_0 = arith.constant 0 : i32
    %c0_i32_1 = arith.constant 0 : i32
    %c0_i32_2 = arith.constant 0 : i32
    return %c0_i32, %c0_i32_0, %c0_i32_1 : i32, i32, i32
  }
  func.func @transform_19(%arg0: i32) -> (i32, i32, i32) {
    %c0_i32 = arith.constant 0 : i32
    %c0_i32_0 = arith.constant 0 : i32
    %c0_i32_1 = arith.constant 0 : i32
    %c0_i32_2 = arith.constant 0 : i32
    return %c0_i32, %c0_i32_0, %c0_i32_1 : i32, i32, i32
  }
  func.func @transform_20(%arg0: i32) -> (i32, i32) {
    %c0_i32 = arith.constant 0 : i32
    %c0_i32_0 = arith.constant 0 : i32
    %c0_i32_1 = arith.constant 0 : i32
    return %c0_i32, %c0_i32_0 : i32, i32
  }
  func.func @transform_21(%arg0: i32) -> (i32, i32) {
    %c0_i32 = arith.constant 0 : i32
    %c0_i32_0 = arith.constant 0 : i32
    %c0_i32_1 = arith.constant 0 : i32
    return %c0_i32, %c0_i32_0 : i32, i32
  }
  func.func @transform_22(%arg0: i32) -> (i32, i32) {
    %c0_i32 = arith.constant 0 : i32
    %c0_i32_0 = arith.constant 0 : i32
    %c0_i32_1 = arith.constant 0 : i32
    return %c0_i32, %c0_i32_0 : i32, i32
  }
  func.func @transform_23(%arg0: i32) -> (i32, i32) {
    %c0_i32 = arith.constant 0 : i32
    %c0_i32_0 = arith.constant 0 : i32
    %c0_i32_1 = arith.constant 0 : i32
    return %c0_i32, %c0_i32_0 : i32, i32
  }
  func.func @transform_24(%arg0: i32) -> (i32, i32, i32) {
    %c0_i32 = arith.constant 0 : i32
    %c0_i32_0 = arith.constant 0 : i32
    %c0_i32_1 = arith.constant 0 : i32
    return %arg0, %c0_i32, %c0_i32_0 : i32, i32, i32
  }
}

</mosaic_0001>

<llo_original>
// kernel: bert_classification_forward.1
$region0: #{bert_classification_forward.1}
  #allocation0 [shape = 'u32[]', space=smem, size = 0x4, offset = 0x4, fixed_abs, tag = 'smem constant byte address 0x4 - core index']
  #allocation1 [shape = 'u32[144,128]{1,0:T(1,128)}', space=vmem, size = 0x12000, scoped, tag = 'internal scratch']
  %s0 = inlined_call_operand.vmem [shape: f32[16,32], index: 0, kind: input, shape index: {}]
  %s1 = inlined_call_operand.vmem [shape: f32[2,1,8], index: 1, kind: input, shape index: {}]
  %s2 = inlined_call_operand.vmem [shape: f32[1,32], index: 2, kind: input, shape index: {}]
  %s3 = inlined_call_operand.vmem [shape: f32[1,32], index: 3, kind: input, shape index: {}]
  %s4 = inlined_call_operand.vmem [shape: bf16[2,4,32,8], index: 4, kind: input, shape index: {}]
  %s5 = inlined_call_operand.vmem [shape: bf16[2,4,32,8], index: 5, kind: input, shape index: {}]
  %s6 = inlined_call_operand.vmem [shape: bf16[2,4,32,8], index: 6, kind: input, shape index: {}]
  %s7 = inlined_call_operand.vmem [shape: f32[2,4,1,8], index: 7, kind: input, shape index: {}]
  %s8 = inlined_call_operand.vmem [shape: f32[2,4,1,8], index: 8, kind: input, shape index: {}]
  %s9 = inlined_call_operand.vmem [shape: f32[2,4,1,8], index: 9, kind: input, shape index: {}]
  %s10 = inlined_call_operand.vmem [shape: bf16[2,4,8,32], index: 10, kind: input, shape index: {}]
  %s11 = inlined_call_operand.vmem [shape: f32[2,1,32], index: 11, kind: input, shape index: {}]
  %s12 = inlined_call_operand.vmem [shape: f32[2,1,32], index: 12, kind: input, shape index: {}]
  %s13 = inlined_call_operand.vmem [shape: f32[2,1,32], index: 13, kind: input, shape index: {}]
  %s14 = inlined_call_operand.vmem [shape: bf16[2,32,64], index: 14, kind: input, shape index: {}]
  %s15 = inlined_call_operand.vmem [shape: f32[2,1,64], index: 15, kind: input, shape index: {}]
  %s16 = inlined_call_operand.vmem [shape: bf16[2,64,32], index: 16, kind: input, shape index: {}]
  %s17 = inlined_call_operand.vmem [shape: f32[2,1,32], index: 17, kind: input, shape index: {}]
  %s18 = inlined_call_operand.vmem [shape: f32[2,1,32], index: 18, kind: input, shape index: {}]
  %s19 = inlined_call_operand.vmem [shape: f32[2,1,32], index: 19, kind: input, shape index: {}]
  %s20 = inlined_call_operand.vmem [shape: f32[32,32], index: 20, kind: input, shape index: {}]
  %s21 = inlined_call_operand.vmem [shape: f32[1,32], index: 21, kind: input, shape index: {}]
  %s22 = inlined_call_operand.vmem [shape: f32[32,128], index: 22, kind: input, shape index: {}]
  %s23 = inlined_call_operand.vmem [shape: f32[1,128], index: 23, kind: input, shape index: {}]
  %s24 = inlined_call_operand.vmem [shape: f32[2,8,128], index: 24, kind: output, shape index: {}]
  %s25 = sld [smem:[#allocation0]]
  $region129: #{bert_classification_forward.1} parent=0
    _
  %s27 = ssub.s32 1, %s25
  %s28 = scalar_select 0, %s27, %s25
  loop: start=0, step=1, limit=4
  $region2: #{bert_classification_forward.1} parent=0 // loop_pre_header
    _
  $region3: #{bert_classification_forward.1} parent=0 // loop_header
    %s30 = sphi 0, %s34
    %p31 = scmp.ge.s32.totalorder %s30, 4
    %s40 = sphi 0, %s42
    %s43 = sphi 0, %s40
    %s44 = sphi 0, %s43
    %s60 = sphi 0, %s44
    %s66 = sphi 0, %s68
    %s69 = sphi 0, %s66
    %s70 = sphi 0, %s69
    %s86 = sphi 0, %s70
    %s90 = sphi 0, %s90
    %s92 = sphi 0, %s90
    %s93 = sphi 0, %s92
    %s107 = sphi 0, %s93
    %s111 = sphi 0, %s111
    %s113 = sphi 0, %s111
    %s114 = sphi 0, %s113
    %s128 = sphi 0, %s114
    %s132 = sphi 0, %s132
    %s134 = sphi 0, %s132
    %s135 = sphi 0, %s134
    %s149 = sphi 0, %s135
    %s153 = sphi 0, %s153
    %s155 = sphi 0, %s153
    %s156 = sphi 0, %s155
    %s170 = sphi 0, %s156
    %s174 = sphi 0, %s174
    %s176 = sphi 0, %s174
    %s177 = sphi 0, %s176
    %s191 = sphi 0, %s177
    %s195 = sphi 0, %s195
    %s197 = sphi 0, %s195
    %s198 = sphi 0, %s197
    %s212 = sphi 0, %s198
    %s216 = sphi 0, %s216
    %s218 = sphi 0, %s216
    %s219 = sphi 0, %s218
    %s233 = sphi 0, %s219
    %s237 = sphi 0, %s237
    %s239 = sphi 0, %s237
    %s240 = sphi 0, %s239
    %s254 = sphi 0, %s240
    %s258 = sphi 0, %s258
    %s260 = sphi 0, %s258
    %s261 = sphi 0, %s260
    %s275 = sphi 0, %s261
    %s279 = sphi 0, %s279
    %s281 = sphi 0, %s279
    %s282 = sphi 0, %s281
    %s296 = sphi 0, %s282
    %s300 = sphi 0, %s300
    %s302 = sphi 0, %s300
    %s303 = sphi 0, %s302
    %s317 = sphi 0, %s303
    %s321 = sphi 0, %s321
    %s323 = sphi 0, %s321
    %s324 = sphi 0, %s323
    %s338 = sphi 0, %s324
    %s342 = sphi 0, %s342
    %s344 = sphi 0, %s342
    %s345 = sphi 0, %s344
    %s359 = sphi 0, %s345
    %s363 = sphi 0, %s363
    %s365 = sphi 0, %s363
    %s366 = sphi 0, %s365
    %s380 = sphi 0, %s366
    %s384 = sphi 0, %s384
    %s386 = sphi 0, %s384
    %s387 = sphi 0, %s386
    %s401 = sphi 0, %s387
    %s405 = sphi 0, %s405
    %s407 = sphi 0, %s405
    %s408 = sphi 0, %s407
    %s422 = sphi 0, %s408
    %s426 = sphi 0, %s426
    %s428 = sphi 0, %s426
    %s429 = sphi 0, %s428
    %s443 = sphi 0, %s429
    %s447 = sphi 0, %s447
    %s449 = sphi 0, %s447
    %s450 = sphi 0, %s449
    %s464 = sphi 0, %s450
    %s468 = sphi 0, %s468
    %s470 = sphi 0, %s468
    %s471 = sphi 0, %s470
    %s485 = sphi 0, %s471
    %s489 = sphi 0, %s489
    %s491 = sphi 0, %s489
    %s492 = sphi 0, %s491
    %s506 = sphi 0, %s492
    %s510 = sphi 0, %s510
    %s512 = sphi 0, %s510
    %s513 = sphi 0, %s512
    %s527 = sphi 0, %s513
    %s531 = sphi 0, %s531
    %s533 = sphi 0, %s531
    %s534 = sphi 0, %s533
    %s548 = sphi 0, %s534
    %s554 = sphi 0, %s556
    %s557 = sphi 0, %s554
    %s558 = sphi 0, %s557
    %s574 = sphi 0, %s558
  $region4: #{bert_classification_forward.1} parent=0 // loop_header_branch
    %33 = sbr.rel (%p31) target = $region8
  $region5: #{bert_classification_forward.1} parent=0 // loop_body
    %s35 = ssub.s32 %s30, 1
    %s36 = ssub.s32 %s30, 2
    %s37 = sadd.s32 %s30, 1
    %s38 = ssub.s32 %s30, %s37
    %p39 = scmp.eq.s32.totalorder %s38, 0
    %s41 = sadd.s32 %s40, 1
    %s42 = scalar_select %p39, %s40, %s41
    %p45 = pneg %p39
    %p46 = scmp.eq.s32.totalorder %s30, 1
    %p47 = por %p45, %p46
    %p48 = scmp.ne.s32.totalorder %s40, %s43
    %p49 = scmp.eq.s32.totalorder %s30, 0
    %p50 = por %p48, %p49
    %p51 = scmp.ne.s32.totalorder %s40, %s43
    %p52 = scmp.eq.s32.totalorder %s35, 1
    %p53 = por %p51, %p52
    %p54 = scmp.ne.s32.totalorder %s43, %s44
    %p55 = scmp.eq.s32.totalorder %s35, 0
    %p56 = por %p54, %p55
    %p57 = scmp.ne.s32.totalorder %s43, %s44
    %p58 = scmp.eq.s32.totalorder %s36, 1
    %p59 = por %p57, %p58
    %p61 = scmp.ne.s32.totalorder %s44, %s60
    %p62 = scmp.eq.s32.totalorder %s36, 0
    %p63 = por %p61, %p62
    %s64 = ssub.s32 %s30, %s37
    %p65 = scmp.eq.s32.totalorder %s64, 0
    %s67 = sadd.s32 %s66, 1
    %s68 = scalar_select %p65, %s66, %s67
    %p71 = pneg %p65
    %p72 = scmp.eq.s32.totalorder %s30, 1
    %p73 = por %p71, %p72
    %p74 = scmp.ne.s32.totalorder %s66, %s69
    %p75 = scmp.eq.s32.totalorder %s30, 0
    %p76 = por %p74, %p75
    %p77 = scmp.ne.s32.totalorder %s66, %s69
    %p78 = scmp.eq.s32.totalorder %s35, 1
    %p79 = por %p77, %p78
    %p80 = scmp.ne.s32.totalorder %s69, %s70
    %p81 = scmp.eq.s32.totalorder %s35, 0
    %p82 = por %p80, %p81
    %p83 = scmp.ne.s32.totalorder %s69, %s70
    %p84 = scmp.eq.s32.totalorder %s36, 1
    %p85 = por %p83, %p84
    %p87 = scmp.ne.s32.totalorder %s70, %s86
    %p88 = scmp.eq.s32.totalorder %s36, 0
    %p89 = por %p87, %p88
    %s91 = sadd.s32 %s90, 1
    %p94 = scmp.eq.s32.totalorder %s30, 1
    %p95 = scmp.ne.s32.totalorder %s90, %s92
    %p96 = scmp.eq.s32.totalorder %s30, 0
    %p97 = por %p95, %p96
    %p98 = scmp.ne.s32.totalorder %s90, %s92
    %p99 = scmp.eq.s32.totalorder %s35, 1
    %p100 = por %p98, %p99
    %p101 = scmp.ne.s32.totalorder %s92, %s93
    %p102 = scmp.eq.s32.totalorder %s35, 0
    %p103 = por %p101, %p102
    %p104 = scmp.ne.s32.totalorder %s92, %s93
    %p105 = scmp.eq.s32.totalorder %s36, 1
    %p106 = por %p104, %p105
    %p108 = scmp.ne.s32.totalorder %s93, %s107
    %p109 = scmp.eq.s32.totalorder %s36, 0
    %p110 = por %p108, %p109
    %s112 = sadd.s32 %s111, 1
    %p115 = scmp.eq.s32.totalorder %s30, 1
    %p116 = scmp.ne.s32.totalorder %s111, %s113
    %p117 = scmp.eq.s32.totalorder %s30, 0
    %p118 = por %p116, %p117
    %p119 = scmp.ne.s32.totalorder %s111, %s113
    %p120 = scmp.eq.s32.totalorder %s35, 1
    %p121 = por %p119, %p120
    %p122 = scmp.ne.s32.totalorder %s113, %s114
    %p123 = scmp.eq.s32.totalorder %s35, 0
    %p124 = por %p122, %p123
    %p125 = scmp.ne.s32.totalorder %s113, %s114
    %p126 = scmp.eq.s32.totalorder %s36, 1
    %p127 = por %p125, %p126
    %p129 = scmp.ne.s32.totalorder %s114, %s128
    %p130 = scmp.eq.s32.totalorder %s36, 0
    %p131 = por %p129, %p130
    %s133 = sadd.s32 %s132, 1
    %p136 = scmp.eq.s32.totalorder %s30, 1
    %p137 = scmp.ne.s32.totalorder %s132, %s134
    %p138 = scmp.eq.s32.totalorder %s30, 0
    %p139 = por %p137, %p138
    %p140 = scmp.ne.s32.totalorder %s132, %s134
    %p141 = scmp.eq.s32.totalorder %s35, 1
    %p142 = por %p140, %p141
    %p143 = scmp.ne.s32.totalorder %s134, %s135
    %p144 = scmp.eq.s32.totalorder %s35, 0
    %p145 = por %p143, %p144
    %p146 = scmp.ne.s32.totalorder %s134, %s135
    %p147 = scmp.eq.s32.totalorder %s36, 1
    %p148 = por %p146, %p147
    %p150 = scmp.ne.s32.totalorder %s135, %s149
    %p151 = scmp.eq.s32.totalorder %s36, 0
    %p152 = por %p150, %p151
    %s154 = sadd.s32 %s153, 1
    %p157 = scmp.eq.s32.totalorder %s30, 1
    %p158 = scmp.ne.s32.totalorder %s153, %s155
    %p159 = scmp.eq.s32.totalorder %s30, 0
    %p160 = por %p158, %p159
    %p161 = scmp.ne.s32.totalorder %s153, %s155
    %p162 = scmp.eq.s32.totalorder %s35, 1
    %p163 = por %p161, %p162
    %p164 = scmp.ne.s32.totalorder %s155, %s156
    %p165 = scmp.eq.s32.totalorder %s35, 0
    %p166 = por %p164, %p165
    %p167 = scmp.ne.s32.totalorder %s155, %s156
    %p168 = scmp.eq.s32.totalorder %s36, 1
    %p169 = por %p167, %p168
    %p171 = scmp.ne.s32.totalorder %s156, %s170
    %p172 = scmp.eq.s32.totalorder %s36, 0
    %p173 = por %p171, %p172
    %s175 = sadd.s32 %s174, 1
    %p178 = scmp.eq.s32.totalorder %s30, 1
    %p179 = scmp.ne.s32.totalorder %s174, %s176
    %p180 = scmp.eq.s32.totalorder %s30, 0
    %p181 = por %p179, %p180
    %p182 = scmp.ne.s32.totalorder %s174, %s176
    %p183 = scmp.eq.s32.totalorder %s35, 1
    %p184 = por %p182, %p183
    %p185 = scmp.ne.s32.totalorder %s176, %s177
    %p186 = scmp.eq.s32.totalorder %s35, 0
    %p187 = por %p185, %p186
    %p188 = scmp.ne.s32.totalorder %s176, %s177
    %p189 = scmp.eq.s32.totalorder %s36, 1
    %p190 = por %p188, %p189
    %p192 = scmp.ne.s32.totalorder %s177, %s191
    %p193 = scmp.eq.s32.totalorder %s36, 0
    %p194 = por %p192, %p193
    %s196 = sadd.s32 %s195, 1
    %p199 = scmp.eq.s32.totalorder %s30, 1
    %p200 = scmp.ne.s32.totalorder %s195, %s197
    %p201 = scmp.eq.s32.totalorder %s30, 0
    %p202 = por %p200, %p201
    %p203 = scmp.ne.s32.totalorder %s195, %s197
    %p204 = scmp.eq.s32.totalorder %s35, 1
    %p205 = por %p203, %p204
    %p206 = scmp.ne.s32.totalorder %s197, %s198
    %p207 = scmp.eq.s32.totalorder %s35, 0
    %p208 = por %p206, %p207
    %p209 = scmp.ne.s32.totalorder %s197, %s198
    %p210 = scmp.eq.s32.totalorder %s36, 1
    %p211 = por %p209, %p210
    %p213 = scmp.ne.s32.totalorder %s198, %s212
    %p214 = scmp.eq.s32.totalorder %s36, 0
    %p215 = por %p213, %p214
    %s217 = sadd.s32 %s216, 1
    %p220 = scmp.eq.s32.totalorder %s30, 1
    %p221 = scmp.ne.s32.totalorder %s216, %s218
    %p222 = scmp.eq.s32.totalorder %s30, 0
    %p223 = por %p221, %p222
    %p224 = scmp.ne.s32.totalorder %s216, %s218
    %p225 = scmp.eq.s32.totalorder %s35, 1
    %p226 = por %p224, %p225
    %p227 = scmp.ne.s32.totalorder %s218, %s219
    %p228 = scmp.eq.s32.totalorder %s35, 0
    %p229 = por %p227, %p228
    %p230 = scmp.ne.s32.totalorder %s218, %s219
    %p231 = scmp.eq.s32.totalorder %s36, 1
    %p232 = por %p230, %p231
    %p234 = scmp.ne.s32.totalorder %s219, %s233
    %p235 = scmp.eq.s32.totalorder %s36, 0
    %p236 = por %p234, %p235
    %s238 = sadd.s32 %s237, 1
    %p241 = scmp.eq.s32.totalorder %s30, 1
    %p242 = scmp.ne.s32.totalorder %s237, %s239
    %p243 = scmp.eq.s32.totalorder %s30, 0
    %p244 = por %p242, %p243
    %p245 = scmp.ne.s32.totalorder %s237, %s239
    %p246 = scmp.eq.s32.totalorder %s35, 1
    %p247 = por %p245, %p246
    %p248 = scmp.ne.s32.totalorder %s239, %s240
    %p249 = scmp.eq.s32.totalorder %s35, 0
    %p250 = por %p248, %p249
    %p251 = scmp.ne.s32.totalorder %s239, %s240
    %p252 = scmp.eq.s32.totalorder %s36, 1
    %p253 = por %p251, %p252
    %p255 = scmp.ne.s32.totalorder %s240, %s254
    %p256 = scmp.eq.s32.totalorder %s36, 0
    %p257 = por %p255, %p256
    %s259 = sadd.s32 %s258, 1
    %p262 = scmp.eq.s32.totalorder %s30, 1
    %p263 = scmp.ne.s32.totalorder %s258, %s260
    %p264 = scmp.eq.s32.totalorder %s30, 0
    %p265 = por %p263, %p264
    %p266 = scmp.ne.s32.totalorder %s258, %s260
    %p267 = scmp.eq.s32.totalorder %s35, 1
    %p268 = por %p266, %p267
    %p269 = scmp.ne.s32.totalorder %s260, %s261
    %p270 = scmp.eq.s32.totalorder %s35, 0
    %p271 = por %p269, %p270
    %p272 = scmp.ne.s32.totalorder %s260, %s261
    %p273 = scmp.eq.s32.totalorder %s36, 1
    %p274 = por %p272, %p273
    %p276 = scmp.ne.s32.totalorder %s261, %s275
    %p277 = scmp.eq.s32.totalorder %s36, 0
    %p278 = por %p276, %p277
    %s280 = sadd.s32 %s279, 1
    %p283 = scmp.eq.s32.totalorder %s30, 1
    %p284 = scmp.ne.s32.totalorder %s279, %s281
    %p285 = scmp.eq.s32.totalorder %s30, 0
    %p286 = por %p284, %p285
    %p287 = scmp.ne.s32.totalorder %s279, %s281
    %p288 = scmp.eq.s32.totalorder %s35, 1
    %p289 = por %p287, %p288
    %p290 = scmp.ne.s32.totalorder %s281, %s282
    %p291 = scmp.eq.s32.totalorder %s35, 0
    %p292 = por %p290, %p291
    %p293 = scmp.ne.s32.totalorder %s281, %s282
    %p294 = scmp.eq.s32.totalorder %s36, 1
    %p295 = por %p293, %p294
    %p297 = scmp.ne.s32.totalorder %s282, %s296
    %p298 = scmp.eq.s32.totalorder %s36, 0
    %p299 = por %p297, %p298
    %s301 = sadd.s32 %s300, 1
    %p304 = scmp.eq.s32.totalorder %s30, 1
    %p305 = scmp.ne.s32.totalorder %s300, %s302
    %p306 = scmp.eq.s32.totalorder %s30, 0
    %p307 = por %p305, %p306
    %p308 = scmp.ne.s32.totalorder %s300, %s302
    %p309 = scmp.eq.s32.totalorder %s35, 1
    %p310 = por %p308, %p309
    %p311 = scmp.ne.s32.totalorder %s302, %s303
    %p312 = scmp.eq.s32.totalorder %s35, 0
    %p313 = por %p311, %p312
    %p314 = scmp.ne.s32.totalorder %s302, %s303
    %p315 = scmp.eq.s32.totalorder %s36, 1
    %p316 = por %p314, %p315
    %p318 = scmp.ne.s32.totalorder %s303, %s317
    %p319 = scmp.eq.s32.totalorder %s36, 0
    %p320 = por %p318, %p319
    %s322 = sadd.s32 %s321, 1
    %p325 = scmp.eq.s32.totalorder %s30, 1
    %p326 = scmp.ne.s32.totalorder %s321, %s323
    %p327 = scmp.eq.s32.totalorder %s30, 0
    %p328 = por %p326, %p327
    %p329 = scmp.ne.s32.totalorder %s321, %s323
    %p330 = scmp.eq.s32.totalorder %s35, 1
    %p331 = por %p329, %p330
    %p332 = scmp.ne.s32.totalorder %s323, %s324
    %p333 = scmp.eq.s32.totalorder %s35, 0
    %p334 = por %p332, %p333
    %p335 = scmp.ne.s32.totalorder %s323, %s324
    %p336 = scmp.eq.s32.totalorder %s36, 1
    %p337 = por %p335, %p336
    %p339 = scmp.ne.s32.totalorder %s324, %s338
    %p340 = scmp.eq.s32.totalorder %s36, 0
    %p341 = por %p339, %p340
    %s343 = sadd.s32 %s342, 1
    %p346 = scmp.eq.s32.totalorder %s30, 1
    %p347 = scmp.ne.s32.totalorder %s342, %s344
    %p348 = scmp.eq.s32.totalorder %s30, 0
    %p349 = por %p347, %p348
    %p350 = scmp.ne.s32.totalorder %s342, %s344
    %p351 = scmp.eq.s32.totalorder %s35, 1
    %p352 = por %p350, %p351
    %p353 = scmp.ne.s32.totalorder %s344, %s345
    %p354 = scmp.eq.s32.totalorder %s35, 0
    %p355 = por %p353, %p354
    %p356 = scmp.ne.s32.totalorder %s344, %s345
    %p357 = scmp.eq.s32.totalorder %s36, 1
    %p358 = por %p356, %p357
    %p360 = scmp.ne.s32.totalorder %s345, %s359
    %p361 = scmp.eq.s32.totalorder %s36, 0
    %p362 = por %p360, %p361
    %s364 = sadd.s32 %s363, 1
    %p367 = scmp.eq.s32.totalorder %s30, 1
    %p368 = scmp.ne.s32.totalorder %s363, %s365
    %p369 = scmp.eq.s32.totalorder %s30, 0
    %p370 = por %p368, %p369
    %p371 = scmp.ne.s32.totalorder %s363, %s365
    %p372 = scmp.eq.s32.totalorder %s35, 1
    %p373 = por %p371, %p372
    %p374 = scmp.ne.s32.totalorder %s365, %s366
    %p375 = scmp.eq.s32.totalorder %s35, 0
    %p376 = por %p374, %p375
    %p377 = scmp.ne.s32.totalorder %s365, %s366
    %p378 = scmp.eq.s32.totalorder %s36, 1
    %p379 = por %p377, %p378
    %p381 = scmp.ne.s32.totalorder %s366, %s380
    %p382 = scmp.eq.s32.totalorder %s36, 0
    %p383 = por %p381, %p382
    %s385 = sadd.s32 %s384, 1
    %p388 = scmp.eq.s32.totalorder %s30, 1
    %p389 = scmp.ne.s32.totalorder %s384, %s386
    %p390 = scmp.eq.s32.totalorder %s30, 0
    %p391 = por %p389, %p390
    %p392 = scmp.ne.s32.totalorder %s384, %s386
    %p393 = scmp.eq.s32.totalorder %s35, 1
    %p394 = por %p392, %p393
    %p395 = scmp.ne.s32.totalorder %s386, %s387
    %p396 = scmp.eq.s32.totalorder %s35, 0
    %p397 = por %p395, %p396
    %p398 = scmp.ne.s32.totalorder %s386, %s387
    %p399 = scmp.eq.s32.totalorder %s36, 1
    %p400 = por %p398, %p399
    %p402 = scmp.ne.s32.totalorder %s387, %s401
    %p403 = scmp.eq.s32.totalorder %s36, 0
    %p404 = por %p402, %p403
    %s406 = sadd.s32 %s405, 1
    %p409 = scmp.eq.s32.totalorder %s30, 1
    %p410 = scmp.ne.s32.totalorder %s405, %s407
    %p411 = scmp.eq.s32.totalorder %s30, 0
    %p412 = por %p410, %p411
    %p413 = scmp.ne.s32.totalorder %s405, %s407
    %p414 = scmp.eq.s32.totalorder %s35, 1
    %p415 = por %p413, %p414
    %p416 = scmp.ne.s32.totalorder %s407, %s408
    %p417 = scmp.eq.s32.totalorder %s35, 0
    %p418 = por %p416, %p417
    %p419 = scmp.ne.s32.totalorder %s407, %s408
    %p420 = scmp.eq.s32.totalorder %s36, 1
    %p421 = por %p419, %p420
    %p423 = scmp.ne.s32.totalorder %s408, %s422
    %p424 = scmp.eq.s32.totalorder %s36, 0
    %p425 = por %p423, %p424
    %s427 = sadd.s32 %s426, 1
    %p430 = scmp.eq.s32.totalorder %s30, 1
    %p431 = scmp.ne.s32.totalorder %s426, %s428
    %p432 = scmp.eq.s32.totalorder %s30, 0
    %p433 = por %p431, %p432
    %p434 = scmp.ne.s32.totalorder %s426, %s428
    %p435 = scmp.eq.s32.totalorder %s35, 1
    %p436 = por %p434, %p435
    %p437 = scmp.ne.s32.totalorder %s428, %s429
    %p438 = scmp.eq.s32.totalorder %s35, 0
    %p439 = por %p437, %p438
    %p440 = scmp.ne.s32.totalorder %s428, %s429
    %p441 = scmp.eq.s32.totalorder %s36, 1
    %p442 = por %p440, %p441
    %p444 = scmp.ne.s32.totalorder %s429, %s443
    %p445 = scmp.eq.s32.totalorder %s36, 0
    %p446 = por %p444, %p445
    %s448 = sadd.s32 %s447, 1
    %p451 = scmp.eq.s32.totalorder %s30, 1
    %p452 = scmp.ne.s32.totalorder %s447, %s449
    %p453 = scmp.eq.s32.totalorder %s30, 0
    %p454 = por %p452, %p453
    %p455 = scmp.ne.s32.totalorder %s447, %s449
    %p456 = scmp.eq.s32.totalorder %s35, 1
    %p457 = por %p455, %p456
    %p458 = scmp.ne.s32.totalorder %s449, %s450
    %p459 = scmp.eq.s32.totalorder %s35, 0
    %p460 = por %p458, %p459
    %p461 = scmp.ne.s32.totalorder %s449, %s450
    %p462 = scmp.eq.s32.totalorder %s36, 1
    %p463 = por %p461, %p462
    %p465 = scmp.ne.s32.totalorder %s450, %s464
    %p466 = scmp.eq.s32.totalorder %s36, 0
    %p467 = por %p465, %p466
    %s469 = sadd.s32 %s468, 1
    %p472 = scmp.eq.s32.totalorder %s30, 1
    %p473 = scmp.ne.s32.totalorder %s468, %s470
    %p474 = scmp.eq.s32.totalorder %s30, 0
    %p475 = por %p473, %p474
    %p476 = scmp.ne.s32.totalorder %s468, %s470
    %p477 = scmp.eq.s32.totalorder %s35, 1
    %p478 = por %p476, %p477
    %p479 = scmp.ne.s32.totalorder %s470, %s471
    %p480 = scmp.eq.s32.totalorder %s35, 0
    %p481 = por %p479, %p480
    %p482 = scmp.ne.s32.totalorder %s470, %s471
    %p483 = scmp.eq.s32.totalorder %s36, 1
    %p484 = por %p482, %p483
    %p486 = scmp.ne.s32.totalorder %s471, %s485
    %p487 = scmp.eq.s32.totalorder %s36, 0
    %p488 = por %p486, %p487
    %s490 = sadd.s32 %s489, 1
    %p493 = scmp.eq.s32.totalorder %s30, 1
    %p494 = scmp.ne.s32.totalorder %s489, %s491
    %p495 = scmp.eq.s32.totalorder %s30, 0
    %p496 = por %p494, %p495
    %p497 = scmp.ne.s32.totalorder %s489, %s491
    %p498 = scmp.eq.s32.totalorder %s35, 1
    %p499 = por %p497, %p498
    %p500 = scmp.ne.s32.totalorder %s491, %s492
    %p501 = scmp.eq.s32.totalorder %s35, 0
    %p502 = por %p500, %p501
    %p503 = scmp.ne.s32.totalorder %s491, %s492
    %p504 = scmp.eq.s32.totalorder %s36, 1
    %p505 = por %p503, %p504
    %p507 = scmp.ne.s32.totalorder %s492, %s506
    %p508 = scmp.eq.s32.totalorder %s36, 0
    %p509 = por %p507, %p508
    %s511 = sadd.s32 %s510, 1
    %p514 = scmp.eq.s32.totalorder %s30, 1
    %p515 = scmp.ne.s32.totalorder %s510, %s512
    %p516 = scmp.eq.s32.totalorder %s30, 0
    %p517 = por %p515, %p516
    %p518 = scmp.ne.s32.totalorder %s510, %s512
    %p519 = scmp.eq.s32.totalorder %s35, 1
    %p520 = por %p518, %p519
    %p521 = scmp.ne.s32.totalorder %s512, %s513
    %p522 = scmp.eq.s32.totalorder %s35, 0
    %p523 = por %p521, %p522
    %p524 = scmp.ne.s32.totalorder %s512, %s513
    %p525 = scmp.eq.s32.totalorder %s36, 1
    %p526 = por %p524, %p525
    %p528 = scmp.ne.s32.totalorder %s513, %s527
    %p529 = scmp.eq.s32.totalorder %s36, 0
    %p530 = por %p528, %p529
    %s532 = sadd.s32 %s531, 1
    %p535 = scmp.eq.s32.totalorder %s30, 1
    %p536 = scmp.ne.s32.totalorder %s531, %s533
    %p537 = scmp.eq.s32.totalorder %s30, 0
    %p538 = por %p536, %p537
    %p539 = scmp.ne.s32.totalorder %s531, %s533
    %p540 = scmp.eq.s32.totalorder %s35, 1
    %p541 = por %p539, %p540
    %p542 = scmp.ne.s32.totalorder %s533, %s534
    %p543 = scmp.eq.s32.totalorder %s35, 0
    %p544 = por %p542, %p543
    %p545 = scmp.ne.s32.totalorder %s533, %s534
    %p546 = scmp.eq.s32.totalorder %s36, 1
    %p547 = por %p545, %p546
    %p549 = scmp.ne.s32.totalorder %s534, %s548
    %p550 = scmp.eq.s32.totalorder %s36, 0
    %p551 = por %p549, %p550
    %s552 = ssub.s32 %s30, %s37
    %p553 = scmp.eq.s32.totalorder %s552, 0
    %s555 = sadd.s32 %s554, 1
    %s556 = scalar_select %p553, %s554, %s555
    %p559 = pneg %p553
    %p560 = scmp.eq.s32.totalorder %s30, 1
    %p561 = por %p559, %p560
    %p562 = scmp.ne.s32.totalorder %s554, %s557
    %p563 = scmp.eq.s32.totalorder %s30, 0
    %p564 = por %p562, %p563
    %p565 = scmp.ne.s32.totalorder %s554, %s557
    %p566 = scmp.eq.s32.totalorder %s35, 1
    %p567 = por %p565, %p566
    %p568 = scmp.ne.s32.totalorder %s557, %s558
    %p569 = scmp.eq.s32.totalorder %s35, 0
    %p570 = por %p568, %p569
    %p571 = scmp.ne.s32.totalorder %s557, %s558
    %p572 = scmp.eq.s32.totalorder %s36, 1
    %p573 = por %p571, %p572
    %p575 = scmp.ne.s32.totalorder %s558, %s574
    %p576 = scmp.eq.s32.totalorder %s36, 0
    %p577 = por %p575, %p576
    %p578 = scmp.le.s32.totalorder 1, %s30
    %p579 = scmp.lt.s32.totalorder %s30, 3
    %p580 = pnand %p578, %p579
    %p581 = pneg %p580
    // Predicated region
    $region9: #{bert_classification_forward.1} parent=5 // pred_check
      _
    $region10: #{bert_classification_forward.1} parent=5 // pred_check_branch
      %583 = sbr.rel (%p580) target = $region12
    $region11: #{bert_classification_forward.1} parent=5 // pred_region
      %s584 = ssub.s32 %s30, 1
      // Predicated region
      $region13: #{bert_classification_forward.1} parent=11 // pred_check
        %p585 = pneg %p103
      $region14: #{bert_classification_forward.1} parent=11 // pred_check_branch
        %587 = sbr.rel (%p585) target = $region16
      $region15: #{bert_classification_forward.1} parent=11 // pred_region
        _
      $region16: #{bert_classification_forward.1} parent=11 // pred_fallthru
        _
      // Predicated region
      $region17: #{bert_classification_forward.1} parent=11 // pred_check
        %p588 = pneg %p124
      $region18: #{bert_classification_forward.1} parent=11 // pred_check_branch
        %590 = sbr.rel (%p588) target = $region20
      $region19: #{bert_classification_forward.1} parent=11 // pred_region
        _
      $region20: #{bert_classification_forward.1} parent=11 // pred_fallthru
        _
      // Predicated region
      $region21: #{bert_classification_forward.1} parent=11 // pred_check
        %p591 = pneg %p145
      $region22: #{bert_classification_forward.1} parent=11 // pred_check_branch
        %593 = sbr.rel (%p591) target = $region24
      $region23: #{bert_classification_forward.1} parent=11 // pred_region
        _
      $region24: #{bert_classification_forward.1} parent=11 // pred_fallthru
        _
      // Predicated region
      $region25: #{bert_classification_forward.1} parent=11 // pred_check
        %p594 = pneg %p166
      $region26: #{bert_classification_forward.1} parent=11 // pred_check_branch
        %596 = sbr.rel (%p594) target = $region28
      $region27: #{bert_classification_forward.1} parent=11 // pred_region
        _
      $region28: #{bert_classification_forward.1} parent=11 // pred_fallthru
        _
      // Predicated region
      $region29: #{bert_classification_forward.1} parent=11 // pred_check
        %p597 = pneg %p187
      $region30: #{bert_classification_forward.1} parent=11 // pred_check_branch
        %599 = sbr.rel (%p597) target = $region32
      $region31: #{bert_classification_forward.1} parent=11 // pred_region
        _
      $region32: #{bert_classification_forward.1} parent=11 // pred_fallthru
        _
      // Predicated region
      $region33: #{bert_classification_forward.1} parent=11 // pred_check
        %p600 = pneg %p208
      $region34: #{bert_classification_forward.1} parent=11 // pred_check_branch
        %602 = sbr.rel (%p600) target = $region36
      $region35: #{bert_classification_forward.1} parent=11 // pred_region
        _
      $region36: #{bert_classification_forward.1} parent=11 // pred_fallthru
        _
      // Predicated region
      $region37: #{bert_classification_forward.1} parent=11 // pred_check
        %p603 = pneg %p229
      $region38: #{bert_classification_forward.1} parent=11 // pred_check_branch
        %605 = sbr.rel (%p603) target = $region40
      $region39: #{bert_classification_forward.1} parent=11 // pred_region
        _
      $region40: #{bert_classification_forward.1} parent=11 // pred_fallthru
        _
      // Predicated region
      $region41: #{bert_classification_forward.1} parent=11 // pred_check
        %p606 = pneg %p250
      $region42: #{bert_classification_forward.1} parent=11 // pred_check_branch
        %608 = sbr.rel (%p606) target = $region44
      $region43: #{bert_classification_forward.1} parent=11 // pred_region
        _
      $region44: #{bert_classification_forward.1} parent=11 // pred_fallthru
        _
      // Predicated region
      $region45: #{bert_classification_forward.1} parent=11 // pred_check
        %p609 = pneg %p271
      $region46: #{bert_classification_forward.1} parent=11 // pred_check_branch
        %611 = sbr.rel (%p609) target = $region48
      $region47: #{bert_classification_forward.1} parent=11 // pred_region
        _
      $region48: #{bert_classification_forward.1} parent=11 // pred_fallthru
        _
      // Predicated region
      $region49: #{bert_classification_forward.1} parent=11 // pred_check
        %p612 = pneg %p292
      $region50: #{bert_classification_forward.1} parent=11 // pred_check_branch
        %614 = sbr.rel (%p612) target = $region52
      $region51: #{bert_classification_forward.1} parent=11 // pred_region
        _
      $region52: #{bert_classification_forward.1} parent=11 // pred_fallthru
        _
      // Predicated region
      $region53: #{bert_classification_forward.1} parent=11 // pred_check
        %p615 = pneg %p313
      $region54: #{bert_classification_forward.1} parent=11 // pred_check_branch
        %617 = sbr.rel (%p615) target = $region56
      $region55: #{bert_classification_forward.1} parent=11 // pred_region
        _
      $region56: #{bert_classification_forward.1} parent=11 // pred_fallthru
        _
      // Predicated region
      $region57: #{bert_classification_forward.1} parent=11 // pred_check
        %p618 = pneg %p334
      $region58: #{bert_classification_forward.1} parent=11 // pred_check_branch
        %620 = sbr.rel (%p618) target = $region60
      $region59: #{bert_classification_forward.1} parent=11 // pred_region
        _
      $region60: #{bert_classification_forward.1} parent=11 // pred_fallthru
        _
      // Predicated region
      $region61: #{bert_classification_forward.1} parent=11 // pred_check
        %p621 = pneg %p355
      $region62: #{bert_classification_forward.1} parent=11 // pred_check_branch
        %623 = sbr.rel (%p621) target = $region64
      $region63: #{bert_classification_forward.1} parent=11 // pred_region
        _
      $region64: #{bert_classification_forward.1} parent=11 // pred_fallthru
        _
      // Predicated region
      $region65: #{bert_classification_forward.1} parent=11 // pred_check
        %p624 = pneg %p376
      $region66: #{bert_classification_forward.1} parent=11 // pred_check_branch
        %626 = sbr.rel (%p624) target = $region68
      $region67: #{bert_classification_forward.1} parent=11 // pred_region
        _
      $region68: #{bert_classification_forward.1} parent=11 // pred_fallthru
        _
      // Predicated region
      $region69: #{bert_classification_forward.1} parent=11 // pred_check
        %p627 = pneg %p397
      $region70: #{bert_classification_forward.1} parent=11 // pred_check_branch
        %629 = sbr.rel (%p627) target = $region72
      $region71: #{bert_classification_forward.1} parent=11 // pred_region
        _
      $region72: #{bert_classification_forward.1} parent=11 // pred_fallthru
        _
      // Predicated region
      $region73: #{bert_classification_forward.1} parent=11 // pred_check
        %p630 = pneg %p418
      $region74: #{bert_classification_forward.1} parent=11 // pred_check_branch
        %632 = sbr.rel (%p630) target = $region76
      $region75: #{bert_classification_forward.1} parent=11 // pred_region
        _
      $region76: #{bert_classification_forward.1} parent=11 // pred_fallthru
        _
      // Predicated region
      $region77: #{bert_classification_forward.1} parent=11 // pred_check
        %p633 = pneg %p439
      $region78: #{bert_classification_forward.1} parent=11 // pred_check_branch
        %635 = sbr.rel (%p633) target = $region80
      $region79: #{bert_classification_forward.1} parent=11 // pred_region
        _
      $region80: #{bert_classification_forward.1} parent=11 // pred_fallthru
        _
      // Predicated region
      $region81: #{bert_classification_forward.1} parent=11 // pred_check
        %p636 = pneg %p460
      $region82: #{bert_classification_forward.1} parent=11 // pred_check_branch
        %638 = sbr.rel (%p636) target = $region84
      $region83: #{bert_classification_forward.1} parent=11 // pred_region
        _
      $region84: #{bert_classification_forward.1} parent=11 // pred_fallthru
        _
      // Predicated region
      $region85: #{bert_classification_forward.1} parent=11 // pred_check
        %p639 = pneg %p481
      $region86: #{bert_classification_forward.1} parent=11 // pred_check_branch
        %641 = sbr.rel (%p639) target = $region88
      $region87: #{bert_classification_forward.1} parent=11 // pred_region
        _
      $region88: #{bert_classification_forward.1} parent=11 // pred_fallthru
        _
      // Predicated region
      $region89: #{bert_classification_forward.1} parent=11 // pred_check
        %p642 = pneg %p502
      $region90: #{bert_classification_forward.1} parent=11 // pred_check_branch
        %644 = sbr.rel (%p642) target = $region92
      $region91: #{bert_classification_forward.1} parent=11 // pred_region
        _
      $region92: #{bert_classification_forward.1} parent=11 // pred_fallthru
        _
      // Predicated region
      $region93: #{bert_classification_forward.1} parent=11 // pred_check
        %p645 = pneg %p523
      $region94: #{bert_classification_forward.1} parent=11 // pred_check_branch
        %647 = sbr.rel (%p645) target = $region96
      $region95: #{bert_classification_forward.1} parent=11 // pred_region
        _
      $region96: #{bert_classification_forward.1} parent=11 // pred_fallthru
        _
      // Predicated region
      $region97: #{bert_classification_forward.1} parent=11 // pred_check
        %p648 = pneg %p544
      $region98: #{bert_classification_forward.1} parent=11 // pred_check_branch
        %650 = sbr.rel (%p648) target = $region100
      $region99: #{bert_classification_forward.1} parent=11 // pred_region
        _
      $region100: #{bert_classification_forward.1} parent=11 // pred_fallthru
        _
    $region12: #{bert_classification_forward.1} parent=5 // pred_fallthru
      _
    %p651 = scmp.lt.s32.totalorder %s30, 2
    // Predicated region
    $region101: #{bert_classification_forward.1} parent=5 // pred_check
      %p652 = pneg %p651
    $region102: #{bert_classification_forward.1} parent=5 // pred_check_branch
      %654 = sbr.rel (%p652) target = $region104
    $region103: #{bert_classification_forward.1} parent=5 // pred_region
      // Predicated region
      $region105: #{bert_classification_forward.1} parent=103 // pred_check
        %p655 = pneg %p50
      $region106: #{bert_classification_forward.1} parent=103 // pred_check_branch
        %657 = sbr.rel (%p655) target = $region108
      $region107: #{bert_classification_forward.1} parent=103 // pred_region
        %p658 = scmp.lt.s32.totalorder %s30, 1
        %s659 = scalar_select %p658, %s30, 1
        %s660 = smul.addr %s659, 8
        %s661 = scalar_lea.vmem %s0, %s660
      $region108: #{bert_classification_forward.1} parent=103 // pred_fallthru
        _
      // Predicated region
      $region109: #{bert_classification_forward.1} parent=103 // pred_check
        %p662 = pneg %p76
      $region110: #{bert_classification_forward.1} parent=103 // pred_check_branch
        %664 = sbr.rel (%p662) target = $region112
      $region111: #{bert_classification_forward.1} parent=103 // pred_region
        %p665 = scmp.lt.s32.totalorder %s30, 1
        %s666 = scalar_select %p665, %s30, 1
        %s667 = scalar_lea.vmem %s1, %s666
      $region112: #{bert_classification_forward.1} parent=103 // pred_fallthru
        _
    $region104: #{bert_classification_forward.1} parent=5 // pred_fallthru
      _
    %p668 = scmp.le.s32.totalorder 1, %s30
    %p669 = scmp.lt.s32.totalorder %s30, 3
    %p670 = pnand %p668, %p669
    %p671 = pneg %p670
    // Predicated region
    $region113: #{bert_classification_forward.1} parent=5 // pred_check
      _
    $region114: #{bert_classification_forward.1} parent=5 // pred_check_branch
      %673 = sbr.rel (%p670) target = $region116
    $region115: #{bert_classification_forward.1} parent=5 // pred_region
      %s674 = ssub.s32 %s30, 1
      %p675 = scmp.lt.s32.totalorder %s35, 1
      %s676 = scalar_select %p675, %s35, 1
      %s677 = smul.addr %s676, 8
      %s678 = scalar_lea.vmem %s0, %s677
      %p679 = pneg %p56
      %p680 = pneg %p53
      %p681 = scmp.lt.s32.totalorder %s35, 1
      %s682 = scalar_select %p681, %s35, 1
      %s683 = scalar_lea.vmem %s1, %s682
      %p684 = pneg %p82
      %p685 = pneg %p79
      %p686 = pneg %p103
      %p687 = pneg %p100
      %p688 = pneg %p124
      %p689 = pneg %p121
      %p690 = pneg %p145
      %p691 = pneg %p142
      %p692 = pneg %p166
      %p693 = pneg %p163
      %p694 = pneg %p187
      %p695 = pneg %p184
      %p696 = pneg %p208
      %p697 = pneg %p205
      %p698 = pneg %p229
      %p699 = pneg %p226
      %p700 = pneg %p250
      %p701 = pneg %p247
      %p702 = pneg %p271
      %p703 = pneg %p268
      %p704 = pneg %p292
      %p705 = pneg %p289
      %p706 = pneg %p313
      %p707 = pneg %p310
      %p708 = pneg %p334
      %p709 = pneg %p331
      %p710 = pneg %p355
      %p711 = pneg %p352
      %p712 = pneg %p376
      %p713 = pneg %p373
      %p714 = pneg %p397
      %p715 = pneg %p394
      %p716 = pneg %p418
      %p717 = pneg %p415
      %p718 = pneg %p439
      %p719 = pneg %p436
      %p720 = pneg %p460
      %p721 = pneg %p457
      %p722 = pneg %p481
      %p723 = pneg %p478
      %p724 = pneg %p502
      %p725 = pneg %p499
      %p726 = pneg %p523
      %p727 = pneg %p520
      %p728 = pneg %p544
      %p729 = pneg %p541
      %p730 = pneg %p570
      %p731 = pneg %p567
      %p732 = scmp.lt.s32.totalorder %s35, 1
      %s733 = scalar_select %p732, %s35, 1
      %s734 = smul.addr %s733, 8
      %s735 = scalar_lea.vmem %s24, %s734
      %p736 = scmp.lt.s32.totalorder %s35, 1
      %s737 = scalar_select %p736, %s35, 1
      %s738 = smul.addr %s737, 8
      %s739 = scalar_lea.vmem %s0, %s738
      %p740 = scmp.lt.s32.totalorder %s35, 1
      %s741 = scalar_select %p740, %s35, 1
      %s742 = scalar_lea.vmem %s1, %s741
      %p743 = scmp.lt.s32.totalorder %s35, 1
      %s744 = scalar_select %p743, %s35, 1
      %s745 = smul.addr %s744, 8
      %s746 = scalar_lea.vmem %s24, %s745
      %v748 = vld [vmem:[%s739] sm:$0xff]
      %v749 = vld [vmem:[%s2] sm:$0x1]
      %v750 = vld [vmem:[%s3] sm:$0x1]
      %vm751 = vcmask 261120
      %v752 = vsel %vm751, %v748, 0.0
      %753 = vadd.xlane.f32.xlu0 %v752
      %v754 = vpop.xlane.xlu0 %753
      %v755 = vrcp.pop 32.0
      %v756 = vmul.f32 %v754, %v755
      %v757 = vsub.f32 %v748, %v756
      %v758 = vmul.f32 %v757, %v757
      %v759 = vsel %vm751, %v758, 0.0
      %760 = vadd.xlane.f32.xlu0 %v759
      %v761 = vpop.xlane.xlu0 %760
      %v762 = vmul.f32 %v761, %v755
      %v763 = vadd.f32 %v762, 1e-12
      %v764 = vrsqrt.pop %v763
      %v765 = vmul.f32 %v757, %v764
      %v767 = vlaneseq
      %v768 = vshrl.u32 %v767, 7
      %v769 = vsub.s32 0, %v768
      %v770 = vrot.slane %v749, %v769
      %v772 = vmul.f32 %v765, %v770
      %v774 = vlaneseq
      %v775 = vshrl.u32 %v774, 7
      %v776 = vsub.s32 0, %v775
      %v777 = vrot.slane %v750, %v776
      %v779 = vadd.f32 %v772, %v777
      %v780 = vld [vmem:[%s742] sm:$0x1]
      %v782 = vlaneseq
      %v783 = vshrl.u32 %v782, 7
      %v784 = vsub.s32 0, %v783
      %v785 = vrot.slane %v780, %v784
      %v787 = vpack.c.bf16 %v779, %v779
      %v788 = vld [vmem:[%s4] sm:$0xf]
      %v789 = vld [vmem:[%s4 + $0x4] sm:$0xf]
      %v790 = vld [vmem:[%s4 + $0x8] sm:$0xf]
      %v791 = vld [vmem:[%s4 + $0xc] sm:$0xf]
      %v792 = vld [vmem:[%s4 + $0x10] sm:$0xf]
      %v793 = vld [vmem:[%s4 + $0x14] sm:$0xf]
      %v794 = vld [vmem:[%s4 + $0x18] sm:$0xf]
      %v795 = vld [vmem:[%s4 + $0x1c] sm:$0xf]
      %v796 = vld [vmem:[%s4 + $0x20] sm:$0xf]
      %v797 = vld [vmem:[%s4 + $0x24] sm:$0xf]
      %v798 = vld [vmem:[%s4 + $0x28] sm:$0xf]
      %v799 = vld [vmem:[%s4 + $0x2c] sm:$0xf]
      %v800 = vld [vmem:[%s4 + $0x30] sm:$0xf]
      %v801 = vld [vmem:[%s4 + $0x34] sm:$0xf]
      %v802 = vld [vmem:[%s4 + $0x38] sm:$0xf]
      %v803 = vld [vmem:[%s4 + $0x3c] sm:$0xf]
      %v804 = vld [vmem:[%s7] sm:$0x1]
      %v805 = vld [vmem:[%s7 + $0x1] sm:$0x1]
      %v806 = vld [vmem:[%s7 + $0x2] sm:$0x1]
      %v807 = vld [vmem:[%s7 + $0x3] sm:$0x1]
      %v812 = vlaneseq
      %v813 = vshrl.u32 %v812, 7
      %v814 = vsub.s32 0, %v813
      %v815 = vrot.slane %v804, %v814
      %v816 = vlaneseq
      %v817 = vshrl.u32 %v816, 7
      %v818 = vsub.s32 0, %v817
      %v819 = vrot.slane %v805, %v818
      %v820 = vlaneseq
      %v821 = vshrl.u32 %v820, 7
      %v822 = vsub.s32 0, %v821
      %v823 = vrot.slane %v806, %v822
      %v824 = vlaneseq
      %v825 = vshrl.u32 %v824, 7
      %v826 = vsub.s32 0, %v825
      %v827 = vrot.slane %v807, %v826
      %v836 = vunpack.c.l.b16 %v788
      %v837 = vunpack.c.l.b16 %v789
      %v838 = vunpack.c.l.b16 %v790
      %v839 = vunpack.c.l.b16 %v791
      %v840 = vpack.c.b16 %v837, %v836
      %v841 = vpack.c.b16 %v839, %v838
      %v845 = vsel %vm751, %v787, 0
      %847 = vmatprep.subr.bf16.mxu0 0
      %848 = vmatpush1.bf16.msra.mxu0 %v840
      %849 = vmatprep.subr.bf16.mxu0 0
      %850 = vmatpush1.bf16.msra.mxu0 %v841
      %851 = vmatprep.subr.bf16.mxu0 0
      %852 = vmatpush1.bf16.msra.mxu0 0
      %853 = vmatprep.subr.bf16.mxu0 0
      %854 = vmatpush1.bf16.msra.mxu0 0
      %855 = vmatprep.subr.bf16.mxu0 0
      %856 = vmatpush1.bf16.msra.mxu0 0
      %857 = vmatprep.subr.bf16.mxu0 0
      %858 = vmatpush1.bf16.msra.mxu0 0
      %859 = vmatprep.subr.bf16.mxu0 0
      %860 = vmatpush1.bf16.msra.mxu0 0
      %861 = vmatprep.subr.bf16.mxu0 0
      %862 = vmatpush1.bf16.msra.mxu0 0
      %863 = vmatprep.subr.bf16.mxu0 0
      %864 = vmatpush1.bf16.msra.mxu0 0
      %865 = vmatprep.subr.bf16.mxu0 0
      %866 = vmatpush1.bf16.msra.mxu0 0
      %867 = vmatprep.subr.bf16.mxu0 0
      %868 = vmatpush1.bf16.msra.mxu0 0
      %869 = vmatprep.subr.bf16.mxu0 0
      %870 = vmatpush1.bf16.msra.mxu0 0
      %871 = vmatprep.subr.bf16.mxu0 0
      %872 = vmatpush1.bf16.msra.mxu0 0
      %873 = vmatprep.subr.bf16.mxu0 0
      %874 = vmatpush1.bf16.msra.mxu0 0
      %875 = vmatprep.subr.bf16.mxu0 0
      %876 = vmatpush1.bf16.msra.mxu0 0
      %877 = vmatprep.subr.bf16.mxu0 0
      %878 = vmatpush1.bf16.msra.mxu0 0
      %879 = vmatprep.mubr.bf16.mxu0 0
      %880 = vmatmul.mubr.bf16.gmra.mrb[0].mxu0 %v845
      %v881 = vpop.f32.mrb[0].mxu0
      %v882 = vadd.f32 %v815, %v881
      %v883 = vpop.f32.mrb[0].mxu0
      %v884 = vpop.f32.mrb[0].mxu0
      %v885 = vpop.f32.mrb[0].mxu0
      %886 = vdwg.mxu0
      %v891 = vunpack.c.l.b16 %v792
      %v892 = vunpack.c.l.b16 %v793
      %v893 = vunpack.c.l.b16 %v794
      %v894 = vunpack.c.l.b16 %v795
      %v895 = vpack.c.b16 %v892, %v891
      %v896 = vpack.c.b16 %v894, %v893
      %899 = vmatprep.subr.bf16.mxu0 0
      %900 = vmatpush1.bf16.msra.mxu0 %v895
      %901 = vmatprep.subr.bf16.mxu0 0
      %902 = vmatpush1.bf16.msra.mxu0 %v896
      %903 = vmatprep.subr.bf16.mxu0 0
      %904 = vmatpush1.bf16.msra.mxu0 0
      %905 = vmatprep.subr.bf16.mxu0 0
      %906 = vmatpush1.bf16.msra.mxu0 0
      %907 = vmatprep.subr.bf16.mxu0 0
      %908 = vmatpush1.bf16.msra.mxu0 0
      %909 = vmatprep.subr.bf16.mxu0 0
      %910 = vmatpush1.bf16.msra.mxu0 0
      %911 = vmatprep.subr.bf16.mxu0 0
      %912 = vmatpush1.bf16.msra.mxu0 0
      %913 = vmatprep.subr.bf16.mxu0 0
      %914 = vmatpush1.bf16.msra.mxu0 0
      %915 = vmatprep.subr.bf16.mxu0 0
      %916 = vmatpush1.bf16.msra.mxu0 0
      %917 = vmatprep.subr.bf16.mxu0 0
      %918 = vmatpush1.bf16.msra.mxu0 0
      %919 = vmatprep.subr.bf16.mxu0 0
      %920 = vmatpush1.bf16.msra.mxu0 0
      %921 = vmatprep.subr.bf16.mxu0 0
      %922 = vmatpush1.bf16.msra.mxu0 0
      %923 = vmatprep.subr.bf16.mxu0 0
      %924 = vmatpush1.bf16.msra.mxu0 0
      %925 = vmatprep.subr.bf16.mxu0 0
      %926 = vmatpush1.bf16.msra.mxu0 0
      %927 = vmatprep.subr.bf16.mxu0 0
      %928 = vmatpush1.bf16.msra.mxu0 0
      %929 = vmatprep.subr.bf16.mxu0 0
      %930 = vmatpush1.bf16.msra.mxu0 0
      %931 = vmatprep.mubr.bf16.mxu0 0
      %932 = vmatmul.mubr.bf16.gmra.mrb[0].mxu0 %v845
      %v933 = vpop.f32.mrb[0].mxu0
      %v934 = vadd.f32 %v819, %v933
      %v935 = vpop.f32.mrb[0].mxu0
      %v936 = vpop.f32.mrb[0].mxu0
      %v937 = vpop.f32.mrb[0].mxu0
      %938 = vdwg.mxu0
      %v943 = vunpack.c.l.b16 %v796
      %v944 = vunpack.c.l.b16 %v797
      %v945 = vunpack.c.l.b16 %v798
      %v946 = vunpack.c.l.b16 %v799
      %v947 = vpack.c.b16 %v944, %v943
      %v948 = vpack.c.b16 %v946, %v945
      %951 = vmatprep.subr.bf16.mxu0 0
      %952 = vmatpush1.bf16.msra.mxu0 %v947
      %953 = vmatprep.subr.bf16.mxu0 0
      %954 = vmatpush1.bf16.msra.mxu0 %v948
      %955 = vmatprep.subr.bf16.mxu0 0
      %956 = vmatpush1.bf16.msra.mxu0 0
      %957 = vmatprep.subr.bf16.mxu0 0
      %958 = vmatpush1.bf16.msra.mxu0 0
      %959 = vmatprep.subr.bf16.mxu0 0
      %960 = vmatpush1.bf16.msra.mxu0 0
      %961 = vmatprep.subr.bf16.mxu0 0
      %962 = vmatpush1.bf16.msra.mxu0 0
      %963 = vmatprep.subr.bf16.mxu0 0
      %964 = vmatpush1.bf16.msra.mxu0 0
      %965 = vmatprep.subr.bf16.mxu0 0
      %966 = vmatpush1.bf16.msra.mxu0 0
      %967 = vmatprep.subr.bf16.mxu0 0
      %968 = vmatpush1.bf16.msra.mxu0 0
      %969 = vmatprep.subr.bf16.mxu0 0
      %970 = vmatpush1.bf16.msra.mxu0 0
      %971 = vmatprep.subr.bf16.mxu0 0
      %972 = vmatpush1.bf16.msra.mxu0 0
      %973 = vmatprep.subr.bf16.mxu0 0
      %974 = vmatpush1.bf16.msra.mxu0 0
      %975 = vmatprep.subr.bf16.mxu0 0
      %976 = vmatpush1.bf16.msra.mxu0 0
      %977 = vmatprep.subr.bf16.mxu0 0
      %978 = vmatpush1.bf16.msra.mxu0 0
      %979 = vmatprep.subr.bf16.mxu0 0
      %980 = vmatpush1.bf16.msra.mxu0 0
      %981 = vmatprep.subr.bf16.mxu0 0
      %982 = vmatpush1.bf16.msra.mxu0 0
      %983 = vmatprep.mubr.bf16.mxu0 0
      %984 = vmatmul.mubr.bf16.gmra.mrb[0].mxu0 %v845
      %v985 = vpop.f32.mrb[0].mxu0
      %v986 = vadd.f32 %v823, %v985
      %v987 = vpop.f32.mrb[0].mxu0
      %v988 = vpop.f32.mrb[0].mxu0
      %v989 = vpop.f32.mrb[0].mxu0
      %990 = vdwg.mxu0
      %v995 = vunpack.c.l.b16 %v800
      %v996 = vunpack.c.l.b16 %v801
      %v997 = vunpack.c.l.b16 %v802
      %v998 = vunpack.c.l.b16 %v803
      %v999 = vpack.c.b16 %v996, %v995
      %v1000 = vpack.c.b16 %v998, %v997
      %1003 = vmatprep.subr.bf16.mxu0 0
      %1004 = vmatpush1.bf16.msra.mxu0 %v999
      %1005 = vmatprep.subr.bf16.mxu0 0
      %1006 = vmatpush1.bf16.msra.mxu0 %v1000
      %1007 = vmatprep.subr.bf16.mxu0 0
      %1008 = vmatpush1.bf16.msra.mxu0 0
      %1009 = vmatprep.subr.bf16.mxu0 0
      %1010 = vmatpush1.bf16.msra.mxu0 0
      %1011 = vmatprep.subr.bf16.mxu0 0
      %1012 = vmatpush1.bf16.msra.mxu0 0
      %1013 = vmatprep.subr.bf16.mxu0 0
      %1014 = vmatpush1.bf16.msra.mxu0 0
      %1015 = vmatprep.subr.bf16.mxu0 0
      %1016 = vmatpush1.bf16.msra.mxu0 0
      %1017 = vmatprep.subr.bf16.mxu0 0
      %1018 = vmatpush1.bf16.msra.mxu0 0
      %1019 = vmatprep.subr.bf16.mxu0 0
      %1020 = vmatpush1.bf16.msra.mxu0 0
      %1021 = vmatprep.subr.bf16.mxu0 0
      %1022 = vmatpush1.bf16.msra.mxu0 0
      %1023 = vmatprep.subr.bf16.mxu0 0
      %1024 = vmatpush1.bf16.msra.mxu0 0
      %1025 = vmatprep.subr.bf16.mxu0 0
      %1026 = vmatpush1.bf16.msra.mxu0 0
      %1027 = vmatprep.subr.bf16.mxu0 0
      %1028 = vmatpush1.bf16.msra.mxu0 0
      %1029 = vmatprep.subr.bf16.mxu0 0
      %1030 = vmatpush1.bf16.msra.mxu0 0
      %1031 = vmatprep.subr.bf16.mxu0 0
      %1032 = vmatpush1.bf16.msra.mxu0 0
      %1033 = vmatprep.subr.bf16.mxu0 0
      %1034 = vmatpush1.bf16.msra.mxu0 0
      %1035 = vmatprep.mubr.bf16.mxu0 0
      %1036 = vmatmul.mubr.bf16.gmra.mrb[0].mxu0 %v845
      %v1037 = vpop.f32.mrb[0].mxu0
      %v1038 = vadd.f32 %v827, %v1037
      %v1039 = vpop.f32.mrb[0].mxu0
      %v1040 = vpop.f32.mrb[0].mxu0
      %v1041 = vpop.f32.mrb[0].mxu0
      %1042 = vdwg.mxu0
      %v1043 = vld [vmem:[%s5] sm:$0xf]
      %v1044 = vld [vmem:[%s5 + $0x4] sm:$0xf]
      %v1045 = vld [vmem:[%s5 + $0x8] sm:$0xf]
      %v1046 = vld [vmem:[%s5 + $0xc] sm:$0xf]
      %v1047 = vld [vmem:[%s5 + $0x10] sm:$0xf]
      %v1048 = vld [vmem:[%s5 + $0x14] sm:$0xf]
      %v1049 = vld [vmem:[%s5 + $0x18] sm:$0xf]
      %v1050 = vld [vmem:[%s5 + $0x1c] sm:$0xf]
      %v1051 = vld [vmem:[%s5 + $0x20] sm:$0xf]
      %v1052 = vld [vmem:[%s5 + $0x24] sm:$0xf]
      %v1053 = vld [vmem:[%s5 + $0x28] sm:$0xf]
      %v1054 = vld [vmem:[%s5 + $0x2c] sm:$0xf]
      %v1055 = vld [vmem:[%s5 + $0x30] sm:$0xf]
      %v1056 = vld [vmem:[%s5 + $0x34] sm:$0xf]
      %v1057 = vld [vmem:[%s5 + $0x38] sm:$0xf]
      %v1058 = vld [vmem:[%s5 + $0x3c] sm:$0xf]
      %v1059 = vld [vmem:[%s8] sm:$0x1]
      %v1060 = vld [vmem:[%s8 + $0x1] sm:$0x1]
      %v1061 = vld [vmem:[%s8 + $0x2] sm:$0x1]
      %v1062 = vld [vmem:[%s8 + $0x3] sm:$0x1]
      %v1067 = vlaneseq
      %v1068 = vshrl.u32 %v1067, 7
      %v1069 = vsub.s32 0, %v1068
      %v1070 = vrot.slane %v1059, %v1069
      %v1071 = vlaneseq
      %v1072 = vshrl.u32 %v1071, 7
      %v1073 = vsub.s32 0, %v1072
      %v1074 = vrot.slane %v1060, %v1073
      %v1075 = vlaneseq
      %v1076 = vshrl.u32 %v1075, 7
      %v1077 = vsub.s32 0, %v1076
      %v1078 = vrot.slane %v1061, %v1077
      %v1079 = vlaneseq
      %v1080 = vshrl.u32 %v1079, 7
      %v1081 = vsub.s32 0, %v1080
      %v1082 = vrot.slane %v1062, %v1081
      %v1091 = vunpack.c.l.b16 %v1043
      %v1092 = vunpack.c.l.b16 %v1044
      %v1093 = vunpack.c.l.b16 %v1045
      %v1094 = vunpack.c.l.b16 %v1046
      %v1095 = vpack.c.b16 %v1092, %v1091
      %v1096 = vpack.c.b16 %v1094, %v1093
      %1099 = vmatprep.subr.bf16.mxu0 0
      %1100 = vmatpush1.bf16.msra.mxu0 %v1095
      %1101 = vmatprep.subr.bf16.mxu0 0
      %1102 = vmatpush1.bf16.msra.mxu0 %v1096
      %1103 = vmatprep.subr.bf16.mxu0 0
      %1104 = vmatpush1.bf16.msra.mxu0 0
      %1105 = vmatprep.subr.bf16.mxu0 0
      %1106 = vmatpush1.bf16.msra.mxu0 0
      %1107 = vmatprep.subr.bf16.mxu0 0
      %1108 = vmatpush1.bf16.msra.mxu0 0
      %1109 = vmatprep.subr.bf16.mxu0 0
      %1110 = vmatpush1.bf16.msra.mxu0 0
      %1111 = vmatprep.subr.bf16.mxu0 0
      %1112 = vmatpush1.bf16.msra.mxu0 0
      %1113 = vmatprep.subr.bf16.mxu0 0
      %1114 = vmatpush1.bf16.msra.mxu0 0
      %1115 = vmatprep.subr.bf16.mxu0 0
      %1116 = vmatpush1.bf16.msra.mxu0 0
      %1117 = vmatprep.subr.bf16.mxu0 0
      %1118 = vmatpush1.bf16.msra.mxu0 0
      %1119 = vmatprep.subr.bf16.mxu0 0
      %1120 = vmatpush1.bf16.msra.mxu0 0
      %1121 = vmatprep.subr.bf16.mxu0 0
      %1122 = vmatpush1.bf16.msra.mxu0 0
      %1123 = vmatprep.subr.bf16.mxu0 0
      %1124 = vmatpush1.bf16.msra.mxu0 0
      %1125 = vmatprep.subr.bf16.mxu0 0
      %1126 = vmatpush1.bf16.msra.mxu0 0
      %1127 = vmatprep.subr.bf16.mxu0 0
      %1128 = vmatpush1.bf16.msra.mxu0 0
      %1129 = vmatprep.subr.bf16.mxu0 0
      %1130 = vmatpush1.bf16.msra.mxu0 0
      %1131 = vmatprep.mubr.bf16.mxu0 0
      %1132 = vmatmul.mubr.bf16.gmra.mrb[0].mxu0 %v845
      %v1133 = vpop.f32.mrb[0].mxu0
      %v1134 = vadd.f32 %v1070, %v1133
      %v1135 = vpop.f32.mrb[0].mxu0
      %v1136 = vpop.f32.mrb[0].mxu0
      %v1137 = vpop.f32.mrb[0].mxu0
      %1138 = vdwg.mxu0
      %v1143 = vunpack.c.l.b16 %v1047
      %v1144 = vunpack.c.l.b16 %v1048
      %v1145 = vunpack.c.l.b16 %v1049
      %v1146 = vunpack.c.l.b16 %v1050
      %v1147 = vpack.c.b16 %v1144, %v1143
      %v1148 = vpack.c.b16 %v1146, %v1145
      %1151 = vmatprep.subr.bf16.mxu0 0
      %1152 = vmatpush1.bf16.msra.mxu0 %v1147
      %1153 = vmatprep.subr.bf16.mxu0 0
      %1154 = vmatpush1.bf16.msra.mxu0 %v1148
      %1155 = vmatprep.subr.bf16.mxu0 0
      %1156 = vmatpush1.bf16.msra.mxu0 0
      %1157 = vmatprep.subr.bf16.mxu0 0
      %1158 = vmatpush1.bf16.msra.mxu0 0
      %1159 = vmatprep.subr.bf16.mxu0 0
      %1160 = vmatpush1.bf16.msra.mxu0 0
      %1161 = vmatprep.subr.bf16.mxu0 0
      %1162 = vmatpush1.bf16.msra.mxu0 0
      %1163 = vmatprep.subr.bf16.mxu0 0
      %1164 = vmatpush1.bf16.msra.mxu0 0
      %1165 = vmatprep.subr.bf16.mxu0 0
      %1166 = vmatpush1.bf16.msra.mxu0 0
      %1167 = vmatprep.subr.bf16.mxu0 0
      %1168 = vmatpush1.bf16.msra.mxu0 0
      %1169 = vmatprep.subr.bf16.mxu0 0
      %1170 = vmatpush1.bf16.msra.mxu0 0
      %1171 = vmatprep.subr.bf16.mxu0 0
      %1172 = vmatpush1.bf16.msra.mxu0 0
      %1173 = vmatprep.subr.bf16.mxu0 0
      %1174 = vmatpush1.bf16.msra.mxu0 0
      %1175 = vmatprep.subr.bf16.mxu0 0
      %1176 = vmatpush1.bf16.msra.mxu0 0
      %1177 = vmatprep.subr.bf16.mxu0 0
      %1178 = vmatpush1.bf16.msra.mxu0 0
      %1179 = vmatprep.subr.bf16.mxu0 0
      %1180 = vmatpush1.bf16.msra.mxu0 0
      %1181 = vmatprep.subr.bf16.mxu0 0
      %1182 = vmatpush1.bf16.msra.mxu0 0
      %1183 = vmatprep.mubr.bf16.mxu0 0
      %1184 = vmatmul.mubr.bf16.gmra.mrb[0].mxu0 %v845
      %v1185 = vpop.f32.mrb[0].mxu0
      %v1186 = vadd.f32 %v1074, %v1185
      %v1187 = vpop.f32.mrb[0].mxu0
      %v1188 = vpop.f32.mrb[0].mxu0
      %v1189 = vpop.f32.mrb[0].mxu0
      %1190 = vdwg.mxu0
      %v1195 = vunpack.c.l.b16 %v1051
      %v1196 = vunpack.c.l.b16 %v1052
      %v1197 = vunpack.c.l.b16 %v1053
      %v1198 = vunpack.c.l.b16 %v1054
      %v1199 = vpack.c.b16 %v1196, %v1195
      %v1200 = vpack.c.b16 %v1198, %v1197
      %1203 = vmatprep.subr.bf16.mxu0 0
      %1204 = vmatpush1.bf16.msra.mxu0 %v1199
      %1205 = vmatprep.subr.bf16.mxu0 0
      %1206 = vmatpush1.bf16.msra.mxu0 %v1200
      %1207 = vmatprep.subr.bf16.mxu0 0
      %1208 = vmatpush1.bf16.msra.mxu0 0
      %1209 = vmatprep.subr.bf16.mxu0 0
      %1210 = vmatpush1.bf16.msra.mxu0 0
      %1211 = vmatprep.subr.bf16.mxu0 0
      %1212 = vmatpush1.bf16.msra.mxu0 0
      %1213 = vmatprep.subr.bf16.mxu0 0
      %1214 = vmatpush1.bf16.msra.mxu0 0
      %1215 = vmatprep.subr.bf16.mxu0 0
      %1216 = vmatpush1.bf16.msra.mxu0 0
      %1217 = vmatprep.subr.bf16.mxu0 0
      %1218 = vmatpush1.bf16.msra.mxu0 0
      %1219 = vmatprep.subr.bf16.mxu0 0
      %1220 = vmatpush1.bf16.msra.mxu0 0
      %1221 = vmatprep.subr.bf16.mxu0 0
      %1222 = vmatpush1.bf16.msra.mxu0 0
      %1223 = vmatprep.subr.bf16.mxu0 0
      %1224 = vmatpush1.bf16.msra.mxu0 0
      %1225 = vmatprep.subr.bf16.mxu0 0
      %1226 = vmatpush1.bf16.msra.mxu0 0
      %1227 = vmatprep.subr.bf16.mxu0 0
      %1228 = vmatpush1.bf16.msra.mxu0 0
      %1229 = vmatprep.subr.bf16.mxu0 0
      %1230 = vmatpush1.bf16.msra.mxu0 0
      %1231 = vmatprep.subr.bf16.mxu0 0
      %1232 = vmatpush1.bf16.msra.mxu0 0
      %1233 = vmatprep.subr.bf16.mxu0 0
      %1234 = vmatpush1.bf16.msra.mxu0 0
      %1235 = vmatprep.mubr.bf16.mxu0 0
      %1236 = vmatmul.mubr.bf16.gmra.mrb[0].mxu0 %v845
      %v1237 = vpop.f32.mrb[0].mxu0
      %v1238 = vadd.f32 %v1078, %v1237
      %v1239 = vpop.f32.mrb[0].mxu0
      %v1240 = vpop.f32.mrb[0].mxu0
      %v1241 = vpop.f32.mrb[0].mxu0
      %1242 = vdwg.mxu0
      %v1247 = vunpack.c.l.b16 %v1055
      %v1248 = vunpack.c.l.b16 %v1056
      %v1249 = vunpack.c.l.b16 %v1057
      %v1250 = vunpack.c.l.b16 %v1058
      %v1251 = vpack.c.b16 %v1248, %v1247
      %v1252 = vpack.c.b16 %v1250, %v1249
      %1255 = vmatprep.subr.bf16.mxu0 0
      %1256 = vmatpush1.bf16.msra.mxu0 %v1251
      %1257 = vmatprep.subr.bf16.mxu0 0
      %1258 = vmatpush1.bf16.msra.mxu0 %v1252
      %1259 = vmatprep.subr.bf16.mxu0 0
      %1260 = vmatpush1.bf16.msra.mxu0 0
      %1261 = vmatprep.subr.bf16.mxu0 0
      %1262 = vmatpush1.bf16.msra.mxu0 0
      %1263 = vmatprep.subr.bf16.mxu0 0
      %1264 = vmatpush1.bf16.msra.mxu0 0
      %1265 = vmatprep.subr.bf16.mxu0 0
      %1266 = vmatpush1.bf16.msra.mxu0 0
      %1267 = vmatprep.subr.bf16.mxu0 0
      %1268 = vmatpush1.bf16.msra.mxu0 0
      %1269 = vmatprep.subr.bf16.mxu0 0
      %1270 = vmatpush1.bf16.msra.mxu0 0
      %1271 = vmatprep.subr.bf16.mxu0 0
      %1272 = vmatpush1.bf16.msra.mxu0 0
      %1273 = vmatprep.subr.bf16.mxu0 0
      %1274 = vmatpush1.bf16.msra.mxu0 0
      %1275 = vmatprep.subr.bf16.mxu0 0
      %1276 = vmatpush1.bf16.msra.mxu0 0
      %1277 = vmatprep.subr.bf16.mxu0 0
      %1278 = vmatpush1.bf16.msra.mxu0 0
      %1279 = vmatprep.subr.bf16.mxu0 0
      %1280 = vmatpush1.bf16.msra.mxu0 0
      %1281 = vmatprep.subr.bf16.mxu0 0
      %1282 = vmatpush1.bf16.msra.mxu0 0
      %1283 = vmatprep.subr.bf16.mxu0 0
      %1284 = vmatpush1.bf16.msra.mxu0 0
      %1285 = vmatprep.subr.bf16.mxu0 0
      %1286 = vmatpush1.bf16.msra.mxu0 0
      %1287 = vmatprep.mubr.bf16.mxu0 0
      %1288 = vmatmul.mubr.bf16.gmra.mrb[0].mxu0 %v845
      %v1289 = vpop.f32.mrb[0].mxu0
      %v1290 = vadd.f32 %v1082, %v1289
      %v1291 = vpop.f32.mrb[0].mxu0
      %v1292 = vpop.f32.mrb[0].mxu0
      %v1293 = vpop.f32.mrb[0].mxu0
      %1294 = vdwg.mxu0
      %v1295 = vld [vmem:[%s6] sm:$0xf]
      %v1296 = vld [vmem:[%s6 + $0x4] sm:$0xf]
      %v1297 = vld [vmem:[%s6 + $0x8] sm:$0xf]
      %v1298 = vld [vmem:[%s6 + $0xc] sm:$0xf]
      %v1299 = vld [vmem:[%s6 + $0x10] sm:$0xf]
      %v1300 = vld [vmem:[%s6 + $0x14] sm:$0xf]
      %v1301 = vld [vmem:[%s6 + $0x18] sm:$0xf]
      %v1302 = vld [vmem:[%s6 + $0x1c] sm:$0xf]
      %v1303 = vld [vmem:[%s6 + $0x20] sm:$0xf]
      %v1304 = vld [vmem:[%s6 + $0x24] sm:$0xf]
      %v1305 = vld [vmem:[%s6 + $0x28] sm:$0xf]
      %v1306 = vld [vmem:[%s6 + $0x2c] sm:$0xf]
      %v1307 = vld [vmem:[%s6 + $0x30] sm:$0xf]
      %v1308 = vld [vmem:[%s6 + $0x34] sm:$0xf]
      %v1309 = vld [vmem:[%s6 + $0x38] sm:$0xf]
      %v1310 = vld [vmem:[%s6 + $0x3c] sm:$0xf]
      %v1311 = vld [vmem:[%s9] sm:$0x1]
      %v1312 = vld [vmem:[%s9 + $0x1] sm:$0x1]
      %v1313 = vld [vmem:[%s9 + $0x2] sm:$0x1]
      %v1314 = vld [vmem:[%s9 + $0x3] sm:$0x1]
      %v1319 = vlaneseq
      %v1320 = vshrl.u32 %v1319, 7
      %v1321 = vsub.s32 0, %v1320
      %v1322 = vrot.slane %v1311, %v1321
      %v1323 = vlaneseq
      %v1324 = vshrl.u32 %v1323, 7
      %v1325 = vsub.s32 0, %v1324
      %v1326 = vrot.slane %v1312, %v1325
      %v1327 = vlaneseq
      %v1328 = vshrl.u32 %v1327, 7
      %v1329 = vsub.s32 0, %v1328
      %v1330 = vrot.slane %v1313, %v1329
      %v1331 = vlaneseq
      %v1332 = vshrl.u32 %v1331, 7
      %v1333 = vsub.s32 0, %v1332
      %v1334 = vrot.slane %v1314, %v1333
      %v1343 = vunpack.c.l.b16 %v1295
      %v1344 = vunpack.c.l.b16 %v1296
      %v1345 = vunpack.c.l.b16 %v1297
      %v1346 = vunpack.c.l.b16 %v1298
      %v1347 = vpack.c.b16 %v1344, %v1343
      %v1348 = vpack.c.b16 %v1346, %v1345
      %1351 = vmatprep.subr.bf16.mxu0 0
      %1352 = vmatpush1.bf16.msra.mxu0 %v1347
      %1353 = vmatprep.subr.bf16.mxu0 0
      %1354 = vmatpush1.bf16.msra.mxu0 %v1348
      %1355 = vmatprep.subr.bf16.mxu0 0
      %1356 = vmatpush1.bf16.msra.mxu0 0
      %1357 = vmatprep.subr.bf16.mxu0 0
      %1358 = vmatpush1.bf16.msra.mxu0 0
      %1359 = vmatprep.subr.bf16.mxu0 0
      %1360 = vmatpush1.bf16.msra.mxu0 0
      %1361 = vmatprep.subr.bf16.mxu0 0
      %1362 = vmatpush1.bf16.msra.mxu0 0
      %1363 = vmatprep.subr.bf16.mxu0 0
      %1364 = vmatpush1.bf16.msra.mxu0 0
      %1365 = vmatprep.subr.bf16.mxu0 0
      %1366 = vmatpush1.bf16.msra.mxu0 0
      %1367 = vmatprep.subr.bf16.mxu0 0
      %1368 = vmatpush1.bf16.msra.mxu0 0
      %1369 = vmatprep.subr.bf16.mxu0 0
      %1370 = vmatpush1.bf16.msra.mxu0 0
      %1371 = vmatprep.subr.bf16.mxu0 0
      %1372 = vmatpush1.bf16.msra.mxu0 0
      %1373 = vmatprep.subr.bf16.mxu0 0
      %1374 = vmatpush1.bf16.msra.mxu0 0
      %1375 = vmatprep.subr.bf16.mxu0 0
      %1376 = vmatpush1.bf16.msra.mxu0 0
      %1377 = vmatprep.subr.bf16.mxu0 0
      %1378 = vmatpush1.bf16.msra.mxu0 0
      %1379 = vmatprep.subr.bf16.mxu0 0
      %1380 = vmatpush1.bf16.msra.mxu0 0
      %1381 = vmatprep.subr.bf16.mxu0 0
      %1382 = vmatpush1.bf16.msra.mxu0 0
      %1383 = vmatprep.mubr.bf16.mxu0 0
      %1384 = vmatmul.mubr.bf16.gmra.mrb[0].mxu0 %v845
      %v1385 = vpop.f32.mrb[0].mxu0
      %v1386 = vadd.f32 %v1322, %v1385
      %v1387 = vpop.f32.mrb[0].mxu0
      %v1388 = vpop.f32.mrb[0].mxu0
      %v1389 = vpop.f32.mrb[0].mxu0
      %1390 = vdwg.mxu0
      %v1395 = vunpack.c.l.b16 %v1299
      %v1396 = vunpack.c.l.b16 %v1300
      %v1397 = vunpack.c.l.b16 %v1301
      %v1398 = vunpack.c.l.b16 %v1302
      %v1399 = vpack.c.b16 %v1396, %v1395
      %v1400 = vpack.c.b16 %v1398, %v1397
      %1403 = vmatprep.subr.bf16.mxu0 0
      %1404 = vmatpush1.bf16.msra.mxu0 %v1399
      %1405 = vmatprep.subr.bf16.mxu0 0
      %1406 = vmatpush1.bf16.msra.mxu0 %v1400
      %1407 = vmatprep.subr.bf16.mxu0 0
      %1408 = vmatpush1.bf16.msra.mxu0 0
      %1409 = vmatprep.subr.bf16.mxu0 0
      %1410 = vmatpush1.bf16.msra.mxu0 0
      %1411 = vmatprep.subr.bf16.mxu0 0
      %1412 = vmatpush1.bf16.msra.mxu0 0
      %1413 = vmatprep.subr.bf16.mxu0 0
      %1414 = vmatpush1.bf16.msra.mxu0 0
      %1415 = vmatprep.subr.bf16.mxu0 0
      %1416 = vmatpush1.bf16.msra.mxu0 0
      %1417 = vmatprep.subr.bf16.mxu0 0
      %1418 = vmatpush1.bf16.msra.mxu0 0
      %1419 = vmatprep.subr.bf16.mxu0 0
      %1420 = vmatpush1.bf16.msra.mxu0 0
      %1421 = vmatprep.subr.bf16.mxu0 0
      %1422 = vmatpush1.bf16.msra.mxu0 0
      %1423 = vmatprep.subr.bf16.mxu0 0
      %1424 = vmatpush1.bf16.msra.mxu0 0
      %1425 = vmatprep.subr.bf16.mxu0 0
      %1426 = vmatpush1.bf16.msra.mxu0 0
      %1427 = vmatprep.subr.bf16.mxu0 0
      %1428 = vmatpush1.bf16.msra.mxu0 0
      %1429 = vmatprep.subr.bf16.mxu0 0
      %1430 = vmatpush1.bf16.msra.mxu0 0
      %1431 = vmatprep.subr.bf16.mxu0 0
      %1432 = vmatpush1.bf16.msra.mxu0 0
      %1433 = vmatprep.subr.bf16.mxu0 0
      %1434 = vmatpush1.bf16.msra.mxu0 0
      %1435 = vmatprep.mubr.bf16.mxu0 0
      %1436 = vmatmul.mubr.bf16.gmra.mrb[0].mxu0 %v845
      %v1437 = vpop.f32.mrb[0].mxu0
      %v1438 = vadd.f32 %v1326, %v1437
      %v1439 = vpop.f32.mrb[0].mxu0
      %v1440 = vpop.f32.mrb[0].mxu0
      %v1441 = vpop.f32.mrb[0].mxu0
      %1442 = vdwg.mxu0
      %v1447 = vunpack.c.l.b16 %v1303
      %v1448 = vunpack.c.l.b16 %v1304
      %v1449 = vunpack.c.l.b16 %v1305
      %v1450 = vunpack.c.l.b16 %v1306
      %v1451 = vpack.c.b16 %v1448, %v1447
      %v1452 = vpack.c.b16 %v1450, %v1449
      %1455 = vmatprep.subr.bf16.mxu0 0
      %1456 = vmatpush1.bf16.msra.mxu0 %v1451
      %1457 = vmatprep.subr.bf16.mxu0 0
      %1458 = vmatpush1.bf16.msra.mxu0 %v1452
      %1459 = vmatprep.subr.bf16.mxu0 0
      %1460 = vmatpush1.bf16.msra.mxu0 0
      %1461 = vmatprep.subr.bf16.mxu0 0
      %1462 = vmatpush1.bf16.msra.mxu0 0
      %1463 = vmatprep.subr.bf16.mxu0 0
      %1464 = vmatpush1.bf16.msra.mxu0 0
      %1465 = vmatprep.subr.bf16.mxu0 0
      %1466 = vmatpush1.bf16.msra.mxu0 0
      %1467 = vmatprep.subr.bf16.mxu0 0
      %1468 = vmatpush1.bf16.msra.mxu0 0
      %1469 = vmatprep.subr.bf16.mxu0 0
      %1470 = vmatpush1.bf16.msra.mxu0 0
      %1471 = vmatprep.subr.bf16.mxu0 0
      %1472 = vmatpush1.bf16.msra.mxu0 0
      %1473 = vmatprep.subr.bf16.mxu0 0
      %1474 = vmatpush1.bf16.msra.mxu0 0
      %1475 = vmatprep.subr.bf16.mxu0 0
      %1476 = vmatpush1.bf16.msra.mxu0 0
      %1477 = vmatprep.subr.bf16.mxu0 0
      %1478 = vmatpush1.bf16.msra.mxu0 0
      %1479 = vmatprep.subr.bf16.mxu0 0
      %1480 = vmatpush1.bf16.msra.mxu0 0
      %1481 = vmatprep.subr.bf16.mxu0 0
      %1482 = vmatpush1.bf16.msra.mxu0 0
      %1483 = vmatprep.subr.bf16.mxu0 0
      %1484 = vmatpush1.bf16.msra.mxu0 0
      %1485 = vmatprep.subr.bf16.mxu0 0
      %1486 = vmatpush1.bf16.msra.mxu0 0
      %1487 = vmatprep.mubr.bf16.mxu0 0
      %1488 = vmatmul.mubr.bf16.gmra.mrb[0].mxu0 %v845
      %v1489 = vpop.f32.mrb[0].mxu0
      %v1490 = vadd.f32 %v1330, %v1489
      %v1491 = vpop.f32.mrb[0].mxu0
      %v1492 = vpop.f32.mrb[0].mxu0
      %v1493 = vpop.f32.mrb[0].mxu0
      %1494 = vdwg.mxu0
      %v1499 = vunpack.c.l.b16 %v1307
      %v1500 = vunpack.c.l.b16 %v1308
      %v1501 = vunpack.c.l.b16 %v1309
      %v1502 = vunpack.c.l.b16 %v1310
      %v1503 = vpack.c.b16 %v1500, %v1499
      %v1504 = vpack.c.b16 %v1502, %v1501
      %1507 = vmatprep.subr.bf16.mxu0 0
      %1508 = vmatpush1.bf16.msra.mxu0 %v1503
      %1509 = vmatprep.subr.bf16.mxu0 0
      %1510 = vmatpush1.bf16.msra.mxu0 %v1504
      %1511 = vmatprep.subr.bf16.mxu0 0
      %1512 = vmatpush1.bf16.msra.mxu0 0
      %1513 = vmatprep.subr.bf16.mxu0 0
      %1514 = vmatpush1.bf16.msra.mxu0 0
      %1515 = vmatprep.subr.bf16.mxu0 0
      %1516 = vmatpush1.bf16.msra.mxu0 0
      %1517 = vmatprep.subr.bf16.mxu0 0
      %1518 = vmatpush1.bf16.msra.mxu0 0
      %1519 = vmatprep.subr.bf16.mxu0 0
      %1520 = vmatpush1.bf16.msra.mxu0 0
      %1521 = vmatprep.subr.bf16.mxu0 0
      %1522 = vmatpush1.bf16.msra.mxu0 0
      %1523 = vmatprep.subr.bf16.mxu0 0
      %1524 = vmatpush1.bf16.msra.mxu0 0
      %1525 = vmatprep.subr.bf16.mxu0 0
      %1526 = vmatpush1.bf16.msra.mxu0 0
      %1527 = vmatprep.subr.bf16.mxu0 0
      %1528 = vmatpush1.bf16.msra.mxu0 0
      %1529 = vmatprep.subr.bf16.mxu0 0
      %1530 = vmatpush1.bf16.msra.mxu0 0
      %1531 = vmatprep.subr.bf16.mxu0 0
      %1532 = vmatpush1.bf16.msra.mxu0 0
      %1533 = vmatprep.subr.bf16.mxu0 0
      %1534 = vmatpush1.bf16.msra.mxu0 0
      %1535 = vmatprep.subr.bf16.mxu0 0
      %1536 = vmatpush1.bf16.msra.mxu0 0
      %1537 = vmatprep.subr.bf16.mxu0 0
      %1538 = vmatpush1.bf16.msra.mxu0 0
      %1539 = vmatprep.mubr.bf16.mxu0 0
      %1540 = vmatmul.mubr.bf16.gmra.mrb[0].mxu0 %v845
      %v1541 = vpop.f32.mrb[0].mxu0
      %v1542 = vadd.f32 %v1334, %v1541
      %v1543 = vpop.f32.mrb[0].mxu0
      %v1544 = vpop.f32.mrb[0].mxu0
      %v1545 = vpop.f32.mrb[0].mxu0
      %1546 = vdwg.mxu0
      %v1547 = vpack.c.bf16 %v882, %v882
      %v1548 = vpack.c.bf16 %v934, %v934
      %v1549 = vpack.c.bf16 %v986, %v986
      %v1550 = vpack.c.bf16 %v1038, %v1038
      %v1551 = vpack.c.bf16 %v1134, %v1134
      %v1552 = vpack.c.bf16 %v1186, %v1186
      %v1553 = vpack.c.bf16 %v1238, %v1238
      %v1554 = vpack.c.bf16 %v1290, %v1290
      %vm1555 = vcmask 64512
      %v1557 = vsel %vm1555, %v1547, 0
      %v1560 = vsel %vm1555, %v1551, 0
      %1562 = vmatprep.subr.bf16.mxu0 0
      %1563 = vmatpush1.bf16.xpose.msra.mxu0 %v1560
      %1564 = vmatprep.subr.bf16.mxu0 0
      %1565 = vmatpush1.bf16.xpose.msra.mxu0 0
      %1566 = vmatprep.subr.bf16.mxu0 0
      %1567 = vmatpush1.bf16.xpose.msra.mxu0 0
      %1568 = vmatprep.subr.bf16.mxu0 0
      %1569 = vmatpush1.bf16.xpose.msra.mxu0 0
      %1570 = vmatprep.subr.bf16.mxu0 0
      %1571 = vmatpush1.bf16.xpose.msra.mxu0 0
      %1572 = vmatprep.subr.bf16.mxu0 0
      %1573 = vmatpush1.bf16.xpose.msra.mxu0 0
      %1574 = vmatprep.subr.bf16.mxu0 0
      %1575 = vmatpush1.bf16.xpose.msra.mxu0 0
      %1576 = vmatprep.subr.bf16.mxu0 0
      %1577 = vmatpush1.bf16.xpose.msra.mxu0 0
      %1578 = vmatprep.subr.bf16.mxu0 0
      %1579 = vmatpush1.bf16.xpose.msra.mxu0 0
      %1580 = vmatprep.subr.bf16.mxu0 0
      %1581 = vmatpush1.bf16.xpose.msra.mxu0 0
      %1582 = vmatprep.subr.bf16.mxu0 0
      %1583 = vmatpush1.bf16.xpose.msra.mxu0 0
      %1584 = vmatprep.subr.bf16.mxu0 0
      %1585 = vmatpush1.bf16.xpose.msra.mxu0 0
      %1586 = vmatprep.subr.bf16.mxu0 0
      %1587 = vmatpush1.bf16.xpose.msra.mxu0 0
      %1588 = vmatprep.subr.bf16.mxu0 0
      %1589 = vmatpush1.bf16.xpose.msra.mxu0 0
      %1590 = vmatprep.subr.bf16.mxu0 0
      %1591 = vmatpush1.bf16.xpose.msra.mxu0 0
      %1592 = vmatprep.subr.bf16.mxu0 0
      %1593 = vmatpush1.bf16.xpose.msra.mxu0 0
      %1594 = vmatprep.mubr.bf16.mxu0 0
      %1595 = vmatmul.mubr.bf16.gmra.mrb[0].mxu0 %v1557
      %v1596 = vpop.f32.mrb[0].mxu0
      %v1597 = vadd.f32 %v785, %v1596
      %v1598 = vpop.f32.mrb[0].mxu0
      %v1599 = vpop.f32.mrb[0].mxu0
      %v1600 = vpop.f32.mrb[0].mxu0
      %1601 = vdwg.mxu0
      %v1603 = vsel %vm1555, %v1548, 0
      %v1606 = vsel %vm1555, %v1552, 0
      %1608 = vmatprep.subr.bf16.mxu0 0
      %1609 = vmatpush1.bf16.xpose.msra.mxu0 %v1606
      %1610 = vmatprep.subr.bf16.mxu0 0
      %1611 = vmatpush1.bf16.xpose.msra.mxu0 0
      %1612 = vmatprep.subr.bf16.mxu0 0
      %1613 = vmatpush1.bf16.xpose.msra.mxu0 0
      %1614 = vmatprep.subr.bf16.mxu0 0
      %1615 = vmatpush1.bf16.xpose.msra.mxu0 0
      %1616 = vmatprep.subr.bf16.mxu0 0
      %1617 = vmatpush1.bf16.xpose.msra.mxu0 0
      %1618 = vmatprep.subr.bf16.mxu0 0
      %1619 = vmatpush1.bf16.xpose.msra.mxu0 0
      %1620 = vmatprep.subr.bf16.mxu0 0
      %1621 = vmatpush1.bf16.xpose.msra.mxu0 0
      %1622 = vmatprep.subr.bf16.mxu0 0
      %1623 = vmatpush1.bf16.xpose.msra.mxu0 0
      %1624 = vmatprep.subr.bf16.mxu0 0
      %1625 = vmatpush1.bf16.xpose.msra.mxu0 0
      %1626 = vmatprep.subr.bf16.mxu0 0
      %1627 = vmatpush1.bf16.xpose.msra.mxu0 0
      %1628 = vmatprep.subr.bf16.mxu0 0
      %1629 = vmatpush1.bf16.xpose.msra.mxu0 0
      %1630 = vmatprep.subr.bf16.mxu0 0
      %1631 = vmatpush1.bf16.xpose.msra.mxu0 0
      %1632 = vmatprep.subr.bf16.mxu0 0
      %1633 = vmatpush1.bf16.xpose.msra.mxu0 0
      %1634 = vmatprep.subr.bf16.mxu0 0
      %1635 = vmatpush1.bf16.xpose.msra.mxu0 0
      %1636 = vmatprep.subr.bf16.mxu0 0
      %1637 = vmatpush1.bf16.xpose.msra.mxu0 0
      %1638 = vmatprep.subr.bf16.mxu0 0
      %1639 = vmatpush1.bf16.xpose.msra.mxu0 0
      %1640 = vmatprep.mubr.bf16.mxu0 0
      %1641 = vmatmul.mubr.bf16.gmra.mrb[0].mxu0 %v1603
      %v1642 = vpop.f32.mrb[0].mxu0
      %v1643 = vadd.f32 %v785, %v1642
      %v1644 = vpop.f32.mrb[0].mxu0
      %v1645 = vpop.f32.mrb[0].mxu0
      %v1646 = vpop.f32.mrb[0].mxu0
      %1647 = vdwg.mxu0
      %v1649 = vsel %vm1555, %v1549, 0
      %v1652 = vsel %vm1555, %v1553, 0
      %1654 = vmatprep.subr.bf16.mxu0 0
      %1655 = vmatpush1.bf16.xpose.msra.mxu0 %v1652
      %1656 = vmatprep.subr.bf16.mxu0 0
      %1657 = vmatpush1.bf16.xpose.msra.mxu0 0
      %1658 = vmatprep.subr.bf16.mxu0 0
      %1659 = vmatpush1.bf16.xpose.msra.mxu0 0
      %1660 = vmatprep.subr.bf16.mxu0 0
      %1661 = vmatpush1.bf16.xpose.msra.mxu0 0
      %1662 = vmatprep.subr.bf16.mxu0 0
      %1663 = vmatpush1.bf16.xpose.msra.mxu0 0
      %1664 = vmatprep.subr.bf16.mxu0 0
      %1665 = vmatpush1.bf16.xpose.msra.mxu0 0
      %1666 = vmatprep.subr.bf16.mxu0 0
      %1667 = vmatpush1.bf16.xpose.msra.mxu0 0
      %1668 = vmatprep.subr.bf16.mxu0 0
      %1669 = vmatpush1.bf16.xpose.msra.mxu0 0
      %1670 = vmatprep.subr.bf16.mxu0 0
      %1671 = vmatpush1.bf16.xpose.msra.mxu0 0
      %1672 = vmatprep.subr.bf16.mxu0 0
      %1673 = vmatpush1.bf16.xpose.msra.mxu0 0
      %1674 = vmatprep.subr.bf16.mxu0 0
      %1675 = vmatpush1.bf16.xpose.msra.mxu0 0
      %1676 = vmatprep.subr.bf16.mxu0 0
      %1677 = vmatpush1.bf16.xpose.msra.mxu0 0
      %1678 = vmatprep.subr.bf16.mxu0 0
      %1679 = vmatpush1.bf16.xpose.msra.mxu0 0
      %1680 = vmatprep.subr.bf16.mxu0 0
      %1681 = vmatpush1.bf16.xpose.msra.mxu0 0
      %1682 = vmatprep.subr.bf16.mxu0 0
      %1683 = vmatpush1.bf16.xpose.msra.mxu0 0
      %1684 = vmatprep.subr.bf16.mxu0 0
      %1685 = vmatpush1.bf16.xpose.msra.mxu0 0
      %1686 = vmatprep.mubr.bf16.mxu0 0
      %1687 = vmatmul.mubr.bf16.gmra.mrb[0].mxu0 %v1649
      %v1688 = vpop.f32.mrb[0].mxu0
      %v1689 = vadd.f32 %v785, %v1688
      %v1690 = vpop.f32.mrb[0].mxu0
      %v1691 = vpop.f32.mrb[0].mxu0
      %v1692 = vpop.f32.mrb[0].mxu0
      %1693 = vdwg.mxu0
      %v1695 = vsel %vm1555, %v1550, 0
      %v1698 = vsel %vm1555, %v1554, 0
      %1700 = vmatprep.subr.bf16.mxu0 0
      %1701 = vmatpush1.bf16.xpose.msra.mxu0 %v1698
      %1702 = vmatprep.subr.bf16.mxu0 0
      %1703 = vmatpush1.bf16.xpose.msra.mxu0 0
      %1704 = vmatprep.subr.bf16.mxu0 0
      %1705 = vmatpush1.bf16.xpose.msra.mxu0 0
      %1706 = vmatprep.subr.bf16.mxu0 0
      %1707 = vmatpush1.bf16.xpose.msra.mxu0 0
      %1708 = vmatprep.subr.bf16.mxu0 0
      %1709 = vmatpush1.bf16.xpose.msra.mxu0 0
      %1710 = vmatprep.subr.bf16.mxu0 0
      %1711 = vmatpush1.bf16.xpose.msra.mxu0 0
      %1712 = vmatprep.subr.bf16.mxu0 0
      %1713 = vmatpush1.bf16.xpose.msra.mxu0 0
      %1714 = vmatprep.subr.bf16.mxu0 0
      %1715 = vmatpush1.bf16.xpose.msra.mxu0 0
      %1716 = vmatprep.subr.bf16.mxu0 0
      %1717 = vmatpush1.bf16.xpose.msra.mxu0 0
      %1718 = vmatprep.subr.bf16.mxu0 0
      %1719 = vmatpush1.bf16.xpose.msra.mxu0 0
      %1720 = vmatprep.subr.bf16.mxu0 0
      %1721 = vmatpush1.bf16.xpose.msra.mxu0 0
      %1722 = vmatprep.subr.bf16.mxu0 0
      %1723 = vmatpush1.bf16.xpose.msra.mxu0 0
      %1724 = vmatprep.subr.bf16.mxu0 0
      %1725 = vmatpush1.bf16.xpose.msra.mxu0 0
      %1726 = vmatprep.subr.bf16.mxu0 0
      %1727 = vmatpush1.bf16.xpose.msra.mxu0 0
      %1728 = vmatprep.subr.bf16.mxu0 0
      %1729 = vmatpush1.bf16.xpose.msra.mxu0 0
      %1730 = vmatprep.subr.bf16.mxu0 0
      %1731 = vmatpush1.bf16.xpose.msra.mxu0 0
      %1732 = vmatprep.mubr.bf16.mxu0 0
      %1733 = vmatmul.mubr.bf16.gmra.mrb[0].mxu0 %v1695
      %v1734 = vpop.f32.mrb[0].mxu0
      %v1735 = vadd.f32 %v785, %v1734
      %v1736 = vpop.f32.mrb[0].mxu0
      %v1737 = vpop.f32.mrb[0].mxu0
      %v1738 = vpop.f32.mrb[0].mxu0
      %1739 = vdwg.mxu0
      %v1740 = vsel %vm1555, %v1597, -inf
      %1741 = vmax.xlane.f32.xlu0 %v1740
      %v1742 = vpop.xlane.xlu0 %1741
      %v1743 = vsel %vm1555, %v1643, -inf
      %1744 = vmax.xlane.f32.xlu0 %v1743
      %v1745 = vpop.xlane.xlu0 %1744
      %v1746 = vsel %vm1555, %v1689, -inf
      %1747 = vmax.xlane.f32.xlu0 %v1746
      %v1748 = vpop.xlane.xlu0 %1747
      %v1749 = vsel %vm1555, %v1735, -inf
      %1750 = vmax.xlane.f32.xlu0 %v1749
      %v1751 = vpop.xlane.xlu0 %1750
      %v1752 = vsub.f32 %v1597, %v1742
      %v1753 = vsub.f32 %v1643, %v1745
      %v1754 = vsub.f32 %v1689, %v1748
      %v1755 = vsub.f32 %v1735, %v1751
      %v1756 = vmul.f32 %v1752, 1.442695
      %v1757 = vpow.pop %v1756
      %v1758 = vmul.f32 %v1753, 1.442695
      %v1759 = vpow.pop %v1758
      %v1760 = vmul.f32 %v1754, 1.442695
      %v1761 = vpow.pop %v1760
      %v1762 = vmul.f32 %v1755, 1.442695
      %v1763 = vpow.pop %v1762
      %v1764 = vsel %vm1555, %v1757, 0.0
      %1765 = vadd.xlane.f32.xlu0 %v1764
      %v1766 = vpop.xlane.xlu0 %1765
      %v1767 = vsel %vm1555, %v1759, 0.0
      %1768 = vadd.xlane.f32.xlu0 %v1767
      %v1769 = vpop.xlane.xlu0 %1768
      %v1770 = vsel %vm1555, %v1761, 0.0
      %1771 = vadd.xlane.f32.xlu0 %v1770
      %v1772 = vpop.xlane.xlu0 %1771
      %v1773 = vsel %vm1555, %v1763, 0.0
      %1774 = vadd.xlane.f32.xlu0 %v1773
      %v1775 = vpop.xlane.xlu0 %1774
      %v1776 = vrcp.pop %v1766
      %v1777 = vrcp.pop %v1769
      %v1778 = vrcp.pop %v1772
      %v1779 = vrcp.pop %v1775
      %v1780 = vmul.f32 %v1757, %v1776
      %v1781 = vmul.f32 %v1759, %v1777
      %v1782 = vmul.f32 %v1761, %v1778
      %v1783 = vmul.f32 %v1763, %v1779
      %v1784 = vpack.c.bf16 %v1780, %v1780
      %v1785 = vpack.c.bf16 %v1781, %v1781
      %v1786 = vpack.c.bf16 %v1782, %v1782
      %v1787 = vpack.c.bf16 %v1783, %v1783
      %v1788 = vpack.c.bf16 %v1386, %v1386
      %v1789 = vpack.c.bf16 %v1438, %v1438
      %v1790 = vpack.c.bf16 %v1490, %v1490
      %v1791 = vpack.c.bf16 %v1542, %v1542
      %v1793 = vsel %vm1555, %v1784, 0
      %vm1795 = vcmask 1043456
      %v1797 = vsel %vm1795, %v1788, 0
      %1799 = vmatprep.subr.bf16.mxu0 0
      %1800 = vmatpush1.bf16.msra.mxu0 %v1797
      %1801 = vmatprep.subr.bf16.mxu0 0
      %1802 = vmatpush1.bf16.msra.mxu0 0
      %1803 = vmatprep.subr.bf16.mxu0 0
      %1804 = vmatpush1.bf16.msra.mxu0 0
      %1805 = vmatprep.subr.bf16.mxu0 0
      %1806 = vmatpush1.bf16.msra.mxu0 0
      %1807 = vmatprep.subr.bf16.mxu0 0
      %1808 = vmatpush1.bf16.msra.mxu0 0
      %1809 = vmatprep.subr.bf16.mxu0 0
      %1810 = vmatpush1.bf16.msra.mxu0 0
      %1811 = vmatprep.subr.bf16.mxu0 0
      %1812 = vmatpush1.bf16.msra.mxu0 0
      %1813 = vmatprep.subr.bf16.mxu0 0
      %1814 = vmatpush1.bf16.msra.mxu0 0
      %1815 = vmatprep.subr.bf16.mxu0 0
      %1816 = vmatpush1.bf16.msra.mxu0 0
      %1817 = vmatprep.subr.bf16.mxu0 0
      %1818 = vmatpush1.bf16.msra.mxu0 0
      %1819 = vmatprep.subr.bf16.mxu0 0
      %1820 = vmatpush1.bf16.msra.mxu0 0
      %1821 = vmatprep.subr.bf16.mxu0 0
      %1822 = vmatpush1.bf16.msra.mxu0 0
      %1823 = vmatprep.subr.bf16.mxu0 0
      %1824 = vmatpush1.bf16.msra.mxu0 0
      %1825 = vmatprep.subr.bf16.mxu0 0
      %1826 = vmatpush1.bf16.msra.mxu0 0
      %1827 = vmatprep.subr.bf16.mxu0 0
      %1828 = vmatpush1.bf16.msra.mxu0 0
      %1829 = vmatprep.subr.bf16.mxu0 0
      %1830 = vmatpush1.bf16.msra.mxu0 0
      %1831 = vmatprep.mubr.bf16.mxu0 0
      %1832 = vmatmul.mubr.bf16.gmra.mrb[0].mxu0 %v1793
      %v1833 = vpop.f32.mrb[0].mxu0
      %v1834 = vadd.f32 0.0, %v1833
      %v1835 = vpop.f32.mrb[0].mxu0
      %v1836 = vpop.f32.mrb[0].mxu0
      %v1837 = vpop.f32.mrb[0].mxu0
      %1838 = vdwg.mxu0
      %v1840 = vsel %vm1555, %v1785, 0
      %v1843 = vsel %vm1795, %v1789, 0
      %1845 = vmatprep.subr.bf16.mxu0 0
      %1846 = vmatpush1.bf16.msra.mxu0 %v1843
      %1847 = vmatprep.subr.bf16.mxu0 0
      %1848 = vmatpush1.bf16.msra.mxu0 0
      %1849 = vmatprep.subr.bf16.mxu0 0
      %1850 = vmatpush1.bf16.msra.mxu0 0
      %1851 = vmatprep.subr.bf16.mxu0 0
      %1852 = vmatpush1.bf16.msra.mxu0 0
      %1853 = vmatprep.subr.bf16.mxu0 0
      %1854 = vmatpush1.bf16.msra.mxu0 0
      %1855 = vmatprep.subr.bf16.mxu0 0
      %1856 = vmatpush1.bf16.msra.mxu0 0
      %1857 = vmatprep.subr.bf16.mxu0 0
      %1858 = vmatpush1.bf16.msra.mxu0 0
      %1859 = vmatprep.subr.bf16.mxu0 0
      %1860 = vmatpush1.bf16.msra.mxu0 0
      %1861 = vmatprep.subr.bf16.mxu0 0
      %1862 = vmatpush1.bf16.msra.mxu0 0
      %1863 = vmatprep.subr.bf16.mxu0 0
      %1864 = vmatpush1.bf16.msra.mxu0 0
      %1865 = vmatprep.subr.bf16.mxu0 0
      %1866 = vmatpush1.bf16.msra.mxu0 0
      %1867 = vmatprep.subr.bf16.mxu0 0
      %1868 = vmatpush1.bf16.msra.mxu0 0
      %1869 = vmatprep.subr.bf16.mxu0 0
      %1870 = vmatpush1.bf16.msra.mxu0 0
      %1871 = vmatprep.subr.bf16.mxu0 0
      %1872 = vmatpush1.bf16.msra.mxu0 0
      %1873 = vmatprep.subr.bf16.mxu0 0
      %1874 = vmatpush1.bf16.msra.mxu0 0
      %1875 = vmatprep.subr.bf16.mxu0 0
      %1876 = vmatpush1.bf16.msra.mxu0 0
      %1877 = vmatprep.mubr.bf16.mxu0 0
      %1878 = vmatmul.mubr.bf16.gmra.mrb[0].mxu0 %v1840
      %v1879 = vpop.f32.mrb[0].mxu0
      %v1880 = vadd.f32 0.0, %v1879
      %v1881 = vpop.f32.mrb[0].mxu0
      %v1882 = vpop.f32.mrb[0].mxu0
      %v1883 = vpop.f32.mrb[0].mxu0
      %1884 = vdwg.mxu0
      %v1886 = vsel %vm1555, %v1786, 0
      %v1889 = vsel %vm1795, %v1790, 0
      %1891 = vmatprep.subr.bf16.mxu0 0
      %1892 = vmatpush1.bf16.msra.mxu0 %v1889
      %1893 = vmatprep.subr.bf16.mxu0 0
      %1894 = vmatpush1.bf16.msra.mxu0 0
      %1895 = vmatprep.subr.bf16.mxu0 0
      %1896 = vmatpush1.bf16.msra.mxu0 0
      %1897 = vmatprep.subr.bf16.mxu0 0
      %1898 = vmatpush1.bf16.msra.mxu0 0
      %1899 = vmatprep.subr.bf16.mxu0 0
      %1900 = vmatpush1.bf16.msra.mxu0 0
      %1901 = vmatprep.subr.bf16.mxu0 0
      %1902 = vmatpush1.bf16.msra.mxu0 0
      %1903 = vmatprep.subr.bf16.mxu0 0
      %1904 = vmatpush1.bf16.msra.mxu0 0
      %1905 = vmatprep.subr.bf16.mxu0 0
      %1906 = vmatpush1.bf16.msra.mxu0 0
      %1907 = vmatprep.subr.bf16.mxu0 0
      %1908 = vmatpush1.bf16.msra.mxu0 0
      %1909 = vmatprep.subr.bf16.mxu0 0
      %1910 = vmatpush1.bf16.msra.mxu0 0
      %1911 = vmatprep.subr.bf16.mxu0 0
      %1912 = vmatpush1.bf16.msra.mxu0 0
      %1913 = vmatprep.subr.bf16.mxu0 0
      %1914 = vmatpush1.bf16.msra.mxu0 0
      %1915 = vmatprep.subr.bf16.mxu0 0
      %1916 = vmatpush1.bf16.msra.mxu0 0
      %1917 = vmatprep.subr.bf16.mxu0 0
      %1918 = vmatpush1.bf16.msra.mxu0 0
      %1919 = vmatprep.subr.bf16.mxu0 0
      %1920 = vmatpush1.bf16.msra.mxu0 0
      %1921 = vmatprep.subr.bf16.mxu0 0
      %1922 = vmatpush1.bf16.msra.mxu0 0
      %1923 = vmatprep.mubr.bf16.mxu0 0
      %1924 = vmatmul.mubr.bf16.gmra.mrb[0].mxu0 %v1886
      %v1925 = vpop.f32.mrb[0].mxu0
      %v1926 = vadd.f32 0.0, %v1925
      %v1927 = vpop.f32.mrb[0].mxu0
      %v1928 = vpop.f32.mrb[0].mxu0
      %v1929 = vpop.f32.mrb[0].mxu0
      %1930 = vdwg.mxu0
      %v1932 = vsel %vm1555, %v1787, 0
      %v1935 = vsel %vm1795, %v1791, 0
      %1937 = vmatprep.subr.bf16.mxu0 0
      %1938 = vmatpush1.bf16.msra.mxu0 %v1935
      %1939 = vmatprep.subr.bf16.mxu0 0
      %1940 = vmatpush1.bf16.msra.mxu0 0
      %1941 = vmatprep.subr.bf16.mxu0 0
      %1942 = vmatpush1.bf16.msra.mxu0 0
      %1943 = vmatprep.subr.bf16.mxu0 0
      %1944 = vmatpush1.bf16.msra.mxu0 0
      %1945 = vmatprep.subr.bf16.mxu0 0
      %1946 = vmatpush1.bf16.msra.mxu0 0
      %1947 = vmatprep.subr.bf16.mxu0 0
      %1948 = vmatpush1.bf16.msra.mxu0 0
      %1949 = vmatprep.subr.bf16.mxu0 0
      %1950 = vmatpush1.bf16.msra.mxu0 0
      %1951 = vmatprep.subr.bf16.mxu0 0
      %1952 = vmatpush1.bf16.msra.mxu0 0
      %1953 = vmatprep.subr.bf16.mxu0 0
      %1954 = vmatpush1.bf16.msra.mxu0 0
      %1955 = vmatprep.subr.bf16.mxu0 0
      %1956 = vmatpush1.bf16.msra.mxu0 0
      %1957 = vmatprep.subr.bf16.mxu0 0
      %1958 = vmatpush1.bf16.msra.mxu0 0
      %1959 = vmatprep.subr.bf16.mxu0 0
      %1960 = vmatpush1.bf16.msra.mxu0 0
      %1961 = vmatprep.subr.bf16.mxu0 0
      %1962 = vmatpush1.bf16.msra.mxu0 0
      %1963 = vmatprep.subr.bf16.mxu0 0
      %1964 = vmatpush1.bf16.msra.mxu0 0
      %1965 = vmatprep.subr.bf16.mxu0 0
      %1966 = vmatpush1.bf16.msra.mxu0 0
      %1967 = vmatprep.subr.bf16.mxu0 0
      %1968 = vmatpush1.bf16.msra.mxu0 0
      %1969 = vmatprep.mubr.bf16.mxu0 0
      %1970 = vmatmul.mubr.bf16.gmra.mrb[0].mxu0 %v1932
      %v1971 = vpop.f32.mrb[0].mxu0
      %v1972 = vadd.f32 0.0, %v1971
      %v1973 = vpop.f32.mrb[0].mxu0
      %v1974 = vpop.f32.mrb[0].mxu0
      %v1975 = vpop.f32.mrb[0].mxu0
      %1976 = vdwg.mxu0
      %v1977 = vpack.c.bf16 %v1834, %v1834
      %v1978 = vpack.c.bf16 %v1880, %v1880
      %v1979 = vpack.c.bf16 %v1926, %v1926
      %v1980 = vpack.c.bf16 %v1972, %v1972
      %v1981 = vld [vmem:[%s10] sm:$0xf]
      %v1982 = vld [vmem:[%s10 + $0x4] sm:$0xf]
      %v1983 = vld [vmem:[%s10 + $0x8] sm:$0xf]
      %v1984 = vld [vmem:[%s10 + $0xc] sm:$0xf]
      %v1986 = vsel %vm1555, %v1977, 0
      %v1989 = vsel %vm1795, %v1981, 0
      %1991 = vmatprep.subr.bf16.mxu0 0
      %1992 = vmatpush1.bf16.msra.mxu0 %v1989
      %1993 = vmatprep.subr.bf16.mxu0 0
      %1994 = vmatpush1.bf16.msra.mxu0 0
      %1995 = vmatprep.subr.bf16.mxu0 0
      %1996 = vmatpush1.bf16.msra.mxu0 0
      %1997 = vmatprep.subr.bf16.mxu0 0
      %1998 = vmatpush1.bf16.msra.mxu0 0
      %1999 = vmatprep.subr.bf16.mxu0 0
      %2000 = vmatpush1.bf16.msra.mxu0 0
      %2001 = vmatprep.subr.bf16.mxu0 0
      %2002 = vmatpush1.bf16.msra.mxu0 0
      %2003 = vmatprep.subr.bf16.mxu0 0
      %2004 = vmatpush1.bf16.msra.mxu0 0
      %2005 = vmatprep.subr.bf16.mxu0 0
      %2006 = vmatpush1.bf16.msra.mxu0 0
      %2007 = vmatprep.subr.bf16.mxu0 0
      %2008 = vmatpush1.bf16.msra.mxu0 0
      %2009 = vmatprep.subr.bf16.mxu0 0
      %2010 = vmatpush1.bf16.msra.mxu0 0
      %2011 = vmatprep.subr.bf16.mxu0 0
      %2012 = vmatpush1.bf16.msra.mxu0 0
      %2013 = vmatprep.subr.bf16.mxu0 0
      %2014 = vmatpush1.bf16.msra.mxu0 0
      %2015 = vmatprep.subr.bf16.mxu0 0
      %2016 = vmatpush1.bf16.msra.mxu0 0
      %2017 = vmatprep.subr.bf16.mxu0 0
      %2018 = vmatpush1.bf16.msra.mxu0 0
      %2019 = vmatprep.subr.bf16.mxu0 0
      %2020 = vmatpush1.bf16.msra.mxu0 0
      %2021 = vmatprep.subr.bf16.mxu0 0
      %2022 = vmatpush1.bf16.msra.mxu0 0
      %2023 = vmatprep.mubr.bf16.mxu0 0
      %2024 = vmatmul.mubr.bf16.gmra.mrb[0].mxu0 %v1986
      %v2025 = vpop.f32.mrb[0].mxu0
      %v2026 = vadd.f32 0.0, %v2025
      %v2027 = vpop.f32.mrb[0].mxu0
      %v2028 = vpop.f32.mrb[0].mxu0
      %v2029 = vpop.f32.mrb[0].mxu0
      %2030 = vdwg.mxu0
      %v2032 = vsel %vm1555, %v1978, 0
      %v2035 = vsel %vm1795, %v1982, 0
      %2037 = vmatprep.subr.bf16.mxu0 0
      %2038 = vmatpush1.bf16.msra.mxu0 %v2035
      %2039 = vmatprep.subr.bf16.mxu0 0
      %2040 = vmatpush1.bf16.msra.mxu0 0
      %2041 = vmatprep.subr.bf16.mxu0 0
      %2042 = vmatpush1.bf16.msra.mxu0 0
      %2043 = vmatprep.subr.bf16.mxu0 0
      %2044 = vmatpush1.bf16.msra.mxu0 0
      %2045 = vmatprep.subr.bf16.mxu0 0
      %2046 = vmatpush1.bf16.msra.mxu0 0
      %2047 = vmatprep.subr.bf16.mxu0 0
      %2048 = vmatpush1.bf16.msra.mxu0 0
      %2049 = vmatprep.subr.bf16.mxu0 0
      %2050 = vmatpush1.bf16.msra.mxu0 0
      %2051 = vmatprep.subr.bf16.mxu0 0
      %2052 = vmatpush1.bf16.msra.mxu0 0
      %2053 = vmatprep.subr.bf16.mxu0 0
      %2054 = vmatpush1.bf16.msra.mxu0 0
      %2055 = vmatprep.subr.bf16.mxu0 0
      %2056 = vmatpush1.bf16.msra.mxu0 0
      %2057 = vmatprep.subr.bf16.mxu0 0
      %2058 = vmatpush1.bf16.msra.mxu0 0
      %2059 = vmatprep.subr.bf16.mxu0 0
      %2060 = vmatpush1.bf16.msra.mxu0 0
      %2061 = vmatprep.subr.bf16.mxu0 0
      %2062 = vmatpush1.bf16.msra.mxu0 0
      %2063 = vmatprep.subr.bf16.mxu0 0
      %2064 = vmatpush1.bf16.msra.mxu0 0
      %2065 = vmatprep.subr.bf16.mxu0 0
      %2066 = vmatpush1.bf16.msra.mxu0 0
      %2067 = vmatprep.subr.bf16.mxu0 0
      %2068 = vmatpush1.bf16.msra.mxu0 0
      %2069 = vmatprep.mubr.bf16.mxu0 0
      %2070 = vmatmul.mubr.bf16.gmra.mrb[0].mxu0 %v2032
      %v2071 = vpop.f32.mrb[0].mxu0
      %v2072 = vadd.f32 0.0, %v2071
      %v2073 = vpop.f32.mrb[0].mxu0
      %v2074 = vpop.f32.mrb[0].mxu0
      %v2075 = vpop.f32.mrb[0].mxu0
      %2076 = vdwg.mxu0
      %v2078 = vsel %vm1555, %v1979, 0
      %v2081 = vsel %vm1795, %v1983, 0
      %2083 = vmatprep.subr.bf16.mxu0 0
      %2084 = vmatpush1.bf16.msra.mxu0 %v2081
      %2085 = vmatprep.subr.bf16.mxu0 0
      %2086 = vmatpush1.bf16.msra.mxu0 0
      %2087 = vmatprep.subr.bf16.mxu0 0
      %2088 = vmatpush1.bf16.msra.mxu0 0
      %2089 = vmatprep.subr.bf16.mxu0 0
      %2090 = vmatpush1.bf16.msra.mxu0 0
      %2091 = vmatprep.subr.bf16.mxu0 0
      %2092 = vmatpush1.bf16.msra.mxu0 0
      %2093 = vmatprep.subr.bf16.mxu0 0
      %2094 = vmatpush1.bf16.msra.mxu0 0
      %2095 = vmatprep.subr.bf16.mxu0 0
      %2096 = vmatpush1.bf16.msra.mxu0 0
      %2097 = vmatprep.subr.bf16.mxu0 0
      %2098 = vmatpush1.bf16.msra.mxu0 0
      %2099 = vmatprep.subr.bf16.mxu0 0
      %2100 = vmatpush1.bf16.msra.mxu0 0
      %2101 = vmatprep.subr.bf16.mxu0 0
      %2102 = vmatpush1.bf16.msra.mxu0 0
      %2103 = vmatprep.subr.bf16.mxu0 0
      %2104 = vmatpush1.bf16.msra.mxu0 0
      %2105 = vmatprep.subr.bf16.mxu0 0
      %2106 = vmatpush1.bf16.msra.mxu0 0
      %2107 = vmatprep.subr.bf16.mxu0 0
      %2108 = vmatpush1.bf16.msra.mxu0 0
      %2109 = vmatprep.subr.bf16.mxu0 0
      %2110 = vmatpush1.bf16.msra.mxu0 0
      %2111 = vmatprep.subr.bf16.mxu0 0
      %2112 = vmatpush1.bf16.msra.mxu0 0
      %2113 = vmatprep.subr.bf16.mxu0 0
      %2114 = vmatpush1.bf16.msra.mxu0 0
      %2115 = vmatprep.mubr.bf16.mxu0 0
      %2116 = vmatmul.mubr.bf16.gmra.mrb[0].mxu0 %v2078
      %v2117 = vpop.f32.mrb[0].mxu0
      %v2118 = vadd.f32 0.0, %v2117
      %v2119 = vpop.f32.mrb[0].mxu0
      %v2120 = vpop.f32.mrb[0].mxu0
      %v2121 = vpop.f32.mrb[0].mxu0
      %2122 = vdwg.mxu0
      %v2124 = vsel %vm1555, %v1980, 0
      %v2127 = vsel %vm1795, %v1984, 0
      %2129 = vmatprep.subr.bf16.mxu0 0
      %2130 = vmatpush1.bf16.msra.mxu0 %v2127
      %2131 = vmatprep.subr.bf16.mxu0 0
      %2132 = vmatpush1.bf16.msra.mxu0 0
      %2133 = vmatprep.subr.bf16.mxu0 0
      %2134 = vmatpush1.bf16.msra.mxu0 0
      %2135 = vmatprep.subr.bf16.mxu0 0
      %2136 = vmatpush1.bf16.msra.mxu0 0
      %2137 = vmatprep.subr.bf16.mxu0 0
      %2138 = vmatpush1.bf16.msra.mxu0 0
      %2139 = vmatprep.subr.bf16.mxu0 0
      %2140 = vmatpush1.bf16.msra.mxu0 0
      %2141 = vmatprep.subr.bf16.mxu0 0
      %2142 = vmatpush1.bf16.msra.mxu0 0
      %2143 = vmatprep.subr.bf16.mxu0 0
      %2144 = vmatpush1.bf16.msra.mxu0 0
      %2145 = vmatprep.subr.bf16.mxu0 0
      %2146 = vmatpush1.bf16.msra.mxu0 0
      %2147 = vmatprep.subr.bf16.mxu0 0
      %2148 = vmatpush1.bf16.msra.mxu0 0
      %2149 = vmatprep.subr.bf16.mxu0 0
      %2150 = vmatpush1.bf16.msra.mxu0 0
      %2151 = vmatprep.subr.bf16.mxu0 0
      %2152 = vmatpush1.bf16.msra.mxu0 0
      %2153 = vmatprep.subr.bf16.mxu0 0
      %2154 = vmatpush1.bf16.msra.mxu0 0
      %2155 = vmatprep.subr.bf16.mxu0 0
      %2156 = vmatpush1.bf16.msra.mxu0 0
      %2157 = vmatprep.subr.bf16.mxu0 0
      %2158 = vmatpush1.bf16.msra.mxu0 0
      %2159 = vmatprep.subr.bf16.mxu0 0
      %2160 = vmatpush1.bf16.msra.mxu0 0
      %2161 = vmatprep.mubr.bf16.mxu0 0
      %2162 = vmatmul.mubr.bf16.gmra.mrb[0].mxu0 %v2124
      %v2163 = vpop.f32.mrb[0].mxu0
      %v2164 = vadd.f32 0.0, %v2163
      %v2165 = vpop.f32.mrb[0].mxu0
      %v2166 = vpop.f32.mrb[0].mxu0
      %v2167 = vpop.f32.mrb[0].mxu0
      %2168 = vdwg.mxu0
      %v2169 = vsel %vm751, %v2026, 0.0
      %v2170 = vsel %vm751, %v2072, 0.0
      %v2171 = vadd.f32 %v2169, %v2170
      %v2172 = vsel %vm751, %v2118, 0.0
      %v2173 = vadd.f32 %v2171, %v2172
      %v2174 = vsel %vm751, %v2164, 0.0
      %v2175 = vadd.f32 %v2173, %v2174
      %v2176 = vld [vmem:[%s11] sm:$0x1]
      %v2178 = vlaneseq
      %v2179 = vshrl.u32 %v2178, 7
      %v2180 = vsub.s32 0, %v2179
      %v2181 = vrot.slane %v2176, %v2180
      %v2183 = vadd.f32 %v2175, %v2181
      %v2184 = vadd.f32 %v2183, %v779
      %v2185 = vld [vmem:[%s12] sm:$0x1]
      %v2186 = vld [vmem:[%s13] sm:$0x1]
      %v2187 = vsel %vm751, %v2184, 0.0
      %2188 = vadd.xlane.f32.xlu0 %v2187
      %v2189 = vpop.xlane.xlu0 %2188
      %v2190 = vmul.f32 %v2189, %v755
      %v2191 = vsub.f32 %v2184, %v2190
      %v2192 = vmul.f32 %v2191, %v2191
      %v2193 = vsel %vm751, %v2192, 0.0
      %2194 = vadd.xlane.f32.xlu0 %v2193
      %v2195 = vpop.xlane.xlu0 %2194
      %v2196 = vmul.f32 %v2195, %v755
      %v2197 = vadd.f32 %v2196, 1e-12
      %v2198 = vrsqrt.pop %v2197
      %v2199 = vmul.f32 %v2191, %v2198
      %v2201 = vlaneseq
      %v2202 = vshrl.u32 %v2201, 7
      %v2203 = vsub.s32 0, %v2202
      %v2204 = vrot.slane %v2185, %v2203
      %v2206 = vmul.f32 %v2199, %v2204
      %v2208 = vlaneseq
      %v2209 = vshrl.u32 %v2208, 7
      %v2210 = vsub.s32 0, %v2209
      %v2211 = vrot.slane %v2186, %v2210
      %v2213 = vadd.f32 %v2206, %v2211
      %v2214 = vpack.c.bf16 %v2213, %v2213
      %v2215 = vld [vmem:[%s14] sm:$0xf]
      %v2216 = vld [vmem:[%s14 + $0x4] sm:$0xf]
      %v2217 = vld [vmem:[%s14 + $0x8] sm:$0xf]
      %v2218 = vld [vmem:[%s14 + $0xc] sm:$0xf]
      %v2219 = vld [vmem:[%s15] sm:$0x1]
      %v2221 = vlaneseq
      %v2222 = vshrl.u32 %v2221, 7
      %v2223 = vsub.s32 0, %v2222
      %v2224 = vrot.slane %v2219, %v2223
      %v2230 = vunpack.c.l.b16 %v2215
      %v2231 = vunpack.c.l.b16 %v2216
      %v2232 = vunpack.c.l.b16 %v2217
      %v2233 = vunpack.c.l.b16 %v2218
      %v2234 = vpack.c.b16 %v2231, %v2230
      %v2235 = vpack.c.b16 %v2233, %v2232
      %v2239 = vsel %vm751, %v2214, 0
      %2241 = vmatprep.subr.bf16.mxu0 0
      %2242 = vmatpush1.bf16.msra.mxu0 %v2234
      %2243 = vmatprep.subr.bf16.mxu0 0
      %2244 = vmatpush1.bf16.msra.mxu0 %v2235
      %2245 = vmatprep.subr.bf16.mxu0 0
      %2246 = vmatpush1.bf16.msra.mxu0 0
      %2247 = vmatprep.subr.bf16.mxu0 0
      %2248 = vmatpush1.bf16.msra.mxu0 0
      %2249 = vmatprep.subr.bf16.mxu0 0
      %2250 = vmatpush1.bf16.msra.mxu0 0
      %2251 = vmatprep.subr.bf16.mxu0 0
      %2252 = vmatpush1.bf16.msra.mxu0 0
      %2253 = vmatprep.subr.bf16.mxu0 0
      %2254 = vmatpush1.bf16.msra.mxu0 0
      %2255 = vmatprep.subr.bf16.mxu0 0
      %2256 = vmatpush1.bf16.msra.mxu0 0
      %2257 = vmatprep.subr.bf16.mxu0 0
      %2258 = vmatpush1.bf16.msra.mxu0 0
      %2259 = vmatprep.subr.bf16.mxu0 0
      %2260 = vmatpush1.bf16.msra.mxu0 0
      %2261 = vmatprep.subr.bf16.mxu0 0
      %2262 = vmatpush1.bf16.msra.mxu0 0
      %2263 = vmatprep.subr.bf16.mxu0 0
      %2264 = vmatpush1.bf16.msra.mxu0 0
      %2265 = vmatprep.subr.bf16.mxu0 0
      %2266 = vmatpush1.bf16.msra.mxu0 0
      %2267 = vmatprep.subr.bf16.mxu0 0
      %2268 = vmatpush1.bf16.msra.mxu0 0
      %2269 = vmatprep.subr.bf16.mxu0 0
      %2270 = vmatpush1.bf16.msra.mxu0 0
      %2271 = vmatprep.subr.bf16.mxu0 0
      %2272 = vmatpush1.bf16.msra.mxu0 0
      %2273 = vmatprep.mubr.bf16.mxu0 0
      %2274 = vmatmul.mubr.bf16.gmra.mrb[0].mxu0 %v2239
      %v2275 = vpop.f32.mrb[0].mxu0
      %v2276 = vadd.f32 %v2224, %v2275
      %v2277 = vpop.f32.mrb[0].mxu0
      %v2278 = vpop.f32.mrb[0].mxu0
      %v2279 = vpop.f32.mrb[0].mxu0
      %2280 = vdwg.mxu0
      %v2281 = vmul.f32 %v2276, 0.5
      %v2282 = vmul.f32 %v2276, 0.70710677
      %v2283 = verf.f32.pop %v2282
      %v2284 = vadd.f32 %v2283, 1.0
      %v2285 = vmul.f32 %v2281, %v2284
      %v2286 = vpack.c.bf16 %v2285, %v2285
      %v2287 = vld [vmem:[%s16] sm:$0xf]
      %v2288 = vld [vmem:[%s16 + $0x4] sm:$0xf]
      %v2289 = vld [vmem:[%s16 + $0x8] sm:$0xf]
      %v2290 = vld [vmem:[%s16 + $0xc] sm:$0xf]
      %v2291 = vld [vmem:[%s16 + $0x10] sm:$0xf]
      %v2292 = vld [vmem:[%s16 + $0x14] sm:$0xf]
      %v2293 = vld [vmem:[%s16 + $0x18] sm:$0xf]
      %v2294 = vld [vmem:[%s16 + $0x1c] sm:$0xf]
      %v2295 = vld [vmem:[%s17] sm:$0x1]
      %v2297 = vlaneseq
      %v2298 = vshrl.u32 %v2297, 7
      %v2299 = vsub.s32 0, %v2298
      %v2300 = vrot.slane %v2295, %v2299
      %v2310 = vunpack.c.l.b16 %v2287
      %v2311 = vunpack.c.l.b16 %v2288
      %v2312 = vunpack.c.l.b16 %v2289
      %v2313 = vunpack.c.l.b16 %v2290
      %v2314 = vunpack.c.l.b16 %v2291
      %v2315 = vunpack.c.l.b16 %v2292
      %v2316 = vunpack.c.l.b16 %v2293
      %v2317 = vunpack.c.l.b16 %v2294
      %v2318 = vpack.c.b16 %v2311, %v2310
      %v2319 = vpack.c.b16 %v2313, %v2312
      %v2320 = vpack.c.b16 %v2315, %v2314
      %v2321 = vpack.c.b16 %v2317, %v2316
      %vm2326 = vcmask 523264
      %v2328 = vsel %vm2326, %v2286, 0
      %2330 = vmatprep.subr.bf16.mxu0 0
      %2331 = vmatpush1.bf16.msra.mxu0 %v2318
      %2332 = vmatprep.subr.bf16.mxu0 0
      %2333 = vmatpush1.bf16.msra.mxu0 %v2319
      %2334 = vmatprep.subr.bf16.mxu0 0
      %2335 = vmatpush1.bf16.msra.mxu0 %v2320
      %2336 = vmatprep.subr.bf16.mxu0 0
      %2337 = vmatpush1.bf16.msra.mxu0 %v2321
      %2338 = vmatprep.subr.bf16.mxu0 0
      %2339 = vmatpush1.bf16.msra.mxu0 0
      %2340 = vmatprep.subr.bf16.mxu0 0
      %2341 = vmatpush1.bf16.msra.mxu0 0
      %2342 = vmatprep.subr.bf16.mxu0 0
      %2343 = vmatpush1.bf16.msra.mxu0 0
      %2344 = vmatprep.subr.bf16.mxu0 0
      %2345 = vmatpush1.bf16.msra.mxu0 0
      %2346 = vmatprep.subr.bf16.mxu0 0
      %2347 = vmatpush1.bf16.msra.mxu0 0
      %2348 = vmatprep.subr.bf16.mxu0 0
      %2349 = vmatpush1.bf16.msra.mxu0 0
      %2350 = vmatprep.subr.bf16.mxu0 0
      %2351 = vmatpush1.bf16.msra.mxu0 0
      %2352 = vmatprep.subr.bf16.mxu0 0
      %2353 = vmatpush1.bf16.msra.mxu0 0
      %2354 = vmatprep.subr.bf16.mxu0 0
      %2355 = vmatpush1.bf16.msra.mxu0 0
      %2356 = vmatprep.subr.bf16.mxu0 0
      %2357 = vmatpush1.bf16.msra.mxu0 0
      %2358 = vmatprep.subr.bf16.mxu0 0
      %2359 = vmatpush1.bf16.msra.mxu0 0
      %2360 = vmatprep.subr.bf16.mxu0 0
      %2361 = vmatpush1.bf16.msra.mxu0 0
      %2362 = vmatprep.mubr.bf16.mxu0 0
      %2363 = vmatmul.mubr.bf16.gmra.mrb[0].mxu0 %v2328
      %v2364 = vpop.f32.mrb[0].mxu0
      %v2365 = vadd.f32 %v2300, %v2364
      %v2366 = vpop.f32.mrb[0].mxu0
      %v2367 = vpop.f32.mrb[0].mxu0
      %v2368 = vpop.f32.mrb[0].mxu0
      %2369 = vdwg.mxu0
      %v2370 = vadd.f32 %v2365, %v2213
      %v2371 = vld [vmem:[%s18] sm:$0x1]
      %v2372 = vld [vmem:[%s19] sm:$0x1]
      %v2373 = vsel %vm751, %v2370, 0.0
      %2374 = vadd.xlane.f32.xlu0 %v2373
      %v2375 = vpop.xlane.xlu0 %2374
      %v2376 = vmul.f32 %v2375, %v755
      %v2377 = vsub.f32 %v2370, %v2376
      %v2378 = vmul.f32 %v2377, %v2377
      %v2379 = vsel %vm751, %v2378, 0.0
      %2380 = vadd.xlane.f32.xlu0 %v2379
      %v2381 = vpop.xlane.xlu0 %2380
      %v2382 = vmul.f32 %v2381, %v755
      %v2383 = vadd.f32 %v2382, 1e-12
      %v2384 = vrsqrt.pop %v2383
      %v2385 = vmul.f32 %v2377, %v2384
      %v2387 = vlaneseq
      %v2388 = vshrl.u32 %v2387, 7
      %v2389 = vsub.s32 0, %v2388
      %v2390 = vrot.slane %v2371, %v2389
      %v2392 = vmul.f32 %v2385, %v2390
      %v2394 = vlaneseq
      %v2395 = vshrl.u32 %v2394, 7
      %v2396 = vsub.s32 0, %v2395
      %v2397 = vrot.slane %v2372, %v2396
      %v2399 = vadd.f32 %v2392, %v2397
      %v2400 = vpack.c.bf16 %v2399, %v2399
      %s2401 = scalar_lea.vmem %s4, 64
      %v2402 = vld [vmem:[%s2401] sm:$0xf]
      %v2403 = vld [vmem:[%s2401 + $0x4] sm:$0xf]
      %v2404 = vld [vmem:[%s2401 + $0x8] sm:$0xf]
      %v2405 = vld [vmem:[%s2401 + $0xc] sm:$0xf]
      %v2406 = vld [vmem:[%s2401 + $0x10] sm:$0xf]
      %v2407 = vld [vmem:[%s2401 + $0x14] sm:$0xf]
      %v2408 = vld [vmem:[%s2401 + $0x18] sm:$0xf]
      %v2409 = vld [vmem:[%s2401 + $0x1c] sm:$0xf]
      %v2410 = vld [vmem:[%s2401 + $0x20] sm:$0xf]
      %v2411 = vld [vmem:[%s2401 + $0x24] sm:$0xf]
      %v2412 = vld [vmem:[%s2401 + $0x28] sm:$0xf]
      %v2413 = vld [vmem:[%s2401 + $0x2c] sm:$0xf]
      %v2414 = vld [vmem:[%s2401 + $0x30] sm:$0xf]
      %v2415 = vld [vmem:[%s2401 + $0x34] sm:$0xf]
      %v2416 = vld [vmem:[%s2401 + $0x38] sm:$0xf]
      %v2417 = vld [vmem:[%s2401 + $0x3c] sm:$0xf]
      %s2418 = scalar_lea.vmem %s7, 4
      %v2419 = vld [vmem:[%s2418] sm:$0x1]
      %v2420 = vld [vmem:[%s2418 + $0x1] sm:$0x1]
      %v2421 = vld [vmem:[%s2418 + $0x2] sm:$0x1]
      %v2422 = vld [vmem:[%s2418 + $0x3] sm:$0x1]
      %v2427 = vlaneseq
      %v2428 = vshrl.u32 %v2427, 7
      %v2429 = vsub.s32 0, %v2428
      %v2430 = vrot.slane %v2419, %v2429
      %v2431 = vlaneseq
      %v2432 = vshrl.u32 %v2431, 7
      %v2433 = vsub.s32 0, %v2432
      %v2434 = vrot.slane %v2420, %v2433
      %v2435 = vlaneseq
      %v2436 = vshrl.u32 %v2435, 7
      %v2437 = vsub.s32 0, %v2436
      %v2438 = vrot.slane %v2421, %v2437
      %v2439 = vlaneseq
      %v2440 = vshrl.u32 %v2439, 7
      %v2441 = vsub.s32 0, %v2440
      %v2442 = vrot.slane %v2422, %v2441
      %v2451 = vunpack.c.l.b16 %v2402
      %v2452 = vunpack.c.l.b16 %v2403
      %v2453 = vunpack.c.l.b16 %v2404
      %v2454 = vunpack.c.l.b16 %v2405
      %v2455 = vpack.c.b16 %v2452, %v2451
      %v2456 = vpack.c.b16 %v2454, %v2453
      %v2460 = vsel %vm751, %v2400, 0
      %2462 = vmatprep.subr.bf16.mxu0 0
      %2463 = vmatpush1.bf16.msra.mxu0 %v2455
      %2464 = vmatprep.subr.bf16.mxu0 0
      %2465 = vmatpush1.bf16.msra.mxu0 %v2456
      %2466 = vmatprep.subr.bf16.mxu0 0
      %2467 = vmatpush1.bf16.msra.mxu0 0
      %2468 = vmatprep.subr.bf16.mxu0 0
      %2469 = vmatpush1.bf16.msra.mxu0 0
      %2470 = vmatprep.subr.bf16.mxu0 0
      %2471 = vmatpush1.bf16.msra.mxu0 0
      %2472 = vmatprep.subr.bf16.mxu0 0
      %2473 = vmatpush1.bf16.msra.mxu0 0
      %2474 = vmatprep.subr.bf16.mxu0 0
      %2475 = vmatpush1.bf16.msra.mxu0 0
      %2476 = vmatprep.subr.bf16.mxu0 0
      %2477 = vmatpush1.bf16.msra.mxu0 0
      %2478 = vmatprep.subr.bf16.mxu0 0
      %2479 = vmatpush1.bf16.msra.mxu0 0
      %2480 = vmatprep.subr.bf16.mxu0 0
      %2481 = vmatpush1.bf16.msra.mxu0 0
      %2482 = vmatprep.subr.bf16.mxu0 0
      %2483 = vmatpush1.bf16.msra.mxu0 0
      %2484 = vmatprep.subr.bf16.mxu0 0
      %2485 = vmatpush1.bf16.msra.mxu0 0
      %2486 = vmatprep.subr.bf16.mxu0 0
      %2487 = vmatpush1.bf16.msra.mxu0 0
      %2488 = vmatprep.subr.bf16.mxu0 0
      %2489 = vmatpush1.bf16.msra.mxu0 0
      %2490 = vmatprep.subr.bf16.mxu0 0
      %2491 = vmatpush1.bf16.msra.mxu0 0
      %2492 = vmatprep.subr.bf16.mxu0 0
      %2493 = vmatpush1.bf16.msra.mxu0 0
      %2494 = vmatprep.mubr.bf16.mxu0 0
      %2495 = vmatmul.mubr.bf16.gmra.mrb[0].mxu0 %v2460
      %v2496 = vpop.f32.mrb[0].mxu0
      %v2497 = vadd.f32 %v2430, %v2496
      %v2498 = vpop.f32.mrb[0].mxu0
      %v2499 = vpop.f32.mrb[0].mxu0
      %v2500 = vpop.f32.mrb[0].mxu0
      %2501 = vdwg.mxu0
      %v2506 = vunpack.c.l.b16 %v2406
      %v2507 = vunpack.c.l.b16 %v2407
      %v2508 = vunpack.c.l.b16 %v2408
      %v2509 = vunpack.c.l.b16 %v2409
      %v2510 = vpack.c.b16 %v2507, %v2506
      %v2511 = vpack.c.b16 %v2509, %v2508
      %2514 = vmatprep.subr.bf16.mxu0 0
      %2515 = vmatpush1.bf16.msra.mxu0 %v2510
      %2516 = vmatprep.subr.bf16.mxu0 0
      %2517 = vmatpush1.bf16.msra.mxu0 %v2511
      %2518 = vmatprep.subr.bf16.mxu0 0
      %2519 = vmatpush1.bf16.msra.mxu0 0
      %2520 = vmatprep.subr.bf16.mxu0 0
      %2521 = vmatpush1.bf16.msra.mxu0 0
      %2522 = vmatprep.subr.bf16.mxu0 0
      %2523 = vmatpush1.bf16.msra.mxu0 0
      %2524 = vmatprep.subr.bf16.mxu0 0
      %2525 = vmatpush1.bf16.msra.mxu0 0
      %2526 = vmatprep.subr.bf16.mxu0 0
      %2527 = vmatpush1.bf16.msra.mxu0 0
      %2528 = vmatprep.subr.bf16.mxu0 0
      %2529 = vmatpush1.bf16.msra.mxu0 0
      %2530 = vmatprep.subr.bf16.mxu0 0
      %2531 = vmatpush1.bf16.msra.mxu0 0
      %2532 = vmatprep.subr.bf16.mxu0 0
      %2533 = vmatpush1.bf16.msra.mxu0 0
      %2534 = vmatprep.subr.bf16.mxu0 0
      %2535 = vmatpush1.bf16.msra.mxu0 0
      %2536 = vmatprep.subr.bf16.mxu0 0
      %2537 = vmatpush1.bf16.msra.mxu0 0
      %2538 = vmatprep.subr.bf16.mxu0 0
      %2539 = vmatpush1.bf16.msra.mxu0 0
      %2540 = vmatprep.subr.bf16.mxu0 0
      %2541 = vmatpush1.bf16.msra.mxu0 0
      %2542 = vmatprep.subr.bf16.mxu0 0
      %2543 = vmatpush1.bf16.msra.mxu0 0
      %2544 = vmatprep.subr.bf16.mxu0 0
      %2545 = vmatpush1.bf16.msra.mxu0 0
      %2546 = vmatprep.mubr.bf16.mxu0 0
      %2547 = vmatmul.mubr.bf16.gmra.mrb[0].mxu0 %v2460
      %v2548 = vpop.f32.mrb[0].mxu0
      %v2549 = vadd.f32 %v2434, %v2548
      %v2550 = vpop.f32.mrb[0].mxu0
      %v2551 = vpop.f32.mrb[0].mxu0
      %v2552 = vpop.f32.mrb[0].mxu0
      %2553 = vdwg.mxu0
      %v2558 = vunpack.c.l.b16 %v2410
      %v2559 = vunpack.c.l.b16 %v2411
      %v2560 = vunpack.c.l.b16 %v2412
      %v2561 = vunpack.c.l.b16 %v2413
      %v2562 = vpack.c.b16 %v2559, %v2558
      %v2563 = vpack.c.b16 %v2561, %v2560
      %2566 = vmatprep.subr.bf16.mxu0 0
      %2567 = vmatpush1.bf16.msra.mxu0 %v2562
      %2568 = vmatprep.subr.bf16.mxu0 0
      %2569 = vmatpush1.bf16.msra.mxu0 %v2563
      %2570 = vmatprep.subr.bf16.mxu0 0
      %2571 = vmatpush1.bf16.msra.mxu0 0
      %2572 = vmatprep.subr.bf16.mxu0 0
      %2573 = vmatpush1.bf16.msra.mxu0 0
      %2574 = vmatprep.subr.bf16.mxu0 0
      %2575 = vmatpush1.bf16.msra.mxu0 0
      %2576 = vmatprep.subr.bf16.mxu0 0
      %2577 = vmatpush1.bf16.msra.mxu0 0
      %2578 = vmatprep.subr.bf16.mxu0 0
      %2579 = vmatpush1.bf16.msra.mxu0 0
      %2580 = vmatprep.subr.bf16.mxu0 0
      %2581 = vmatpush1.bf16.msra.mxu0 0
      %2582 = vmatprep.subr.bf16.mxu0 0
      %2583 = vmatpush1.bf16.msra.mxu0 0
      %2584 = vmatprep.subr.bf16.mxu0 0
      %2585 = vmatpush1.bf16.msra.mxu0 0
      %2586 = vmatprep.subr.bf16.mxu0 0
      %2587 = vmatpush1.bf16.msra.mxu0 0
      %2588 = vmatprep.subr.bf16.mxu0 0
      %2589 = vmatpush1.bf16.msra.mxu0 0
      %2590 = vmatprep.subr.bf16.mxu0 0
      %2591 = vmatpush1.bf16.msra.mxu0 0
      %2592 = vmatprep.subr.bf16.mxu0 0
      %2593 = vmatpush1.bf16.msra.mxu0 0
      %2594 = vmatprep.subr.bf16.mxu0 0
      %2595 = vmatpush1.bf16.msra.mxu0 0
      %2596 = vmatprep.subr.bf16.mxu0 0
      %2597 = vmatpush1.bf16.msra.mxu0 0
      %2598 = vmatprep.mubr.bf16.mxu0 0
      %2599 = vmatmul.mubr.bf16.gmra.mrb[0].mxu0 %v2460
      %v2600 = vpop.f32.mrb[0].mxu0
      %v2601 = vadd.f32 %v2438, %v2600
      %v2602 = vpop.f32.mrb[0].mxu0
      %v2603 = vpop.f32.mrb[0].mxu0
      %v2604 = vpop.f32.mrb[0].mxu0
      %2605 = vdwg.mxu0
      %v2610 = vunpack.c.l.b16 %v2414
      %v2611 = vunpack.c.l.b16 %v2415
      %v2612 = vunpack.c.l.b16 %v2416
      %v2613 = vunpack.c.l.b16 %v2417
      %v2614 = vpack.c.b16 %v2611, %v2610
      %v2615 = vpack.c.b16 %v2613, %v2612
      %2618 = vmatprep.subr.bf16.mxu0 0
      %2619 = vmatpush1.bf16.msra.mxu0 %v2614
      %2620 = vmatprep.subr.bf16.mxu0 0
      %2621 = vmatpush1.bf16.msra.mxu0 %v2615
      %2622 = vmatprep.subr.bf16.mxu0 0
      %2623 = vmatpush1.bf16.msra.mxu0 0
      %2624 = vmatprep.subr.bf16.mxu0 0
      %2625 = vmatpush1.bf16.msra.mxu0 0
      %2626 = vmatprep.subr.bf16.mxu0 0
      %2627 = vmatpush1.bf16.msra.mxu0 0
      %2628 = vmatprep.subr.bf16.mxu0 0
      %2629 = vmatpush1.bf16.msra.mxu0 0
      %2630 = vmatprep.subr.bf16.mxu0 0
      %2631 = vmatpush1.bf16.msra.mxu0 0
      %2632 = vmatprep.subr.bf16.mxu0 0
      %2633 = vmatpush1.bf16.msra.mxu0 0
      %2634 = vmatprep.subr.bf16.mxu0 0
      %2635 = vmatpush1.bf16.msra.mxu0 0
      %2636 = vmatprep.subr.bf16.mxu0 0
      %2637 = vmatpush1.bf16.msra.mxu0 0
      %2638 = vmatprep.subr.bf16.mxu0 0
      %2639 = vmatpush1.bf16.msra.mxu0 0
      %2640 = vmatprep.subr.bf16.mxu0 0
      %2641 = vmatpush1.bf16.msra.mxu0 0
      %2642 = vmatprep.subr.bf16.mxu0 0
      %2643 = vmatpush1.bf16.msra.mxu0 0
      %2644 = vmatprep.subr.bf16.mxu0 0
      %2645 = vmatpush1.bf16.msra.mxu0 0
      %2646 = vmatprep.subr.bf16.mxu0 0
      %2647 = vmatpush1.bf16.msra.mxu0 0
      %2648 = vmatprep.subr.bf16.mxu0 0
      %2649 = vmatpush1.bf16.msra.mxu0 0
      %2650 = vmatprep.mubr.bf16.mxu0 0
      %2651 = vmatmul.mubr.bf16.gmra.mrb[0].mxu0 %v2460
      %v2652 = vpop.f32.mrb[0].mxu0
      %v2653 = vadd.f32 %v2442, %v2652
      %v2654 = vpop.f32.mrb[0].mxu0
      %v2655 = vpop.f32.mrb[0].mxu0
      %v2656 = vpop.f32.mrb[0].mxu0
      %2657 = vdwg.mxu0
      %s2658 = scalar_lea.vmem %s5, 64
      %v2659 = vld [vmem:[%s2658] sm:$0xf]
      %v2660 = vld [vmem:[%s2658 + $0x4] sm:$0xf]
      %v2661 = vld [vmem:[%s2658 + $0x8] sm:$0xf]
      %v2662 = vld [vmem:[%s2658 + $0xc] sm:$0xf]
      %v2663 = vld [vmem:[%s2658 + $0x10] sm:$0xf]
      %v2664 = vld [vmem:[%s2658 + $0x14] sm:$0xf]
      %v2665 = vld [vmem:[%s2658 + $0x18] sm:$0xf]
      %v2666 = vld [vmem:[%s2658 + $0x1c] sm:$0xf]
      %v2667 = vld [vmem:[%s2658 + $0x20] sm:$0xf]
      %v2668 = vld [vmem:[%s2658 + $0x24] sm:$0xf]
      %v2669 = vld [vmem:[%s2658 + $0x28] sm:$0xf]
      %v2670 = vld [vmem:[%s2658 + $0x2c] sm:$0xf]
      %v2671 = vld [vmem:[%s2658 + $0x30] sm:$0xf]
      %v2672 = vld [vmem:[%s2658 + $0x34] sm:$0xf]
      %v2673 = vld [vmem:[%s2658 + $0x38] sm:$0xf]
      %v2674 = vld [vmem:[%s2658 + $0x3c] sm:$0xf]
      %s2675 = scalar_lea.vmem %s8, 4
      %v2676 = vld [vmem:[%s2675] sm:$0x1]
      %v2677 = vld [vmem:[%s2675 + $0x1] sm:$0x1]
      %v2678 = vld [vmem:[%s2675 + $0x2] sm:$0x1]
      %v2679 = vld [vmem:[%s2675 + $0x3] sm:$0x1]
      %v2684 = vlaneseq
      %v2685 = vshrl.u32 %v2684, 7
      %v2686 = vsub.s32 0, %v2685
      %v2687 = vrot.slane %v2676, %v2686
      %v2688 = vlaneseq
      %v2689 = vshrl.u32 %v2688, 7
      %v2690 = vsub.s32 0, %v2689
      %v2691 = vrot.slane %v2677, %v2690
      %v2692 = vlaneseq
      %v2693 = vshrl.u32 %v2692, 7
      %v2694 = vsub.s32 0, %v2693
      %v2695 = vrot.slane %v2678, %v2694
      %v2696 = vlaneseq
      %v2697 = vshrl.u32 %v2696, 7
      %v2698 = vsub.s32 0, %v2697
      %v2699 = vrot.slane %v2679, %v2698
      %v2708 = vunpack.c.l.b16 %v2659
      %v2709 = vunpack.c.l.b16 %v2660
      %v2710 = vunpack.c.l.b16 %v2661
      %v2711 = vunpack.c.l.b16 %v2662
      %v2712 = vpack.c.b16 %v2709, %v2708
      %v2713 = vpack.c.b16 %v2711, %v2710
      %2716 = vmatprep.subr.bf16.mxu0 0
      %2717 = vmatpush1.bf16.msra.mxu0 %v2712
      %2718 = vmatprep.subr.bf16.mxu0 0
      %2719 = vmatpush1.bf16.msra.mxu0 %v2713
      %2720 = vmatprep.subr.bf16.mxu0 0
      %2721 = vmatpush1.bf16.msra.mxu0 0
      %2722 = vmatprep.subr.bf16.mxu0 0
      %2723 = vmatpush1.bf16.msra.mxu0 0
      %2724 = vmatprep.subr.bf16.mxu0 0
      %2725 = vmatpush1.bf16.msra.mxu0 0
      %2726 = vmatprep.subr.bf16.mxu0 0
      %2727 = vmatpush1.bf16.msra.mxu0 0
      %2728 = vmatprep.subr.bf16.mxu0 0
      %2729 = vmatpush1.bf16.msra.mxu0 0
      %2730 = vmatprep.subr.bf16.mxu0 0
      %2731 = vmatpush1.bf16.msra.mxu0 0
      %2732 = vmatprep.subr.bf16.mxu0 0
      %2733 = vmatpush1.bf16.msra.mxu0 0
      %2734 = vmatprep.subr.bf16.mxu0 0
      %2735 = vmatpush1.bf16.msra.mxu0 0
      %2736 = vmatprep.subr.bf16.mxu0 0
      %2737 = vmatpush1.bf16.msra.mxu0 0
      %2738 = vmatprep.subr.bf16.mxu0 0
      %2739 = vmatpush1.bf16.msra.mxu0 0
      %2740 = vmatprep.subr.bf16.mxu0 0
      %2741 = vmatpush1.bf16.msra.mxu0 0
      %2742 = vmatprep.subr.bf16.mxu0 0
      %2743 = vmatpush1.bf16.msra.mxu0 0
      %2744 = vmatprep.subr.bf16.mxu0 0
      %2745 = vmatpush1.bf16.msra.mxu0 0
      %2746 = vmatprep.subr.bf16.mxu0 0
      %2747 = vmatpush1.bf16.msra.mxu0 0
      %2748 = vmatprep.mubr.bf16.mxu0 0
      %2749 = vmatmul.mubr.bf16.gmra.mrb[0].mxu0 %v2460
      %v2750 = vpop.f32.mrb[0].mxu0
      %v2751 = vadd.f32 %v2687, %v2750
      %v2752 = vpop.f32.mrb[0].mxu0
      %v2753 = vpop.f32.mrb[0].mxu0
      %v2754 = vpop.f32.mrb[0].mxu0
      %2755 = vdwg.mxu0
      %v2760 = vunpack.c.l.b16 %v2663
      %v2761 = vunpack.c.l.b16 %v2664
      %v2762 = vunpack.c.l.b16 %v2665
      %v2763 = vunpack.c.l.b16 %v2666
      %v2764 = vpack.c.b16 %v2761, %v2760
      %v2765 = vpack.c.b16 %v2763, %v2762
      %2768 = vmatprep.subr.bf16.mxu0 0
      %2769 = vmatpush1.bf16.msra.mxu0 %v2764
      %2770 = vmatprep.subr.bf16.mxu0 0
      %2771 = vmatpush1.bf16.msra.mxu0 %v2765
      %2772 = vmatprep.subr.bf16.mxu0 0
      %2773 = vmatpush1.bf16.msra.mxu0 0
      %2774 = vmatprep.subr.bf16.mxu0 0
      %2775 = vmatpush1.bf16.msra.mxu0 0
      %2776 = vmatprep.subr.bf16.mxu0 0
      %2777 = vmatpush1.bf16.msra.mxu0 0
      %2778 = vmatprep.subr.bf16.mxu0 0
      %2779 = vmatpush1.bf16.msra.mxu0 0
      %2780 = vmatprep.subr.bf16.mxu0 0
      %2781 = vmatpush1.bf16.msra.mxu0 0
      %2782 = vmatprep.subr.bf16.mxu0 0
      %2783 = vmatpush1.bf16.msra.mxu0 0
      %2784 = vmatprep.subr.bf16.mxu0 0
      %2785 = vmatpush1.bf16.msra.mxu0 0
      %2786 = vmatprep.subr.bf16.mxu0 0
      %2787 = vmatpush1.bf16.msra.mxu0 0
      %2788 = vmatprep.subr.bf16.mxu0 0
      %2789 = vmatpush1.bf16.msra.mxu0 0
      %2790 = vmatprep.subr.bf16.mxu0 0
      %2791 = vmatpush1.bf16.msra.mxu0 0
      %2792 = vmatprep.subr.bf16.mxu0 0
      %2793 = vmatpush1.bf16.msra.mxu0 0
      %2794 = vmatprep.subr.bf16.mxu0 0
      %2795 = vmatpush1.bf16.msra.mxu0 0
      %2796 = vmatprep.subr.bf16.mxu0 0
      %2797 = vmatpush1.bf16.msra.mxu0 0
      %2798 = vmatprep.subr.bf16.mxu0 0
      %2799 = vmatpush1.bf16.msra.mxu0 0
      %2800 = vmatprep.mubr.bf16.mxu0 0
      %2801 = vmatmul.mubr.bf16.gmra.mrb[0].mxu0 %v2460
      %v2802 = vpop.f32.mrb[0].mxu0
      %v2803 = vadd.f32 %v2691, %v2802
      %v2804 = vpop.f32.mrb[0].mxu0
      %v2805 = vpop.f32.mrb[0].mxu0
      %v2806 = vpop.f32.mrb[0].mxu0
      %2807 = vdwg.mxu0
      %v2812 = vunpack.c.l.b16 %v2667
      %v2813 = vunpack.c.l.b16 %v2668
      %v2814 = vunpack.c.l.b16 %v2669
      %v2815 = vunpack.c.l.b16 %v2670
      %v2816 = vpack.c.b16 %v2813, %v2812
      %v2817 = vpack.c.b16 %v2815, %v2814
      %2820 = vmatprep.subr.bf16.mxu0 0
      %2821 = vmatpush1.bf16.msra.mxu0 %v2816
      %2822 = vmatprep.subr.bf16.mxu0 0
      %2823 = vmatpush1.bf16.msra.mxu0 %v2817
      %2824 = vmatprep.subr.bf16.mxu0 0
      %2825 = vmatpush1.bf16.msra.mxu0 0
      %2826 = vmatprep.subr.bf16.mxu0 0
      %2827 = vmatpush1.bf16.msra.mxu0 0
      %2828 = vmatprep.subr.bf16.mxu0 0
      %2829 = vmatpush1.bf16.msra.mxu0 0
      %2830 = vmatprep.subr.bf16.mxu0 0
      %2831 = vmatpush1.bf16.msra.mxu0 0
      %2832 = vmatprep.subr.bf16.mxu0 0
      %2833 = vmatpush1.bf16.msra.mxu0 0
      %2834 = vmatprep.subr.bf16.mxu0 0
      %2835 = vmatpush1.bf16.msra.mxu0 0
      %2836 = vmatprep.subr.bf16.mxu0 0
      %2837 = vmatpush1.bf16.msra.mxu0 0
      %2838 = vmatprep.subr.bf16.mxu0 0
      %2839 = vmatpush1.bf16.msra.mxu0 0
      %2840 = vmatprep.subr.bf16.mxu0 0
      %2841 = vmatpush1.bf16.msra.mxu0 0
      %2842 = vmatprep.subr.bf16.mxu0 0
      %2843 = vmatpush1.bf16.msra.mxu0 0
      %2844 = vmatprep.subr.bf16.mxu0 0
      %2845 = vmatpush1.bf16.msra.mxu0 0
      %2846 = vmatprep.subr.bf16.mxu0 0
      %2847 = vmatpush1.bf16.msra.mxu0 0
      %2848 = vmatprep.subr.bf16.mxu0 0
      %2849 = vmatpush1.bf16.msra.mxu0 0
      %2850 = vmatprep.subr.bf16.mxu0 0
      %2851 = vmatpush1.bf16.msra.mxu0 0
      %2852 = vmatprep.mubr.bf16.mxu0 0
      %2853 = vmatmul.mubr.bf16.gmra.mrb[0].mxu0 %v2460
      %v2854 = vpop.f32.mrb[0].mxu0
      %v2855 = vadd.f32 %v2695, %v2854
      %v2856 = vpop.f32.mrb[0].mxu0
      %v2857 = vpop.f32.mrb[0].mxu0
      %v2858 = vpop.f32.mrb[0].mxu0
      %2859 = vdwg.mxu0
      %v2864 = vunpack.c.l.b16 %v2671
      %v2865 = vunpack.c.l.b16 %v2672
      %v2866 = vunpack.c.l.b16 %v2673
      %v2867 = vunpack.c.l.b16 %v2674
      %v2868 = vpack.c.b16 %v2865, %v2864
      %v2869 = vpack.c.b16 %v2867, %v2866
      %2872 = vmatprep.subr.bf16.mxu0 0
      %2873 = vmatpush1.bf16.msra.mxu0 %v2868
      %2874 = vmatprep.subr.bf16.mxu0 0
      %2875 = vmatpush1.bf16.msra.mxu0 %v2869
      %2876 = vmatprep.subr.bf16.mxu0 0
      %2877 = vmatpush1.bf16.msra.mxu0 0
      %2878 = vmatprep.subr.bf16.mxu0 0
      %2879 = vmatpush1.bf16.msra.mxu0 0
      %2880 = vmatprep.subr.bf16.mxu0 0
      %2881 = vmatpush1.bf16.msra.mxu0 0
      %2882 = vmatprep.subr.bf16.mxu0 0
      %2883 = vmatpush1.bf16.msra.mxu0 0
      %2884 = vmatprep.subr.bf16.mxu0 0
      %2885 = vmatpush1.bf16.msra.mxu0 0
      %2886 = vmatprep.subr.bf16.mxu0 0
      %2887 = vmatpush1.bf16.msra.mxu0 0
      %2888 = vmatprep.subr.bf16.mxu0 0
      %2889 = vmatpush1.bf16.msra.mxu0 0
      %2890 = vmatprep.subr.bf16.mxu0 0
      %2891 = vmatpush1.bf16.msra.mxu0 0
      %2892 = vmatprep.subr.bf16.mxu0 0
      %2893 = vmatpush1.bf16.msra.mxu0 0
      %2894 = vmatprep.subr.bf16.mxu0 0
      %2895 = vmatpush1.bf16.msra.mxu0 0
      %2896 = vmatprep.subr.bf16.mxu0 0
      %2897 = vmatpush1.bf16.msra.mxu0 0
      %2898 = vmatprep.subr.bf16.mxu0 0
      %2899 = vmatpush1.bf16.msra.mxu0 0
      %2900 = vmatprep.subr.bf16.mxu0 0
      %2901 = vmatpush1.bf16.msra.mxu0 0
      %2902 = vmatprep.subr.bf16.mxu0 0
      %2903 = vmatpush1.bf16.msra.mxu0 0
      %2904 = vmatprep.mubr.bf16.mxu0 0
      %2905 = vmatmul.mubr.bf16.gmra.mrb[0].mxu0 %v2460
      %v2906 = vpop.f32.mrb[0].mxu0
      %v2907 = vadd.f32 %v2699, %v2906
      %v2908 = vpop.f32.mrb[0].mxu0
      %v2909 = vpop.f32.mrb[0].mxu0
      %v2910 = vpop.f32.mrb[0].mxu0
      %2911 = vdwg.mxu0
      %s2912 = scalar_lea.vmem %s6, 64
      %v2913 = vld [vmem:[%s2912] sm:$0xf]
      %v2914 = vld [vmem:[%s2912 + $0x4] sm:$0xf]
      %v2915 = vld [vmem:[%s2912 + $0x8] sm:$0xf]
      %v2916 = vld [vmem:[%s2912 + $0xc] sm:$0xf]
      %v2917 = vld [vmem:[%s2912 + $0x10] sm:$0xf]
      %v2918 = vld [vmem:[%s2912 + $0x14] sm:$0xf]
      %v2919 = vld [vmem:[%s2912 + $0x18] sm:$0xf]
      %v2920 = vld [vmem:[%s2912 + $0x1c] sm:$0xf]
      %v2921 = vld [vmem:[%s2912 + $0x20] sm:$0xf]
      %v2922 = vld [vmem:[%s2912 + $0x24] sm:$0xf]
      %v2923 = vld [vmem:[%s2912 + $0x28] sm:$0xf]
      %v2924 = vld [vmem:[%s2912 + $0x2c] sm:$0xf]
      %v2925 = vld [vmem:[%s2912 + $0x30] sm:$0xf]
      %v2926 = vld [vmem:[%s2912 + $0x34] sm:$0xf]
      %v2927 = vld [vmem:[%s2912 + $0x38] sm:$0xf]
      %v2928 = vld [vmem:[%s2912 + $0x3c] sm:$0xf]
      %s2929 = scalar_lea.vmem %s9, 4
      %v2930 = vld [vmem:[%s2929] sm:$0x1]
      %v2931 = vld [vmem:[%s2929 + $0x1] sm:$0x1]
      %v2932 = vld [vmem:[%s2929 + $0x2] sm:$0x1]
      %v2933 = vld [vmem:[%s2929 + $0x3] sm:$0x1]
      %v2938 = vlaneseq
      %v2939 = vshrl.u32 %v2938, 7
      %v2940 = vsub.s32 0, %v2939
      %v2941 = vrot.slane %v2930, %v2940
      %v2942 = vlaneseq
      %v2943 = vshrl.u32 %v2942, 7
      %v2944 = vsub.s32 0, %v2943
      %v2945 = vrot.slane %v2931, %v2944
      %v2946 = vlaneseq
      %v2947 = vshrl.u32 %v2946, 7
      %v2948 = vsub.s32 0, %v2947
      %v2949 = vrot.slane %v2932, %v2948
      %v2950 = vlaneseq
      %v2951 = vshrl.u32 %v2950, 7
      %v2952 = vsub.s32 0, %v2951
      %v2953 = vrot.slane %v2933, %v2952
      %v2962 = vunpack.c.l.b16 %v2913
      %v2963 = vunpack.c.l.b16 %v2914
      %v2964 = vunpack.c.l.b16 %v2915
      %v2965 = vunpack.c.l.b16 %v2916
      %v2966 = vpack.c.b16 %v2963, %v2962
      %v2967 = vpack.c.b16 %v2965, %v2964
      %2970 = vmatprep.subr.bf16.mxu0 0
      %2971 = vmatpush1.bf16.msra.mxu0 %v2966
      %2972 = vmatprep.subr.bf16.mxu0 0
      %2973 = vmatpush1.bf16.msra.mxu0 %v2967
      %2974 = vmatprep.subr.bf16.mxu0 0
      %2975 = vmatpush1.bf16.msra.mxu0 0
      %2976 = vmatprep.subr.bf16.mxu0 0
      %2977 = vmatpush1.bf16.msra.mxu0 0
      %2978 = vmatprep.subr.bf16.mxu0 0
      %2979 = vmatpush1.bf16.msra.mxu0 0
      %2980 = vmatprep.subr.bf16.mxu0 0
      %2981 = vmatpush1.bf16.msra.mxu0 0
      %2982 = vmatprep.subr.bf16.mxu0 0
      %2983 = vmatpush1.bf16.msra.mxu0 0
      %2984 = vmatprep.subr.bf16.mxu0 0
      %2985 = vmatpush1.bf16.msra.mxu0 0
      %2986 = vmatprep.subr.bf16.mxu0 0
      %2987 = vmatpush1.bf16.msra.mxu0 0
      %2988 = vmatprep.subr.bf16.mxu0 0
      %2989 = vmatpush1.bf16.msra.mxu0 0
      %2990 = vmatprep.subr.bf16.mxu0 0
      %2991 = vmatpush1.bf16.msra.mxu0 0
      %2992 = vmatprep.subr.bf16.mxu0 0
      %2993 = vmatpush1.bf16.msra.mxu0 0
      %2994 = vmatprep.subr.bf16.mxu0 0
      %2995 = vmatpush1.bf16.msra.mxu0 0
      %2996 = vmatprep.subr.bf16.mxu0 0
      %2997 = vmatpush1.bf16.msra.mxu0 0
      %2998 = vmatprep.subr.bf16.mxu0 0
      %2999 = vmatpush1.bf16.msra.mxu0 0
      %3000 = vmatprep.subr.bf16.mxu0 0
      %3001 = vmatpush1.bf16.msra.mxu0 0
      %3002 = vmatprep.mubr.bf16.mxu0 0
      %3003 = vmatmul.mubr.bf16.gmra.mrb[0].mxu0 %v2460
      %v3004 = vpop.f32.mrb[0].mxu0
      %v3005 = vadd.f32 %v2941, %v3004
      %v3006 = vpop.f32.mrb[0].mxu0
      %v3007 = vpop.f32.mrb[0].mxu0
      %v3008 = vpop.f32.mrb[0].mxu0
      %3009 = vdwg.mxu0
      %v3014 = vunpack.c.l.b16 %v2917
      %v3015 = vunpack.c.l.b16 %v2918
      %v3016 = vunpack.c.l.b16 %v2919
      %v3017 = vunpack.c.l.b16 %v2920
      %v3018 = vpack.c.b16 %v3015, %v3014
      %v3019 = vpack.c.b16 %v3017, %v3016
      %3022 = vmatprep.subr.bf16.mxu0 0
      %3023 = vmatpush1.bf16.msra.mxu0 %v3018
      %3024 = vmatprep.subr.bf16.mxu0 0
      %3025 = vmatpush1.bf16.msra.mxu0 %v3019
      %3026 = vmatprep.subr.bf16.mxu0 0
      %3027 = vmatpush1.bf16.msra.mxu0 0
      %3028 = vmatprep.subr.bf16.mxu0 0
      %3029 = vmatpush1.bf16.msra.mxu0 0
      %3030 = vmatprep.subr.bf16.mxu0 0
      %3031 = vmatpush1.bf16.msra.mxu0 0
      %3032 = vmatprep.subr.bf16.mxu0 0
      %3033 = vmatpush1.bf16.msra.mxu0 0
      %3034 = vmatprep.subr.bf16.mxu0 0
      %3035 = vmatpush1.bf16.msra.mxu0 0
      %3036 = vmatprep.subr.bf16.mxu0 0
      %3037 = vmatpush1.bf16.msra.mxu0 0
      %3038 = vmatprep.subr.bf16.mxu0 0
      %3039 = vmatpush1.bf16.msra.mxu0 0
      %3040 = vmatprep.subr.bf16.mxu0 0
      %3041 = vmatpush1.bf16.msra.mxu0 0
      %3042 = vmatprep.subr.bf16.mxu0 0
      %3043 = vmatpush1.bf16.msra.mxu0 0
      %3044 = vmatprep.subr.bf16.mxu0 0
      %3045 = vmatpush1.bf16.msra.mxu0 0
      %3046 = vmatprep.subr.bf16.mxu0 0
      %3047 = vmatpush1.bf16.msra.mxu0 0
      %3048 = vmatprep.subr.bf16.mxu0 0
      %3049 = vmatpush1.bf16.msra.mxu0 0
      %3050 = vmatprep.subr.bf16.mxu0 0
      %3051 = vmatpush1.bf16.msra.mxu0 0
      %3052 = vmatprep.subr.bf16.mxu0 0
      %3053 = vmatpush1.bf16.msra.mxu0 0
      %3054 = vmatprep.mubr.bf16.mxu0 0
      %3055 = vmatmul.mubr.bf16.gmra.mrb[0].mxu0 %v2460
      %v3056 = vpop.f32.mrb[0].mxu0
      %v3057 = vadd.f32 %v2945, %v3056
      %v3058 = vpop.f32.mrb[0].mxu0
      %v3059 = vpop.f32.mrb[0].mxu0
      %v3060 = vpop.f32.mrb[0].mxu0
      %3061 = vdwg.mxu0
      %v3066 = vunpack.c.l.b16 %v2921
      %v3067 = vunpack.c.l.b16 %v2922
      %v3068 = vunpack.c.l.b16 %v2923
      %v3069 = vunpack.c.l.b16 %v2924
      %v3070 = vpack.c.b16 %v3067, %v3066
      %v3071 = vpack.c.b16 %v3069, %v3068
      %3074 = vmatprep.subr.bf16.mxu0 0
      %3075 = vmatpush1.bf16.msra.mxu0 %v3070
      %3076 = vmatprep.subr.bf16.mxu0 0
      %3077 = vmatpush1.bf16.msra.mxu0 %v3071
      %3078 = vmatprep.subr.bf16.mxu0 0
      %3079 = vmatpush1.bf16.msra.mxu0 0
      %3080 = vmatprep.subr.bf16.mxu0 0
      %3081 = vmatpush1.bf16.msra.mxu0 0
      %3082 = vmatprep.subr.bf16.mxu0 0
      %3083 = vmatpush1.bf16.msra.mxu0 0
      %3084 = vmatprep.subr.bf16.mxu0 0
      %3085 = vmatpush1.bf16.msra.mxu0 0
      %3086 = vmatprep.subr.bf16.mxu0 0
      %3087 = vmatpush1.bf16.msra.mxu0 0
      %3088 = vmatprep.subr.bf16.mxu0 0
      %3089 = vmatpush1.bf16.msra.mxu0 0
      %3090 = vmatprep.subr.bf16.mxu0 0
      %3091 = vmatpush1.bf16.msra.mxu0 0
      %3092 = vmatprep.subr.bf16.mxu0 0
      %3093 = vmatpush1.bf16.msra.mxu0 0
      %3094 = vmatprep.subr.bf16.mxu0 0
      %3095 = vmatpush1.bf16.msra.mxu0 0
      %3096 = vmatprep.subr.bf16.mxu0 0
      %3097 = vmatpush1.bf16.msra.mxu0 0
      %3098 = vmatprep.subr.bf16.mxu0 0
      %3099 = vmatpush1.bf16.msra.mxu0 0
      %3100 = vmatprep.subr.bf16.mxu0 0
      %3101 = vmatpush1.bf16.msra.mxu0 0
      %3102 = vmatprep.subr.bf16.mxu0 0
      %3103 = vmatpush1.bf16.msra.mxu0 0
      %3104 = vmatprep.subr.bf16.mxu0 0
      %3105 = vmatpush1.bf16.msra.mxu0 0
      %3106 = vmatprep.mubr.bf16.mxu0 0
      %3107 = vmatmul.mubr.bf16.gmra.mrb[0].mxu0 %v2460
      %v3108 = vpop.f32.mrb[0].mxu0
      %v3109 = vadd.f32 %v2949, %v3108
      %v3110 = vpop.f32.mrb[0].mxu0
      %v3111 = vpop.f32.mrb[0].mxu0
      %v3112 = vpop.f32.mrb[0].mxu0
      %3113 = vdwg.mxu0
      %v3118 = vunpack.c.l.b16 %v2925
      %v3119 = vunpack.c.l.b16 %v2926
      %v3120 = vunpack.c.l.b16 %v2927
      %v3121 = vunpack.c.l.b16 %v2928
      %v3122 = vpack.c.b16 %v3119, %v3118
      %v3123 = vpack.c.b16 %v3121, %v3120
      %3126 = vmatprep.subr.bf16.mxu0 0
      %3127 = vmatpush1.bf16.msra.mxu0 %v3122
      %3128 = vmatprep.subr.bf16.mxu0 0
      %3129 = vmatpush1.bf16.msra.mxu0 %v3123
      %3130 = vmatprep.subr.bf16.mxu0 0
      %3131 = vmatpush1.bf16.msra.mxu0 0
      %3132 = vmatprep.subr.bf16.mxu0 0
      %3133 = vmatpush1.bf16.msra.mxu0 0
      %3134 = vmatprep.subr.bf16.mxu0 0
      %3135 = vmatpush1.bf16.msra.mxu0 0
      %3136 = vmatprep.subr.bf16.mxu0 0
      %3137 = vmatpush1.bf16.msra.mxu0 0
      %3138 = vmatprep.subr.bf16.mxu0 0
      %3139 = vmatpush1.bf16.msra.mxu0 0
      %3140 = vmatprep.subr.bf16.mxu0 0
      %3141 = vmatpush1.bf16.msra.mxu0 0
      %3142 = vmatprep.subr.bf16.mxu0 0
      %3143 = vmatpush1.bf16.msra.mxu0 0
      %3144 = vmatprep.subr.bf16.mxu0 0
      %3145 = vmatpush1.bf16.msra.mxu0 0
      %3146 = vmatprep.subr.bf16.mxu0 0
      %3147 = vmatpush1.bf16.msra.mxu0 0
      %3148 = vmatprep.subr.bf16.mxu0 0
      %3149 = vmatpush1.bf16.msra.mxu0 0
      %3150 = vmatprep.subr.bf16.mxu0 0
      %3151 = vmatpush1.bf16.msra.mxu0 0
      %3152 = vmatprep.subr.bf16.mxu0 0
      %3153 = vmatpush1.bf16.msra.mxu0 0
      %3154 = vmatprep.subr.bf16.mxu0 0
      %3155 = vmatpush1.bf16.msra.mxu0 0
      %3156 = vmatprep.subr.bf16.mxu0 0
      %3157 = vmatpush1.bf16.msra.mxu0 0
      %3158 = vmatprep.mubr.bf16.mxu0 0
      %3159 = vmatmul.mubr.bf16.gmra.mrb[0].mxu0 %v2460
      %v3160 = vpop.f32.mrb[0].mxu0
      %v3161 = vadd.f32 %v2953, %v3160
      %v3162 = vpop.f32.mrb[0].mxu0
      %v3163 = vpop.f32.mrb[0].mxu0
      %v3164 = vpop.f32.mrb[0].mxu0
      %3165 = vdwg.mxu0
      %v3166 = vpack.c.bf16 %v2497, %v2497
      %v3167 = vpack.c.bf16 %v2549, %v2549
      %v3168 = vpack.c.bf16 %v2601, %v2601
      %v3169 = vpack.c.bf16 %v2653, %v2653
      %v3170 = vpack.c.bf16 %v2751, %v2751
      %v3171 = vpack.c.bf16 %v2803, %v2803
      %v3172 = vpack.c.bf16 %v2855, %v2855
      %v3173 = vpack.c.bf16 %v2907, %v2907
      %v3175 = vsel %vm1555, %v3166, 0
      %v3178 = vsel %vm1555, %v3170, 0
      %3180 = vmatprep.subr.bf16.mxu0 0
      %3181 = vmatpush1.bf16.xpose.msra.mxu0 %v3178
      %3182 = vmatprep.subr.bf16.mxu0 0
      %3183 = vmatpush1.bf16.xpose.msra.mxu0 0
      %3184 = vmatprep.subr.bf16.mxu0 0
      %3185 = vmatpush1.bf16.xpose.msra.mxu0 0
      %3186 = vmatprep.subr.bf16.mxu0 0
      %3187 = vmatpush1.bf16.xpose.msra.mxu0 0
      %3188 = vmatprep.subr.bf16.mxu0 0
      %3189 = vmatpush1.bf16.xpose.msra.mxu0 0
      %3190 = vmatprep.subr.bf16.mxu0 0
      %3191 = vmatpush1.bf16.xpose.msra.mxu0 0
      %3192 = vmatprep.subr.bf16.mxu0 0
      %3193 = vmatpush1.bf16.xpose.msra.mxu0 0
      %3194 = vmatprep.subr.bf16.mxu0 0
      %3195 = vmatpush1.bf16.xpose.msra.mxu0 0
      %3196 = vmatprep.subr.bf16.mxu0 0
      %3197 = vmatpush1.bf16.xpose.msra.mxu0 0
      %3198 = vmatprep.subr.bf16.mxu0 0
      %3199 = vmatpush1.bf16.xpose.msra.mxu0 0
      %3200 = vmatprep.subr.bf16.mxu0 0
      %3201 = vmatpush1.bf16.xpose.msra.mxu0 0
      %3202 = vmatprep.subr.bf16.mxu0 0
      %3203 = vmatpush1.bf16.xpose.msra.mxu0 0
      %3204 = vmatprep.subr.bf16.mxu0 0
      %3205 = vmatpush1.bf16.xpose.msra.mxu0 0
      %3206 = vmatprep.subr.bf16.mxu0 0
      %3207 = vmatpush1.bf16.xpose.msra.mxu0 0
      %3208 = vmatprep.subr.bf16.mxu0 0
      %3209 = vmatpush1.bf16.xpose.msra.mxu0 0
      %3210 = vmatprep.subr.bf16.mxu0 0
      %3211 = vmatpush1.bf16.xpose.msra.mxu0 0
      %3212 = vmatprep.mubr.bf16.mxu0 0
      %3213 = vmatmul.mubr.bf16.gmra.mrb[0].mxu0 %v3175
      %v3214 = vpop.f32.mrb[0].mxu0
      %v3215 = vadd.f32 %v785, %v3214
      %v3216 = vpop.f32.mrb[0].mxu0
      %v3217 = vpop.f32.mrb[0].mxu0
      %v3218 = vpop.f32.mrb[0].mxu0
      %3219 = vdwg.mxu0
      %v3221 = vsel %vm1555, %v3167, 0
      %v3224 = vsel %vm1555, %v3171, 0
      %3226 = vmatprep.subr.bf16.mxu0 0
      %3227 = vmatpush1.bf16.xpose.msra.mxu0 %v3224
      %3228 = vmatprep.subr.bf16.mxu0 0
      %3229 = vmatpush1.bf16.xpose.msra.mxu0 0
      %3230 = vmatprep.subr.bf16.mxu0 0
      %3231 = vmatpush1.bf16.xpose.msra.mxu0 0
      %3232 = vmatprep.subr.bf16.mxu0 0
      %3233 = vmatpush1.bf16.xpose.msra.mxu0 0
      %3234 = vmatprep.subr.bf16.mxu0 0
      %3235 = vmatpush1.bf16.xpose.msra.mxu0 0
      %3236 = vmatprep.subr.bf16.mxu0 0
      %3237 = vmatpush1.bf16.xpose.msra.mxu0 0
      %3238 = vmatprep.subr.bf16.mxu0 0
      %3239 = vmatpush1.bf16.xpose.msra.mxu0 0
      %3240 = vmatprep.subr.bf16.mxu0 0
      %3241 = vmatpush1.bf16.xpose.msra.mxu0 0
      %3242 = vmatprep.subr.bf16.mxu0 0
      %3243 = vmatpush1.bf16.xpose.msra.mxu0 0
      %3244 = vmatprep.subr.bf16.mxu0 0
      %3245 = vmatpush1.bf16.xpose.msra.mxu0 0
      %3246 = vmatprep.subr.bf16.mxu0 0
      %3247 = vmatpush1.bf16.xpose.msra.mxu0 0
      %3248 = vmatprep.subr.bf16.mxu0 0
      %3249 = vmatpush1.bf16.xpose.msra.mxu0 0
      %3250 = vmatprep.subr.bf16.mxu0 0
      %3251 = vmatpush1.bf16.xpose.msra.mxu0 0
      %3252 = vmatprep.subr.bf16.mxu0 0
      %3253 = vmatpush1.bf16.xpose.msra.mxu0 0
      %3254 = vmatprep.subr.bf16.mxu0 0
      %3255 = vmatpush1.bf16.xpose.msra.mxu0 0
      %3256 = vmatprep.subr.bf16.mxu0 0
      %3257 = vmatpush1.bf16.xpose.msra.mxu0 0
      %3258 = vmatprep.mubr.bf16.mxu0 0
      %3259 = vmatmul.mubr.bf16.gmra.mrb[0].mxu0 %v3221
      %v3260 = vpop.f32.mrb[0].mxu0
      %v3261 = vadd.f32 %v785, %v3260
      %v3262 = vpop.f32.mrb[0].mxu0
      %v3263 = vpop.f32.mrb[0].mxu0
      %v3264 = vpop.f32.mrb[0].mxu0
      %3265 = vdwg.mxu0
      %v3267 = vsel %vm1555, %v3168, 0
      %v3270 = vsel %vm1555, %v3172, 0
      %3272 = vmatprep.subr.bf16.mxu0 0
      %3273 = vmatpush1.bf16.xpose.msra.mxu0 %v3270
      %3274 = vmatprep.subr.bf16.mxu0 0
      %3275 = vmatpush1.bf16.xpose.msra.mxu0 0
      %3276 = vmatprep.subr.bf16.mxu0 0
      %3277 = vmatpush1.bf16.xpose.msra.mxu0 0
      %3278 = vmatprep.subr.bf16.mxu0 0
      %3279 = vmatpush1.bf16.xpose.msra.mxu0 0
      %3280 = vmatprep.subr.bf16.mxu0 0
      %3281 = vmatpush1.bf16.xpose.msra.mxu0 0
      %3282 = vmatprep.subr.bf16.mxu0 0
      %3283 = vmatpush1.bf16.xpose.msra.mxu0 0
      %3284 = vmatprep.subr.bf16.mxu0 0
      %3285 = vmatpush1.bf16.xpose.msra.mxu0 0
      %3286 = vmatprep.subr.bf16.mxu0 0
      %3287 = vmatpush1.bf16.xpose.msra.mxu0 0
      %3288 = vmatprep.subr.bf16.mxu0 0
      %3289 = vmatpush1.bf16.xpose.msra.mxu0 0
      %3290 = vmatprep.subr.bf16.mxu0 0
      %3291 = vmatpush1.bf16.xpose.msra.mxu0 0
      %3292 = vmatprep.subr.bf16.mxu0 0
      %3293 = vmatpush1.bf16.xpose.msra.mxu0 0
      %3294 = vmatprep.subr.bf16.mxu0 0
      %3295 = vmatpush1.bf16.xpose.msra.mxu0 0
      %3296 = vmatprep.subr.bf16.mxu0 0
      %3297 = vmatpush1.bf16.xpose.msra.mxu0 0
      %3298 = vmatprep.subr.bf16.mxu0 0
      %3299 = vmatpush1.bf16.xpose.msra.mxu0 0
      %3300 = vmatprep.subr.bf16.mxu0 0
      %3301 = vmatpush1.bf16.xpose.msra.mxu0 0
      %3302 = vmatprep.subr.bf16.mxu0 0
      %3303 = vmatpush1.bf16.xpose.msra.mxu0 0
      %3304 = vmatprep.mubr.bf16.mxu0 0
      %3305 = vmatmul.mubr.bf16.gmra.mrb[0].mxu0 %v3267
      %v3306 = vpop.f32.mrb[0].mxu0
      %v3307 = vadd.f32 %v785, %v3306
      %v3308 = vpop.f32.mrb[0].mxu0
      %v3309 = vpop.f32.mrb[0].mxu0
      %v3310 = vpop.f32.mrb[0].mxu0
      %3311 = vdwg.mxu0
      %v3313 = vsel %vm1555, %v3169, 0
      %v3316 = vsel %vm1555, %v3173, 0
      %3318 = vmatprep.subr.bf16.mxu0 0
      %3319 = vmatpush1.bf16.xpose.msra.mxu0 %v3316
      %3320 = vmatprep.subr.bf16.mxu0 0
      %3321 = vmatpush1.bf16.xpose.msra.mxu0 0
      %3322 = vmatprep.subr.bf16.mxu0 0
      %3323 = vmatpush1.bf16.xpose.msra.mxu0 0
      %3324 = vmatprep.subr.bf16.mxu0 0
      %3325 = vmatpush1.bf16.xpose.msra.mxu0 0
      %3326 = vmatprep.subr.bf16.mxu0 0
      %3327 = vmatpush1.bf16.xpose.msra.mxu0 0
      %3328 = vmatprep.subr.bf16.mxu0 0
      %3329 = vmatpush1.bf16.xpose.msra.mxu0 0
      %3330 = vmatprep.subr.bf16.mxu0 0
      %3331 = vmatpush1.bf16.xpose.msra.mxu0 0
      %3332 = vmatprep.subr.bf16.mxu0 0
      %3333 = vmatpush1.bf16.xpose.msra.mxu0 0
      %3334 = vmatprep.subr.bf16.mxu0 0
      %3335 = vmatpush1.bf16.xpose.msra.mxu0 0
      %3336 = vmatprep.subr.bf16.mxu0 0
      %3337 = vmatpush1.bf16.xpose.msra.mxu0 0
      %3338 = vmatprep.subr.bf16.mxu0 0
      %3339 = vmatpush1.bf16.xpose.msra.mxu0 0
      %3340 = vmatprep.subr.bf16.mxu0 0
      %3341 = vmatpush1.bf16.xpose.msra.mxu0 0
      %3342 = vmatprep.subr.bf16.mxu0 0
      %3343 = vmatpush1.bf16.xpose.msra.mxu0 0
      %3344 = vmatprep.subr.bf16.mxu0 0
      %3345 = vmatpush1.bf16.xpose.msra.mxu0 0
      %3346 = vmatprep.subr.bf16.mxu0 0
      %3347 = vmatpush1.bf16.xpose.msra.mxu0 0
      %3348 = vmatprep.subr.bf16.mxu0 0
      %3349 = vmatpush1.bf16.xpose.msra.mxu0 0
      %3350 = vmatprep.mubr.bf16.mxu0 0
      %3351 = vmatmul.mubr.bf16.gmra.mrb[0].mxu0 %v3313
      %v3352 = vpop.f32.mrb[0].mxu0
      %v3353 = vadd.f32 %v785, %v3352
      %v3354 = vpop.f32.mrb[0].mxu0
      %v3355 = vpop.f32.mrb[0].mxu0
      %v3356 = vpop.f32.mrb[0].mxu0
      %3357 = vdwg.mxu0
      %v3358 = vsel %vm1555, %v3215, -inf
      %3359 = vmax.xlane.f32.xlu0 %v3358
      %v3360 = vpop.xlane.xlu0 %3359
      %v3361 = vsel %vm1555, %v3261, -inf
      %3362 = vmax.xlane.f32.xlu0 %v3361
      %v3363 = vpop.xlane.xlu0 %3362
      %v3364 = vsel %vm1555, %v3307, -inf
      %3365 = vmax.xlane.f32.xlu0 %v3364
      %v3366 = vpop.xlane.xlu0 %3365
      %v3367 = vsel %vm1555, %v3353, -inf
      %3368 = vmax.xlane.f32.xlu0 %v3367
      %v3369 = vpop.xlane.xlu0 %3368
      %v3370 = vsub.f32 %v3215, %v3360
      %v3371 = vsub.f32 %v3261, %v3363
      %v3372 = vsub.f32 %v3307, %v3366
      %v3373 = vsub.f32 %v3353, %v3369
      %v3374 = vmul.f32 %v3370, 1.442695
      %v3375 = vpow.pop %v3374
      %v3376 = vmul.f32 %v3371, 1.442695
      %v3377 = vpow.pop %v3376
      %v3378 = vmul.f32 %v3372, 1.442695
      %v3379 = vpow.pop %v3378
      %v3380 = vmul.f32 %v3373, 1.442695
      %v3381 = vpow.pop %v3380
      %v3382 = vsel %vm1555, %v3375, 0.0
      %3383 = vadd.xlane.f32.xlu0 %v3382
      %v3384 = vpop.xlane.xlu0 %3383
      %v3385 = vsel %vm1555, %v3377, 0.0
      %3386 = vadd.xlane.f32.xlu0 %v3385
      %v3387 = vpop.xlane.xlu0 %3386
      %v3388 = vsel %vm1555, %v3379, 0.0
      %3389 = vadd.xlane.f32.xlu0 %v3388
      %v3390 = vpop.xlane.xlu0 %3389
      %v3391 = vsel %vm1555, %v3381, 0.0
      %3392 = vadd.xlane.f32.xlu0 %v3391
      %v3393 = vpop.xlane.xlu0 %3392
      %v3394 = vrcp.pop %v3384
      %v3395 = vrcp.pop %v3387
      %v3396 = vrcp.pop %v3390
      %v3397 = vrcp.pop %v3393
      %v3398 = vmul.f32 %v3375, %v3394
      %v3399 = vmul.f32 %v3377, %v3395
      %v3400 = vmul.f32 %v3379, %v3396
      %v3401 = vmul.f32 %v3381, %v3397
      %v3402 = vpack.c.bf16 %v3398, %v3398
      %v3403 = vpack.c.bf16 %v3399, %v3399
      %v3404 = vpack.c.bf16 %v3400, %v3400
      %v3405 = vpack.c.bf16 %v3401, %v3401
      %v3406 = vpack.c.bf16 %v3005, %v3005
      %v3407 = vpack.c.bf16 %v3057, %v3057
      %v3408 = vpack.c.bf16 %v3109, %v3109
      %v3409 = vpack.c.bf16 %v3161, %v3161
      %v3411 = vsel %vm1555, %v3402, 0
      %v3414 = vsel %vm1795, %v3406, 0
      %3416 = vmatprep.subr.bf16.mxu0 0
      %3417 = vmatpush1.bf16.msra.mxu0 %v3414
      %3418 = vmatprep.subr.bf16.mxu0 0
      %3419 = vmatpush1.bf16.msra.mxu0 0
      %3420 = vmatprep.subr.bf16.mxu0 0
      %3421 = vmatpush1.bf16.msra.mxu0 0
      %3422 = vmatprep.subr.bf16.mxu0 0
      %3423 = vmatpush1.bf16.msra.mxu0 0
      %3424 = vmatprep.subr.bf16.mxu0 0
      %3425 = vmatpush1.bf16.msra.mxu0 0
      %3426 = vmatprep.subr.bf16.mxu0 0
      %3427 = vmatpush1.bf16.msra.mxu0 0
      %3428 = vmatprep.subr.bf16.mxu0 0
      %3429 = vmatpush1.bf16.msra.mxu0 0
      %3430 = vmatprep.subr.bf16.mxu0 0
      %3431 = vmatpush1.bf16.msra.mxu0 0
      %3432 = vmatprep.subr.bf16.mxu0 0
      %3433 = vmatpush1.bf16.msra.mxu0 0
      %3434 = vmatprep.subr.bf16.mxu0 0
      %3435 = vmatpush1.bf16.msra.mxu0 0
      %3436 = vmatprep.subr.bf16.mxu0 0
      %3437 = vmatpush1.bf16.msra.mxu0 0
      %3438 = vmatprep.subr.bf16.mxu0 0
      %3439 = vmatpush1.bf16.msra.mxu0 0
      %3440 = vmatprep.subr.bf16.mxu0 0
      %3441 = vmatpush1.bf16.msra.mxu0 0
      %3442 = vmatprep.subr.bf16.mxu0 0
      %3443 = vmatpush1.bf16.msra.mxu0 0
      %3444 = vmatprep.subr.bf16.mxu0 0
      %3445 = vmatpush1.bf16.msra.mxu0 0
      %3446 = vmatprep.subr.bf16.mxu0 0
      %3447 = vmatpush1.bf16.msra.mxu0 0
      %3448 = vmatprep.mubr.bf16.mxu0 0
      %3449 = vmatmul.mubr.bf16.gmra.mrb[0].mxu0 %v3411
      %v3450 = vpop.f32.mrb[0].mxu0
      %v3451 = vadd.f32 0.0, %v3450
      %v3452 = vpop.f32.mrb[0].mxu0
      %v3453 = vpop.f32.mrb[0].mxu0
      %v3454 = vpop.f32.mrb[0].mxu0
      %3455 = vdwg.mxu0
      %v3457 = vsel %vm1555, %v3403, 0
      %v3460 = vsel %vm1795, %v3407, 0
      %3462 = vmatprep.subr.bf16.mxu0 0
      %3463 = vmatpush1.bf16.msra.mxu0 %v3460
      %3464 = vmatprep.subr.bf16.mxu0 0
      %3465 = vmatpush1.bf16.msra.mxu0 0
      %3466 = vmatprep.subr.bf16.mxu0 0
      %3467 = vmatpush1.bf16.msra.mxu0 0
      %3468 = vmatprep.subr.bf16.mxu0 0
      %3469 = vmatpush1.bf16.msra.mxu0 0
      %3470 = vmatprep.subr.bf16.mxu0 0
      %3471 = vmatpush1.bf16.msra.mxu0 0
      %3472 = vmatprep.subr.bf16.mxu0 0
      %3473 = vmatpush1.bf16.msra.mxu0 0
      %3474 = vmatprep.subr.bf16.mxu0 0
      %3475 = vmatpush1.bf16.msra.mxu0 0
      %3476 = vmatprep.subr.bf16.mxu0 0
      %3477 = vmatpush1.bf16.msra.mxu0 0
      %3478 = vmatprep.subr.bf16.mxu0 0
      %3479 = vmatpush1.bf16.msra.mxu0 0
      %3480 = vmatprep.subr.bf16.mxu0 0
      %3481 = vmatpush1.bf16.msra.mxu0 0
      %3482 = vmatprep.subr.bf16.mxu0 0
      %3483 = vmatpush1.bf16.msra.mxu0 0
      %3484 = vmatprep.subr.bf16.mxu0 0
      %3485 = vmatpush1.bf16.msra.mxu0 0
      %3486 = vmatprep.subr.bf16.mxu0 0
      %3487 = vmatpush1.bf16.msra.mxu0 0
      %3488 = vmatprep.subr.bf16.mxu0 0
      %3489 = vmatpush1.bf16.msra.mxu0 0
      %3490 = vmatprep.subr.bf16.mxu0 0
      %3491 = vmatpush1.bf16.msra.mxu0 0
      %3492 = vmatprep.subr.bf16.mxu0 0
      %3493 = vmatpush1.bf16.msra.mxu0 0
      %3494 = vmatprep.mubr.bf16.mxu0 0
      %3495 = vmatmul.mubr.bf16.gmra.mrb[0].mxu0 %v3457
      %v3496 = vpop.f32.mrb[0].mxu0
      %v3497 = vadd.f32 0.0, %v3496
      %v3498 = vpop.f32.mrb[0].mxu0
      %v3499 = vpop.f32.mrb[0].mxu0
      %v3500 = vpop.f32.mrb[0].mxu0
      %3501 = vdwg.mxu0
      %v3503 = vsel %vm1555, %v3404, 0
      %v3506 = vsel %vm1795, %v3408, 0
      %3508 = vmatprep.subr.bf16.mxu0 0
      %3509 = vmatpush1.bf16.msra.mxu0 %v3506
      %3510 = vmatprep.subr.bf16.mxu0 0
      %3511 = vmatpush1.bf16.msra.mxu0 0
      %3512 = vmatprep.subr.bf16.mxu0 0
      %3513 = vmatpush1.bf16.msra.mxu0 0
      %3514 = vmatprep.subr.bf16.mxu0 0
      %3515 = vmatpush1.bf16.msra.mxu0 0
      %3516 = vmatprep.subr.bf16.mxu0 0
      %3517 = vmatpush1.bf16.msra.mxu0 0
      %3518 = vmatprep.subr.bf16.mxu0 0
      %3519 = vmatpush1.bf16.msra.mxu0 0
      %3520 = vmatprep.subr.bf16.mxu0 0
      %3521 = vmatpush1.bf16.msra.mxu0 0
      %3522 = vmatprep.subr.bf16.mxu0 0
      %3523 = vmatpush1.bf16.msra.mxu0 0
      %3524 = vmatprep.subr.bf16.mxu0 0
      %3525 = vmatpush1.bf16.msra.mxu0 0
      %3526 = vmatprep.subr.bf16.mxu0 0
      %3527 = vmatpush1.bf16.msra.mxu0 0
      %3528 = vmatprep.subr.bf16.mxu0 0
      %3529 = vmatpush1.bf16.msra.mxu0 0
      %3530 = vmatprep.subr.bf16.mxu0 0
      %3531 = vmatpush1.bf16.msra.mxu0 0
      %3532 = vmatprep.subr.bf16.mxu0 0
      %3533 = vmatpush1.bf16.msra.mxu0 0
      %3534 = vmatprep.subr.bf16.mxu0 0
      %3535 = vmatpush1.bf16.msra.mxu0 0
      %3536 = vmatprep.subr.bf16.mxu0 0
      %3537 = vmatpush1.bf16.msra.mxu0 0
      %3538 = vmatprep.subr.bf16.mxu0 0
      %3539 = vmatpush1.bf16.msra.mxu0 0
      %3540 = vmatprep.mubr.bf16.mxu0 0
      %3541 = vmatmul.mubr.bf16.gmra.mrb[0].mxu0 %v3503
      %v3542 = vpop.f32.mrb[0].mxu0
      %v3543 = vadd.f32 0.0, %v3542
      %v3544 = vpop.f32.mrb[0].mxu0
      %v3545 = vpop.f32.mrb[0].mxu0
      %v3546 = vpop.f32.mrb[0].mxu0
      %3547 = vdwg.mxu0
      %v3549 = vsel %vm1555, %v3405, 0
      %v3552 = vsel %vm1795, %v3409, 0
      %3554 = vmatprep.subr.bf16.mxu0 0
      %3555 = vmatpush1.bf16.msra.mxu0 %v3552
      %3556 = vmatprep.subr.bf16.mxu0 0
      %3557 = vmatpush1.bf16.msra.mxu0 0
      %3558 = vmatprep.subr.bf16.mxu0 0
      %3559 = vmatpush1.bf16.msra.mxu0 0
      %3560 = vmatprep.subr.bf16.mxu0 0
      %3561 = vmatpush1.bf16.msra.mxu0 0
      %3562 = vmatprep.subr.bf16.mxu0 0
      %3563 = vmatpush1.bf16.msra.mxu0 0
      %3564 = vmatprep.subr.bf16.mxu0 0
      %3565 = vmatpush1.bf16.msra.mxu0 0
      %3566 = vmatprep.subr.bf16.mxu0 0
      %3567 = vmatpush1.bf16.msra.mxu0 0
      %3568 = vmatprep.subr.bf16.mxu0 0
      %3569 = vmatpush1.bf16.msra.mxu0 0
      %3570 = vmatprep.subr.bf16.mxu0 0
      %3571 = vmatpush1.bf16.msra.mxu0 0
      %3572 = vmatprep.subr.bf16.mxu0 0
      %3573 = vmatpush1.bf16.msra.mxu0 0
      %3574 = vmatprep.subr.bf16.mxu0 0
      %3575 = vmatpush1.bf16.msra.mxu0 0
      %3576 = vmatprep.subr.bf16.mxu0 0
      %3577 = vmatpush1.bf16.msra.mxu0 0
      %3578 = vmatprep.subr.bf16.mxu0 0
      %3579 = vmatpush1.bf16.msra.mxu0 0
      %3580 = vmatprep.subr.bf16.mxu0 0
      %3581 = vmatpush1.bf16.msra.mxu0 0
      %3582 = vmatprep.subr.bf16.mxu0 0
      %3583 = vmatpush1.bf16.msra.mxu0 0
      %3584 = vmatprep.subr.bf16.mxu0 0
      %3585 = vmatpush1.bf16.msra.mxu0 0
      %3586 = vmatprep.mubr.bf16.mxu0 0
      %3587 = vmatmul.mubr.bf16.gmra.mrb[0].mxu0 %v3549
      %v3588 = vpop.f32.mrb[0].mxu0
      %v3589 = vadd.f32 0.0, %v3588
      %v3590 = vpop.f32.mrb[0].mxu0
      %v3591 = vpop.f32.mrb[0].mxu0
      %v3592 = vpop.f32.mrb[0].mxu0
      %3593 = vdwg.mxu0
      %v3594 = vpack.c.bf16 %v3451, %v3451
      %v3595 = vpack.c.bf16 %v3497, %v3497
      %v3596 = vpack.c.bf16 %v3543, %v3543
      %v3597 = vpack.c.bf16 %v3589, %v3589
      %s3598 = scalar_lea.vmem %s10, 16
      %v3599 = vld [vmem:[%s3598] sm:$0xf]
      %v3600 = vld [vmem:[%s3598 + $0x4] sm:$0xf]
      %v3601 = vld [vmem:[%s3598 + $0x8] sm:$0xf]
      %v3602 = vld [vmem:[%s3598 + $0xc] sm:$0xf]
      %v3604 = vsel %vm1555, %v3594, 0
      %v3607 = vsel %vm1795, %v3599, 0
      %3609 = vmatprep.subr.bf16.mxu0 0
      %3610 = vmatpush1.bf16.msra.mxu0 %v3607
      %3611 = vmatprep.subr.bf16.mxu0 0
      %3612 = vmatpush1.bf16.msra.mxu0 0
      %3613 = vmatprep.subr.bf16.mxu0 0
      %3614 = vmatpush1.bf16.msra.mxu0 0
      %3615 = vmatprep.subr.bf16.mxu0 0
      %3616 = vmatpush1.bf16.msra.mxu0 0
      %3617 = vmatprep.subr.bf16.mxu0 0
      %3618 = vmatpush1.bf16.msra.mxu0 0
      %3619 = vmatprep.subr.bf16.mxu0 0
      %3620 = vmatpush1.bf16.msra.mxu0 0
      %3621 = vmatprep.subr.bf16.mxu0 0
      %3622 = vmatpush1.bf16.msra.mxu0 0
      %3623 = vmatprep.subr.bf16.mxu0 0
      %3624 = vmatpush1.bf16.msra.mxu0 0
      %3625 = vmatprep.subr.bf16.mxu0 0
      %3626 = vmatpush1.bf16.msra.mxu0 0
      %3627 = vmatprep.subr.bf16.mxu0 0
      %3628 = vmatpush1.bf16.msra.mxu0 0
      %3629 = vmatprep.subr.bf16.mxu0 0
      %3630 = vmatpush1.bf16.msra.mxu0 0
      %3631 = vmatprep.subr.bf16.mxu0 0
      %3632 = vmatpush1.bf16.msra.mxu0 0
      %3633 = vmatprep.subr.bf16.mxu0 0
      %3634 = vmatpush1.bf16.msra.mxu0 0
      %3635 = vmatprep.subr.bf16.mxu0 0
      %3636 = vmatpush1.bf16.msra.mxu0 0
      %3637 = vmatprep.subr.bf16.mxu0 0
      %3638 = vmatpush1.bf16.msra.mxu0 0
      %3639 = vmatprep.subr.bf16.mxu0 0
      %3640 = vmatpush1.bf16.msra.mxu0 0
      %3641 = vmatprep.mubr.bf16.mxu0 0
      %3642 = vmatmul.mubr.bf16.gmra.mrb[0].mxu0 %v3604
      %v3643 = vpop.f32.mrb[0].mxu0
      %v3644 = vadd.f32 0.0, %v3643
      %v3645 = vpop.f32.mrb[0].mxu0
      %v3646 = vpop.f32.mrb[0].mxu0
      %v3647 = vpop.f32.mrb[0].mxu0
      %3648 = vdwg.mxu0
      %v3650 = vsel %vm1555, %v3595, 0
      %v3653 = vsel %vm1795, %v3600, 0
      %3655 = vmatprep.subr.bf16.mxu0 0
      %3656 = vmatpush1.bf16.msra.mxu0 %v3653
      %3657 = vmatprep.subr.bf16.mxu0 0
      %3658 = vmatpush1.bf16.msra.mxu0 0
      %3659 = vmatprep.subr.bf16.mxu0 0
      %3660 = vmatpush1.bf16.msra.mxu0 0
      %3661 = vmatprep.subr.bf16.mxu0 0
      %3662 = vmatpush1.bf16.msra.mxu0 0
      %3663 = vmatprep.subr.bf16.mxu0 0
      %3664 = vmatpush1.bf16.msra.mxu0 0
      %3665 = vmatprep.subr.bf16.mxu0 0
      %3666 = vmatpush1.bf16.msra.mxu0 0
      %3667 = vmatprep.subr.bf16.mxu0 0
      %3668 = vmatpush1.bf16.msra.mxu0 0
      %3669 = vmatprep.subr.bf16.mxu0 0
      %3670 = vmatpush1.bf16.msra.mxu0 0
      %3671 = vmatprep.subr.bf16.mxu0 0
      %3672 = vmatpush1.bf16.msra.mxu0 0
      %3673 = vmatprep.subr.bf16.mxu0 0
      %3674 = vmatpush1.bf16.msra.mxu0 0
      %3675 = vmatprep.subr.bf16.mxu0 0
      %3676 = vmatpush1.bf16.msra.mxu0 0
      %3677 = vmatprep.subr.bf16.mxu0 0
      %3678 = vmatpush1.bf16.msra.mxu0 0
      %3679 = vmatprep.subr.bf16.mxu0 0
      %3680 = vmatpush1.bf16.msra.mxu0 0
      %3681 = vmatprep.subr.bf16.mxu0 0
      %3682 = vmatpush1.bf16.msra.mxu0 0
      %3683 = vmatprep.subr.bf16.mxu0 0
      %3684 = vmatpush1.bf16.msra.mxu0 0
      %3685 = vmatprep.subr.bf16.mxu0 0
      %3686 = vmatpush1.bf16.msra.mxu0 0
      %3687 = vmatprep.mubr.bf16.mxu0 0
      %3688 = vmatmul.mubr.bf16.gmra.mrb[0].mxu0 %v3650
      %v3689 = vpop.f32.mrb[0].mxu0
      %v3690 = vadd.f32 0.0, %v3689
      %v3691 = vpop.f32.mrb[0].mxu0
      %v3692 = vpop.f32.mrb[0].mxu0
      %v3693 = vpop.f32.mrb[0].mxu0
      %3694 = vdwg.mxu0
      %v3696 = vsel %vm1555, %v3596, 0
      %v3699 = vsel %vm1795, %v3601, 0
      %3701 = vmatprep.subr.bf16.mxu0 0
      %3702 = vmatpush1.bf16.msra.mxu0 %v3699
      %3703 = vmatprep.subr.bf16.mxu0 0
      %3704 = vmatpush1.bf16.msra.mxu0 0
      %3705 = vmatprep.subr.bf16.mxu0 0
      %3706 = vmatpush1.bf16.msra.mxu0 0
      %3707 = vmatprep.subr.bf16.mxu0 0
      %3708 = vmatpush1.bf16.msra.mxu0 0
      %3709 = vmatprep.subr.bf16.mxu0 0
      %3710 = vmatpush1.bf16.msra.mxu0 0
      %3711 = vmatprep.subr.bf16.mxu0 0
      %3712 = vmatpush1.bf16.msra.mxu0 0
      %3713 = vmatprep.subr.bf16.mxu0 0
      %3714 = vmatpush1.bf16.msra.mxu0 0
      %3715 = vmatprep.subr.bf16.mxu0 0
      %3716 = vmatpush1.bf16.msra.mxu0 0
      %3717 = vmatprep.subr.bf16.mxu0 0
      %3718 = vmatpush1.bf16.msra.mxu0 0
      %3719 = vmatprep.subr.bf16.mxu0 0
      %3720 = vmatpush1.bf16.msra.mxu0 0
      %3721 = vmatprep.subr.bf16.mxu0 0
      %3722 = vmatpush1.bf16.msra.mxu0 0
      %3723 = vmatprep.subr.bf16.mxu0 0
      %3724 = vmatpush1.bf16.msra.mxu0 0
      %3725 = vmatprep.subr.bf16.mxu0 0
      %3726 = vmatpush1.bf16.msra.mxu0 0
      %3727 = vmatprep.subr.bf16.mxu0 0
      %3728 = vmatpush1.bf16.msra.mxu0 0
      %3729 = vmatprep.subr.bf16.mxu0 0
      %3730 = vmatpush1.bf16.msra.mxu0 0
      %3731 = vmatprep.subr.bf16.mxu0 0
      %3732 = vmatpush1.bf16.msra.mxu0 0
      %3733 = vmatprep.mubr.bf16.mxu0 0
      %3734 = vmatmul.mubr.bf16.gmra.mrb[0].mxu0 %v3696
      %v3735 = vpop.f32.mrb[0].mxu0
      %v3736 = vadd.f32 0.0, %v3735
      %v3737 = vpop.f32.mrb[0].mxu0
      %v3738 = vpop.f32.mrb[0].mxu0
      %v3739 = vpop.f32.mrb[0].mxu0
      %3740 = vdwg.mxu0
      %v3742 = vsel %vm1555, %v3597, 0
      %v3745 = vsel %vm1795, %v3602, 0
      %3747 = vmatprep.subr.bf16.mxu0 0
      %3748 = vmatpush1.bf16.msra.mxu0 %v3745
      %3749 = vmatprep.subr.bf16.mxu0 0
      %3750 = vmatpush1.bf16.msra.mxu0 0
      %3751 = vmatprep.subr.bf16.mxu0 0
      %3752 = vmatpush1.bf16.msra.mxu0 0
      %3753 = vmatprep.subr.bf16.mxu0 0
      %3754 = vmatpush1.bf16.msra.mxu0 0
      %3755 = vmatprep.subr.bf16.mxu0 0
      %3756 = vmatpush1.bf16.msra.mxu0 0
      %3757 = vmatprep.subr.bf16.mxu0 0
      %3758 = vmatpush1.bf16.msra.mxu0 0
      %3759 = vmatprep.subr.bf16.mxu0 0
      %3760 = vmatpush1.bf16.msra.mxu0 0
      %3761 = vmatprep.subr.bf16.mxu0 0
      %3762 = vmatpush1.bf16.msra.mxu0 0
      %3763 = vmatprep.subr.bf16.mxu0 0
      %3764 = vmatpush1.bf16.msra.mxu0 0
      %3765 = vmatprep.subr.bf16.mxu0 0
      %3766 = vmatpush1.bf16.msra.mxu0 0
      %3767 = vmatprep.subr.bf16.mxu0 0
      %3768 = vmatpush1.bf16.msra.mxu0 0
      %3769 = vmatprep.subr.bf16.mxu0 0
      %3770 = vmatpush1.bf16.msra.mxu0 0
      %3771 = vmatprep.subr.bf16.mxu0 0
      %3772 = vmatpush1.bf16.msra.mxu0 0
      %3773 = vmatprep.subr.bf16.mxu0 0
      %3774 = vmatpush1.bf16.msra.mxu0 0
      %3775 = vmatprep.subr.bf16.mxu0 0
      %3776 = vmatpush1.bf16.msra.mxu0 0
      %3777 = vmatprep.subr.bf16.mxu0 0
      %3778 = vmatpush1.bf16.msra.mxu0 0
      %3779 = vmatprep.mubr.bf16.mxu0 0
      %3780 = vmatmul.mubr.bf16.gmra.mrb[0].mxu0 %v3742
      %v3781 = vpop.f32.mrb[0].mxu0
      %v3782 = vadd.f32 0.0, %v3781
      %v3783 = vpop.f32.mrb[0].mxu0
      %v3784 = vpop.f32.mrb[0].mxu0
      %v3785 = vpop.f32.mrb[0].mxu0
      %3786 = vdwg.mxu0
      %v3787 = vsel %vm751, %v3644, 0.0
      %v3788 = vsel %vm751, %v3690, 0.0
      %v3789 = vadd.f32 %v3787, %v3788
      %v3790 = vsel %vm751, %v3736, 0.0
      %v3791 = vadd.f32 %v3789, %v3790
      %v3792 = vsel %vm751, %v3782, 0.0
      %v3793 = vadd.f32 %v3791, %v3792
      %s3794 = scalar_lea.vmem %s11, 1
      %v3795 = vld [vmem:[%s3794] sm:$0x1]
      %v3797 = vlaneseq
      %v3798 = vshrl.u32 %v3797, 7
      %v3799 = vsub.s32 0, %v3798
      %v3800 = vrot.slane %v3795, %v3799
      %v3802 = vadd.f32 %v3793, %v3800
      %v3803 = vadd.f32 %v3802, %v2399
      %s3804 = scalar_lea.vmem %s12, 1
      %v3805 = vld [vmem:[%s3804] sm:$0x1]
      %s3806 = scalar_lea.vmem %s13, 1
      %v3807 = vld [vmem:[%s3806] sm:$0x1]
      %v3808 = vsel %vm751, %v3803, 0.0
      %3809 = vadd.xlane.f32.xlu0 %v3808
      %v3810 = vpop.xlane.xlu0 %3809
      %v3811 = vmul.f32 %v3810, %v755
      %v3812 = vsub.f32 %v3803, %v3811
      %v3813 = vmul.f32 %v3812, %v3812
      %v3814 = vsel %vm751, %v3813, 0.0
      %3815 = vadd.xlane.f32.xlu0 %v3814
      %v3816 = vpop.xlane.xlu0 %3815
      %v3817 = vmul.f32 %v3816, %v755
      %v3818 = vadd.f32 %v3817, 1e-12
      %v3819 = vrsqrt.pop %v3818
      %v3820 = vmul.f32 %v3812, %v3819
      %v3822 = vlaneseq
      %v3823 = vshrl.u32 %v3822, 7
      %v3824 = vsub.s32 0, %v3823
      %v3825 = vrot.slane %v3805, %v3824
      %v3827 = vmul.f32 %v3820, %v3825
      %v3829 = vlaneseq
      %v3830 = vshrl.u32 %v3829, 7
      %v3831 = vsub.s32 0, %v3830
      %v3832 = vrot.slane %v3807, %v3831
      %v3834 = vadd.f32 %v3827, %v3832
      %v3835 = vpack.c.bf16 %v3834, %v3834
      %s3836 = scalar_lea.vmem %s14, 16
      %v3837 = vld [vmem:[%s3836] sm:$0xf]
      %v3838 = vld [vmem:[%s3836 + $0x4] sm:$0xf]
      %v3839 = vld [vmem:[%s3836 + $0x8] sm:$0xf]
      %v3840 = vld [vmem:[%s3836 + $0xc] sm:$0xf]
      %s3841 = scalar_lea.vmem %s15, 1
      %v3842 = vld [vmem:[%s3841] sm:$0x1]
      %v3844 = vlaneseq
      %v3845 = vshrl.u32 %v3844, 7
      %v3846 = vsub.s32 0, %v3845
      %v3847 = vrot.slane %v3842, %v3846
      %v3853 = vunpack.c.l.b16 %v3837
      %v3854 = vunpack.c.l.b16 %v3838
      %v3855 = vunpack.c.l.b16 %v3839
      %v3856 = vunpack.c.l.b16 %v3840
      %v3857 = vpack.c.b16 %v3854, %v3853
      %v3858 = vpack.c.b16 %v3856, %v3855
      %v3862 = vsel %vm751, %v3835, 0
      %3864 = vmatprep.subr.bf16.mxu0 0
      %3865 = vmatpush1.bf16.msra.mxu0 %v3857
      %3866 = vmatprep.subr.bf16.mxu0 0
      %3867 = vmatpush1.bf16.msra.mxu0 %v3858
      %3868 = vmatprep.subr.bf16.mxu0 0
      %3869 = vmatpush1.bf16.msra.mxu0 0
      %3870 = vmatprep.subr.bf16.mxu0 0
      %3871 = vmatpush1.bf16.msra.mxu0 0
      %3872 = vmatprep.subr.bf16.mxu0 0
      %3873 = vmatpush1.bf16.msra.mxu0 0
      %3874 = vmatprep.subr.bf16.mxu0 0
      %3875 = vmatpush1.bf16.msra.mxu0 0
      %3876 = vmatprep.subr.bf16.mxu0 0
      %3877 = vmatpush1.bf16.msra.mxu0 0
      %3878 = vmatprep.subr.bf16.mxu0 0
      %3879 = vmatpush1.bf16.msra.mxu0 0
      %3880 = vmatprep.subr.bf16.mxu0 0
      %3881 = vmatpush1.bf16.msra.mxu0 0
      %3882 = vmatprep.subr.bf16.mxu0 0
      %3883 = vmatpush1.bf16.msra.mxu0 0
      %3884 = vmatprep.subr.bf16.mxu0 0
      %3885 = vmatpush1.bf16.msra.mxu0 0
      %3886 = vmatprep.subr.bf16.mxu0 0
      %3887 = vmatpush1.bf16.msra.mxu0 0
      %3888 = vmatprep.subr.bf16.mxu0 0
      %3889 = vmatpush1.bf16.msra.mxu0 0
      %3890 = vmatprep.subr.bf16.mxu0 0
      %3891 = vmatpush1.bf16.msra.mxu0 0
      %3892 = vmatprep.subr.bf16.mxu0 0
      %3893 = vmatpush1.bf16.msra.mxu0 0
      %3894 = vmatprep.subr.bf16.mxu0 0
      %3895 = vmatpush1.bf16.msra.mxu0 0
      %3896 = vmatprep.mubr.bf16.mxu0 0
      %3897 = vmatmul.mubr.bf16.gmra.mrb[0].mxu0 %v3862
      %v3898 = vpop.f32.mrb[0].mxu0
      %v3899 = vadd.f32 %v3847, %v3898
      %v3900 = vpop.f32.mrb[0].mxu0
      %v3901 = vpop.f32.mrb[0].mxu0
      %v3902 = vpop.f32.mrb[0].mxu0
      %3903 = vdwg.mxu0
      %v3904 = vmul.f32 %v3899, 0.5
      %v3905 = vmul.f32 %v3899, 0.70710677
      %v3906 = verf.f32.pop %v3905
      %v3907 = vadd.f32 %v3906, 1.0
      %v3908 = vmul.f32 %v3904, %v3907
      %v3909 = vpack.c.bf16 %v3908, %v3908
      %s3910 = scalar_lea.vmem %s16, 32
      %v3911 = vld [vmem:[%s3910] sm:$0xf]
      %v3912 = vld [vmem:[%s3910 + $0x4] sm:$0xf]
      %v3913 = vld [vmem:[%s3910 + $0x8] sm:$0xf]
      %v3914 = vld [vmem:[%s3910 + $0xc] sm:$0xf]
      %v3915 = vld [vmem:[%s3910 + $0x10] sm:$0xf]
      %v3916 = vld [vmem:[%s3910 + $0x14] sm:$0xf]
      %v3917 = vld [vmem:[%s3910 + $0x18] sm:$0xf]
      %v3918 = vld [vmem:[%s3910 + $0x1c] sm:$0xf]
      %s3919 = scalar_lea.vmem %s17, 1
      %v3920 = vld [vmem:[%s3919] sm:$0x1]
      %v3922 = vlaneseq
      %v3923 = vshrl.u32 %v3922, 7
      %v3924 = vsub.s32 0, %v3923
      %v3925 = vrot.slane %v3920, %v3924
      %v3935 = vunpack.c.l.b16 %v3911
      %v3936 = vunpack.c.l.b16 %v3912
      %v3937 = vunpack.c.l.b16 %v3913
      %v3938 = vunpack.c.l.b16 %v3914
      %v3939 = vunpack.c.l.b16 %v3915
      %v3940 = vunpack.c.l.b16 %v3916
      %v3941 = vunpack.c.l.b16 %v3917
      %v3942 = vunpack.c.l.b16 %v3918
      %v3943 = vpack.c.b16 %v3936, %v3935
      %v3944 = vpack.c.b16 %v3938, %v3937
      %v3945 = vpack.c.b16 %v3940, %v3939
      %v3946 = vpack.c.b16 %v3942, %v3941
      %v3952 = vsel %vm2326, %v3909, 0
      %3954 = vmatprep.subr.bf16.mxu0 0
      %3955 = vmatpush1.bf16.msra.mxu0 %v3943
      %3956 = vmatprep.subr.bf16.mxu0 0
      %3957 = vmatpush1.bf16.msra.mxu0 %v3944
      %3958 = vmatprep.subr.bf16.mxu0 0
      %3959 = vmatpush1.bf16.msra.mxu0 %v3945
      %3960 = vmatprep.subr.bf16.mxu0 0
      %3961 = vmatpush1.bf16.msra.mxu0 %v3946
      %3962 = vmatprep.subr.bf16.mxu0 0
      %3963 = vmatpush1.bf16.msra.mxu0 0
      %3964 = vmatprep.subr.bf16.mxu0 0
      %3965 = vmatpush1.bf16.msra.mxu0 0
      %3966 = vmatprep.subr.bf16.mxu0 0
      %3967 = vmatpush1.bf16.msra.mxu0 0
      %3968 = vmatprep.subr.bf16.mxu0 0
      %3969 = vmatpush1.bf16.msra.mxu0 0
      %3970 = vmatprep.subr.bf16.mxu0 0
      %3971 = vmatpush1.bf16.msra.mxu0 0
      %3972 = vmatprep.subr.bf16.mxu0 0
      %3973 = vmatpush1.bf16.msra.mxu0 0
      %3974 = vmatprep.subr.bf16.mxu0 0
      %3975 = vmatpush1.bf16.msra.mxu0 0
      %3976 = vmatprep.subr.bf16.mxu0 0
      %3977 = vmatpush1.bf16.msra.mxu0 0
      %3978 = vmatprep.subr.bf16.mxu0 0
      %3979 = vmatpush1.bf16.msra.mxu0 0
      %3980 = vmatprep.subr.bf16.mxu0 0
      %3981 = vmatpush1.bf16.msra.mxu0 0
      %3982 = vmatprep.subr.bf16.mxu0 0
      %3983 = vmatpush1.bf16.msra.mxu0 0
      %3984 = vmatprep.subr.bf16.mxu0 0
      %3985 = vmatpush1.bf16.msra.mxu0 0
      %3986 = vmatprep.mubr.bf16.mxu0 0
      %3987 = vmatmul.mubr.bf16.gmra.mrb[0].mxu0 %v3952
      %v3988 = vpop.f32.mrb[0].mxu0
      %v3989 = vadd.f32 %v3925, %v3988
      %v3990 = vpop.f32.mrb[0].mxu0
      %v3991 = vpop.f32.mrb[0].mxu0
      %v3992 = vpop.f32.mrb[0].mxu0
      %3993 = vdwg.mxu0
      %v3994 = vadd.f32 %v3989, %v3834
      %s3995 = scalar_lea.vmem %s18, 1
      %v3996 = vld [vmem:[%s3995] sm:$0x1]
      %s3997 = scalar_lea.vmem %s19, 1
      %v3998 = vld [vmem:[%s3997] sm:$0x1]
      %v3999 = vsel %vm751, %v3994, 0.0
      %4000 = vadd.xlane.f32.xlu0 %v3999
      %v4001 = vpop.xlane.xlu0 %4000
      %v4002 = vmul.f32 %v4001, %v755
      %v4003 = vsub.f32 %v3994, %v4002
      %v4004 = vmul.f32 %v4003, %v4003
      %v4005 = vsel %vm751, %v4004, 0.0
      %4006 = vadd.xlane.f32.xlu0 %v4005
      %v4007 = vpop.xlane.xlu0 %4006
      %v4008 = vmul.f32 %v4007, %v755
      %v4009 = vadd.f32 %v4008, 1e-12
      %v4010 = vrsqrt.pop %v4009
      %v4011 = vmul.f32 %v4003, %v4010
      %v4013 = vlaneseq
      %v4014 = vshrl.u32 %v4013, 7
      %v4015 = vsub.s32 0, %v4014
      %v4016 = vrot.slane %v3996, %v4015
      %v4018 = vmul.f32 %v4011, %v4016
      %v4020 = vlaneseq
      %v4021 = vshrl.u32 %v4020, 7
      %v4022 = vsub.s32 0, %v4021
      %v4023 = vrot.slane %v3998, %v4022
      %v4025 = vadd.f32 %v4018, %v4023
      %v4026 = vlaneseq
      %v4027 = vshrl.u32 %v4026, 7
      %v4028 = vsub.s32 0, %v4027
      %v4029 = vrot.slane %v4025, %v4028
      %v4030 = vld [vmem:[%s20] sm:$0xff]
      %v4031 = vld [vmem:[%s20 + $0x8] sm:$0xff]
      %v4032 = vld [vmem:[%s20 + $0x10] sm:$0xff]
      %v4033 = vld [vmem:[%s20 + $0x18] sm:$0xff]
      %v4034 = vld [vmem:[%s21] sm:$0x1]
      %v4036 = vlaneseq
      %v4037 = vshrl.u32 %v4036, 7
      %v4038 = vsub.s32 0, %v4037
      %v4039 = vrot.slane %v4034, %v4038
      %v4042 = vsel %vm751, %v4029, 0
      %4044 = vmatprep.subr.mxu0 0.0
      %4045 = vmatpush1.msra.mxu0 %v4030
      %4046 = vmatprep.subr.mxu0 0.0
      %4047 = vmatpush1.msra.mxu0 %v4031
      %4048 = vmatprep.subr.mxu0 0.0
      %4049 = vmatpush1.msra.mxu0 %v4032
      %4050 = vmatprep.subr.mxu0 0.0
      %4051 = vmatpush1.msra.mxu0 %v4033
      %4052 = vmatprep.subr.mxu0 0.0
      %4053 = vmatpush1.msra.mxu0 0.0
      %4054 = vmatprep.subr.mxu0 0.0
      %4055 = vmatpush1.msra.mxu0 0.0
      %4056 = vmatprep.subr.mxu0 0.0
      %4057 = vmatpush1.msra.mxu0 0.0
      %4058 = vmatprep.subr.mxu0 0.0
      %4059 = vmatpush1.msra.mxu0 0.0
      %4060 = vmatprep.subr.mxu0 0.0
      %4061 = vmatpush1.msra.mxu0 0.0
      %4062 = vmatprep.subr.mxu0 0.0
      %4063 = vmatpush1.msra.mxu0 0.0
      %4064 = vmatprep.subr.mxu0 0.0
      %4065 = vmatpush1.msra.mxu0 0.0
      %4066 = vmatprep.subr.mxu0 0.0
      %4067 = vmatpush1.msra.mxu0 0.0
      %4068 = vmatprep.subr.mxu0 0.0
      %4069 = vmatpush1.msra.mxu0 0.0
      %4070 = vmatprep.subr.mxu0 0.0
      %4071 = vmatpush1.msra.mxu0 0.0
      %4072 = vmatprep.subr.mxu0 0.0
      %4073 = vmatpush1.msra.mxu0 0.0
      %4074 = vmatprep.subr.mxu0 0.0
      %4075 = vmatpush1.msra.mxu0 0.0
      %4076 = vmatprep.subr.mxu0 0.0
      %4077 = vmatpush1.msra.mxu0 0.0
      %4078 = vmatprep.subr.mxu0 0.0
      %4079 = vmatpush1.msra.mxu0 0.0
      %4080 = vmatprep.subr.mxu0 0.0
      %4081 = vmatpush1.msra.mxu0 0.0
      %4082 = vmatprep.subr.mxu0 0.0
      %4083 = vmatpush1.msra.mxu0 0.0
      %4084 = vmatprep.subr.mxu0 0.0
      %4085 = vmatpush1.msra.mxu0 0.0
      %4086 = vmatprep.subr.mxu0 0.0
      %4087 = vmatpush1.msra.mxu0 0.0
      %4088 = vmatprep.subr.mxu0 0.0
      %4089 = vmatpush1.msra.mxu0 0.0
      %4090 = vmatprep.subr.mxu0 0.0
      %4091 = vmatpush1.msra.mxu0 0.0
      %4092 = vmatprep.subr.mxu0 0.0
      %4093 = vmatpush1.msra.mxu0 0.0
      %4094 = vmatprep.subr.mxu0 0.0
      %4095 = vmatpush1.msra.mxu0 0.0
      %4096 = vmatprep.subr.mxu0 0.0
      %4097 = vmatpush1.msra.mxu0 0.0
      %4098 = vmatprep.subr.mxu0 0.0
      %4099 = vmatpush1.msra.mxu0 0.0
      %4100 = vmatprep.subr.mxu0 0.0
      %4101 = vmatpush1.msra.mxu0 0.0
      %4102 = vmatprep.subr.mxu0 0.0
      %4103 = vmatpush1.msra.mxu0 0.0
      %4104 = vmatprep.subr.mxu0 0.0
      %4105 = vmatpush1.msra.mxu0 0.0
      %4106 = vmatprep.subr.mxu0 0.0
      %4107 = vmatpush1.msra.mxu0 0.0
      %4108 = vmatprep.mubr.f32.mxu0 0.0
      %4109 = vmatmul.mubr.f32.gmra.mrb[0].mxu0 %v4042
      %v4110 = vpop.f32.mrb[0].mxu0
      %v4111 = vadd.f32 %v4039, %v4110
      %v4112 = vpop.f32.mrb[0].mxu0
      %4113 = vdwg.mxu0
      %v4114 = vtanh.pop %v4111
      %v4115 = vld [vmem:[%s22] sm:$0xff]
      %v4116 = vld [vmem:[%s22 + $0x8] sm:$0xff]
      %v4117 = vld [vmem:[%s22 + $0x10] sm:$0xff]
      %v4118 = vld [vmem:[%s22 + $0x18] sm:$0xff]
      %v4119 = vld [vmem:[%s23] sm:$0x1]
      %v4121 = vlaneseq
      %v4122 = vshrl.u32 %v4121, 7
      %v4123 = vsub.s32 0, %v4122
      %v4124 = vrot.slane %v4119, %v4123
      %v4127 = vsel %vm751, %v4114, 0
      %4129 = vmatprep.subr.mxu0 0.0
      %4130 = vmatpush1.msra.mxu0 %v4115
      %4131 = vmatprep.subr.mxu0 0.0
      %4132 = vmatpush1.msra.mxu0 %v4116
      %4133 = vmatprep.subr.mxu0 0.0
      %4134 = vmatpush1.msra.mxu0 %v4117
      %4135 = vmatprep.subr.mxu0 0.0
      %4136 = vmatpush1.msra.mxu0 %v4118
      %4137 = vmatprep.subr.mxu0 0.0
      %4138 = vmatpush1.msra.mxu0 0.0
      %4139 = vmatprep.subr.mxu0 0.0
      %4140 = vmatpush1.msra.mxu0 0.0
      %4141 = vmatprep.subr.mxu0 0.0
      %4142 = vmatpush1.msra.mxu0 0.0
      %4143 = vmatprep.subr.mxu0 0.0
      %4144 = vmatpush1.msra.mxu0 0.0
      %4145 = vmatprep.subr.mxu0 0.0
      %4146 = vmatpush1.msra.mxu0 0.0
      %4147 = vmatprep.subr.mxu0 0.0
      %4148 = vmatpush1.msra.mxu0 0.0
      %4149 = vmatprep.subr.mxu0 0.0
      %4150 = vmatpush1.msra.mxu0 0.0
      %4151 = vmatprep.subr.mxu0 0.0
      %4152 = vmatpush1.msra.mxu0 0.0
      %4153 = vmatprep.subr.mxu0 0.0
      %4154 = vmatpush1.msra.mxu0 0.0
      %4155 = vmatprep.subr.mxu0 0.0
      %4156 = vmatpush1.msra.mxu0 0.0
      %4157 = vmatprep.subr.mxu0 0.0
      %4158 = vmatpush1.msra.mxu0 0.0
      %4159 = vmatprep.subr.mxu0 0.0
      %4160 = vmatpush1.msra.mxu0 0.0
      %4161 = vmatprep.subr.mxu0 0.0
      %4162 = vmatpush1.msra.mxu0 0.0
      %4163 = vmatprep.subr.mxu0 0.0
      %4164 = vmatpush1.msra.mxu0 0.0
      %4165 = vmatprep.subr.mxu0 0.0
      %4166 = vmatpush1.msra.mxu0 0.0
      %4167 = vmatprep.subr.mxu0 0.0
      %4168 = vmatpush1.msra.mxu0 0.0
      %4169 = vmatprep.subr.mxu0 0.0
      %4170 = vmatpush1.msra.mxu0 0.0
      %4171 = vmatprep.subr.mxu0 0.0
      %4172 = vmatpush1.msra.mxu0 0.0
      %4173 = vmatprep.subr.mxu0 0.0
      %4174 = vmatpush1.msra.mxu0 0.0
      %4175 = vmatprep.subr.mxu0 0.0
      %4176 = vmatpush1.msra.mxu0 0.0
      %4177 = vmatprep.subr.mxu0 0.0
      %4178 = vmatpush1.msra.mxu0 0.0
      %4179 = vmatprep.subr.mxu0 0.0
      %4180 = vmatpush1.msra.mxu0 0.0
      %4181 = vmatprep.subr.mxu0 0.0
      %4182 = vmatpush1.msra.mxu0 0.0
      %4183 = vmatprep.subr.mxu0 0.0
      %4184 = vmatpush1.msra.mxu0 0.0
      %4185 = vmatprep.subr.mxu0 0.0
      %4186 = vmatpush1.msra.mxu0 0.0
      %4187 = vmatprep.subr.mxu0 0.0
      %4188 = vmatpush1.msra.mxu0 0.0
      %4189 = vmatprep.subr.mxu0 0.0
      %4190 = vmatpush1.msra.mxu0 0.0
      %4191 = vmatprep.subr.mxu0 0.0
      %4192 = vmatpush1.msra.mxu0 0.0
      %4193 = vmatprep.mubr.f32.mxu0 0.0
      %4194 = vmatmul.mubr.f32.gmra.mrb[0].mxu0 %v4127
      %v4195 = vpop.f32.mrb[0].mxu0
      %v4196 = vadd.f32 %v4124, %v4195
      %v4197 = vpop.f32.mrb[0].mxu0
      %4198 = vdwg.mxu0
      %4199 = vst [vmem:[%s746] sm:$0xff] %v4196
      %p4200 = scmp.lt.s32.totalorder %s35, 1
      %s4201 = scalar_select %p4200, %s35, 1
      %s4202 = smul.addr %s4201, 8
      %s4203 = scalar_lea.vmem %s24, %s4202
      // Predicated region
      $region117: #{bert_classification_forward.1} parent=115 // pred_check
        %p4204 = pneg %p567
      $region118: #{bert_classification_forward.1} parent=115 // pred_check_branch
        %4206 = sbr.rel (%p4204) target = $region120
      $region119: #{bert_classification_forward.1} parent=115 // pred_region
        _
      $region120: #{bert_classification_forward.1} parent=115 // pred_fallthru
        _
    $region116: #{bert_classification_forward.1} parent=5 // pred_fallthru
      _
    %p4207 = scmp.le.s32.totalorder 2, %s30
    // Predicated region
    $region121: #{bert_classification_forward.1} parent=5 // pred_check
      %p4208 = pneg %p4207
    $region122: #{bert_classification_forward.1} parent=5 // pred_check_branch
      %4210 = sbr.rel (%p4208) target = $region124
    $region123: #{bert_classification_forward.1} parent=5 // pred_region
      %s4211 = ssub.s32 %s30, 2
      // Predicated region
      $region125: #{bert_classification_forward.1} parent=123 // pred_check
        %p4212 = pneg %p573
      $region126: #{bert_classification_forward.1} parent=123 // pred_check_branch
        %4214 = sbr.rel (%p4212) target = $region128
      $region127: #{bert_classification_forward.1} parent=123 // pred_region
        %p4215 = scmp.lt.s32.totalorder %s36, 1
        %s4216 = scalar_select %p4215, %s36, 1
        %s4217 = smul.addr %s4216, 8
        %s4218 = scalar_lea.vmem %s24, %s4217
      $region128: #{bert_classification_forward.1} parent=123 // pred_fallthru
        _
    $region124: #{bert_classification_forward.1} parent=5 // pred_fallthru
      _
  $region6: #{bert_classification_forward.1} parent=0 // loop_footer
    %s34 = sadd.s32 1, %s30
  $region7: #{bert_classification_forward.1} parent=0 // loop_footer_branch
    %29 = sbr.rel target = $region3
  $region8: #{bert_classification_forward.1} parent=0 // loop_exit
    _

</llo_original>
